<compile_context>
chip_gen: v7x
topology: tpu7x:2x2x1
jax: 0.10.0
libtpu: 0.0.40
codegen_flags: <defaults>
</compile_context>

<pallas_src>
import functools

import jax
import jax.numpy as jnp
from jax.experimental import pallas as pl
from jax.experimental.pallas import tpu as pltpu


# ----------------------------------------------------------------------------
# Fused kernel: recompute tiny hidden MLP per tile, then one contiguous w3 tile.
# ----------------------------------------------------------------------------
def decoder_kernel(x_ref, we_ref, be_ref, w1_ref, b1_ref, w2_ref, b2_ref,
                   w3_ref, b3_ref, o_ref):
    # expand: Linear(z_dim -> latent_dim), bf16 operands, f32 accumulation.
    x = x_ref[...].astype(jnp.bfloat16)
    h = jnp.dot(x, we_ref[...], preferred_element_type=jnp.float32) + be_ref[...]
    # fc1 + ReLU
    h = jnp.maximum(
        jnp.dot(h.astype(jnp.bfloat16), w1_ref[...],
                preferred_element_type=jnp.float32) + b1_ref[...],
        0.0,
    )
    # fc2 + ReLU
    h = jnp.maximum(
        jnp.dot(h.astype(jnp.bfloat16), w2_ref[...],
                preferred_element_type=jnp.float32) + b2_ref[...],
        0.0,
    )
    # Final Linear tile: the only large / HBM-bound piece.
    # w3_ref block is (1, nf2, tn) tile-major; b3_ref block is (1, 1, tn).
    o_ref[...] = (
        jnp.dot(h.astype(jnp.bfloat16), w3_ref[0],
                preferred_element_type=jnp.float32) + b3_ref[0]
    ).astype(o_ref.dtype)


def _pick_tn(n_out_pad, tn_max=3072):
    """Largest multiple of 128 that divides n_out_pad and is <= tn_max."""
    best = 128
    t = 128
    while t <= min(tn_max, n_out_pad):
        if n_out_pad % t == 0:
            best = t
        t += 128
    return best


def pack_params(params, tn=None):
    """One-time host-side packing: bf16 weights, f32 biases, tile-major w3/b3."""
    we, be, w1, b1, w2, b2, w3, b3 = params
    nf2, n_out = w3.shape
    n_out_pad = ((n_out + 127) // 128) * 128
    if tn is None:
        tn = _pick_tn(n_out_pad)
    assert n_out_pad % tn == 0 and tn % 128 == 0
    n_tiles = n_out_pad // tn
    pad = n_out_pad - n_out

    w3p = jnp.pad(w3.astype(jnp.bfloat16), ((0, 0), (0, pad)))
    b3p = jnp.pad(b3.astype(jnp.float32), ((0, 0), (0, pad)))
    # Tile-major: each grid step DMAs one contiguous (nf2, tn) slab.
    w3p = w3p.reshape(nf2, n_tiles, tn).transpose(1, 0, 2)   # (n_tiles, nf2, tn)
    b3p = b3p.reshape(1, n_tiles, tn).transpose(1, 0, 2)     # (n_tiles, 1, tn)

    packed = (
        we.astype(jnp.bfloat16), be.astype(jnp.float32),
        w1.astype(jnp.bfloat16), b1.astype(jnp.float32),
        w2.astype(jnp.bfloat16), b2.astype(jnp.float32),
        w3p, b3p,
    )
    meta = dict(tn=tn, n_out=n_out, n_out_pad=n_out_pad)
    return packed, meta


def decoder_fc_forward(x, packed_params, *, output_pts, tn, n_out, n_out_pad):
    """x: (B, z_dim) float32 -> (B, 3, output_pts) float32."""
    we, be, w1, b1, w2, b2, w3p, b3p = packed_params
    B, z_dim = x.shape
    latent_dim = we.shape[1]
    nf1 = w1.shape[1]
    nf2 = w2.shape[1]
    n_tiles = n_out_pad // tn
    assert n_out == output_pts * 3

    # Hidden-path operands are tiny; full-array blocks with constant index_map
    # (Pallas skips re-DMA when the block index does not change across steps).
    const = lambda shape: pl.BlockSpec(shape, lambda j: (0,) * len(shape))

    # Advisory cost: memory-bound, dominated by the bf16 w3 stream.
    hidden_flops = 2 * B * (z_dim * latent_dim + latent_dim * nf1 + nf1 * nf2)
    cost = pl.CostEstimate(
        flops=n_tiles * hidden_flops + 2 * B * nf2 * n_out_pad,
        transcendentals=0,
        bytes_accessed=(n_tiles * nf2 * tn * 2          # w3 (bf16)
                        + B * n_out_pad * 4             # output (f32)
                        + B * z_dim * 4),               # x (f32)
    )

    out_flat = pl.pallas_call(
        decoder_kernel,
        out_shape=jax.ShapeDtypeStruct((B, n_out_pad), jnp.float32),
        grid_spec=pltpu.PrefetchScalarGridSpec(
            num_scalar_prefetch=0,
            grid=(n_tiles,),
            in_specs=[
                const((B, z_dim)),
                const((z_dim, latent_dim)),
                const((1, latent_dim)),
                const((latent_dim, nf1)),
                const((1, nf1)),
                const((nf1, nf2)),
                const((1, nf2)),
                pl.BlockSpec((1, nf2, tn), lambda j: (j, 0, 0)),   # contiguous slab
                pl.BlockSpec((1, 1, tn), lambda j: (j, 0, 0)),
            ],
            out_specs=pl.BlockSpec((B, tn), lambda j: (0, j)),
        ),
        compiler_params=pltpu.CompilerParams(
            # Independent per-tile work -> v7x can shard tiles across its 2 TCs.
            dimension_semantics=("parallel",),
        ),
        cost_estimate=cost,
    )(x, we, be, w1, b1, w2, b2, w3p, b3p)

    if n_out_pad != n_out:
        out_flat = out_flat[:, :n_out]
    # x.view((-1, 3, output_pts)) in PyTorch is row-major -> plain reshape here
    # (kept outside the kernel so output stores stay lane-dense).
    return out_flat.reshape(B, 3, output_pts)


def init_params(key, *, z_dim, latent_dim, n_features, output_pts):
    """Deterministic synthetic parameters (PyTorch-default-style uniform init)."""

    def linear(key, fan_in, fan_out):
        k1, k2 = jax.random.split(key)
        bound = 1.0 / jnp.sqrt(fan_in)
        w = jax.random.uniform(k1, (fan_in, fan_out), jnp.float32, -bound, bound)
        b = jax.random.uniform(k2, (1, fan_out), jnp.float32, -bound, bound)
        return w, b

    keys = jax.random.split(key, 4)
    we, be = linear(keys[0], z_dim, latent_dim)               # expand
    w1, b1 = linear(keys[1], latent_dim, n_features[0])       # fc1
    w2, b2 = linear(keys[2], n_features[0], n_features[1])    # fc2
    w3, b3 = linear(keys[3], n_features[1], output_pts * 3)   # final fc
    return (we, be, w1, b1, w2, b2, w3, b3)


def reference_forward(x, params, *, output_pts):
    """JAX reference using the same bf16 weights / f32 accumulation recipe."""
    we, be, w1, b1, w2, b2, w3, b3 = params

    def lin(h, w, b):
        return jnp.dot(h.astype(jnp.bfloat16), w,
                       preferred_element_type=jnp.float32) + b

    h = lin(x, we, be)
    h = jnp.maximum(lin(h, w1, b1), 0.0)
    h = jnp.maximum(lin(h, w2, b2), 0.0)
    o = lin(h, w3, b3)
    return o.reshape(-1, 3, output_pts)


if __name__ == "__main__":
    # Module defaults: n_features=(256, 256), latent_dim=128, z_dim=64,
    # output_pts=2048, bn=False.
    B = 2
    z_dim = 64
    latent_dim = 128
    n_features = (256, 256)
    output_pts = 2048

    key = jax.random.PRNGKey(0)
    kx, kp = jax.random.split(key)
    x = jax.random.normal(kx, (B, z_dim), jnp.float32)
    params = init_params(
        kp, z_dim=z_dim, latent_dim=latent_dim,
        n_features=n_features, output_pts=output_pts,
    )

    # One-time packing (bf16 weights, tile-major w3/b3), outside of jit.
    packed, meta = pack_params(params)

    fwd = jax.jit(functools.partial(decoder_fc_forward,
                                    output_pts=output_pts, **meta))
    out = jax.block_until_ready(fwd(x, packed))

    # Reference uses the same bf16-quantized weights (f32 biases) so the check
    # verifies the kernel, not the quantization.
    ref_params = tuple(
        p.astype(jnp.bfloat16) if i % 2 == 0 else p.astype(jnp.float32)
        for i, p in enumerate(params)
    )
    ref = reference_forward(x, ref_params, output_pts=output_pts)

    assert out.shape == (B, 3, output_pts), out.shape
    assert jnp.allclose(out, ref, atol=2e-3, rtol=2e-3), "mismatch vs JAX reference"

    print("KERNEL_OK")
</pallas_src>

<mosaic_0001>
module attributes {stable_mosaic.version = 11 : i64} {
  func.func @decoder_kernel(%arg0: i32, %arg1: memref<2x64xf32, #tpu.memory_space<vmem>>, %arg2: memref<64x128xbf16, #tpu.memory_space<vmem>>, %arg3: memref<1x128xf32, #tpu.memory_space<vmem>>, %arg4: memref<128x256xbf16, #tpu.memory_space<vmem>>, %arg5: memref<1x256xf32, #tpu.memory_space<vmem>>, %arg6: memref<256x256xbf16, #tpu.memory_space<vmem>>, %arg7: memref<1x256xf32, #tpu.memory_space<vmem>>, %arg8: memref<1x256x3072xbf16, #tpu.memory_space<vmem>>, %arg9: memref<1x1x3072xf32, #tpu.memory_space<vmem>>, %arg10: memref<2x3072xf32, #tpu.memory_space<vmem>>) attributes {dimension_semantics = [#tpu.dimension_semantics<parallel>], iteration_bounds = array<i64: 2>, scalar_prefetch = 0 : i64, scratch_operands = 0 : i64, tpu.core_type = #tpu.core_type<tc>, window_params = [{pipeline_mode = #tpu.pipeline_mode<synchronous>, transform_indices = @transform_0, window_bounds = array<i64: 2, 64>}, {pipeline_mode = #tpu.pipeline_mode<synchronous>, transform_indices = @transform_1, window_bounds = array<i64: 64, 128>}, {pipeline_mode = #tpu.pipeline_mode<synchronous>, transform_indices = @transform_2, window_bounds = array<i64: 1, 128>}, {pipeline_mode = #tpu.pipeline_mode<synchronous>, transform_indices = @transform_3, window_bounds = array<i64: 128, 256>}, {pipeline_mode = #tpu.pipeline_mode<synchronous>, transform_indices = @transform_4, window_bounds = array<i64: 1, 256>}, {pipeline_mode = #tpu.pipeline_mode<synchronous>, transform_indices = @transform_5, window_bounds = array<i64: 256, 256>}, {pipeline_mode = #tpu.pipeline_mode<synchronous>, transform_indices = @transform_6, window_bounds = array<i64: 1, 256>}, {transform_indices = @transform_7, window_bounds = array<i64: 1, 256, 3072>}, {transform_indices = @transform_8, window_bounds = array<i64: 1, 1, 3072>}, {transform_indices = @transform_9, window_bounds = array<i64: 2, 3072>}]} {
    %c0 = arith.constant 0 : index
    %c0_0 = arith.constant 0 : index
    %0 = vector.load %arg1[%c0, %c0_0] : memref<2x64xf32, #tpu.memory_space<vmem>>, vector<2x64xf32>
    %1 = arith.truncf %0 : vector<2x64xf32> to vector<2x64xbf16>
    %c0_1 = arith.constant 0 : index
    %c0_2 = arith.constant 0 : index
    %2 = vector.load %arg2[%c0_1, %c0_2] : memref<64x128xbf16, #tpu.memory_space<vmem>>, vector<64x128xbf16>
    %cst = arith.constant dense<0.000000e+00> : vector<2x128xf32>
    %3 = tpu.matmul %1, %2, %cst {dimension_numbers = #tpu.dot_dimension_numbers<[1], [0], [0], [1], [0, 0, 1, 1], [], []>} : vector<2x64xbf16>, vector<64x128xbf16>, vector<2x128xf32> -> vector<2x128xf32>
    %c0_3 = arith.constant 0 : index
    %c0_4 = arith.constant 0 : index
    %4 = vector.load %arg3[%c0_3, %c0_4] : memref<1x128xf32, #tpu.memory_space<vmem>>, vector<1x128xf32>
    %5 = vector.broadcast %4 : vector<1x128xf32> to vector<2x128xf32>
    %6 = arith.addf %3, %5 : vector<2x128xf32>
    %7 = arith.truncf %6 : vector<2x128xf32> to vector<2x128xbf16>
    %c0_5 = arith.constant 0 : index
    %c0_6 = arith.constant 0 : index
    %8 = vector.load %arg4[%c0_5, %c0_6] : memref<128x256xbf16, #tpu.memory_space<vmem>>, vector<128x256xbf16>
    %cst_7 = arith.constant dense<0.000000e+00> : vector<2x256xf32>
    %9 = tpu.matmul %7, %8, %cst_7 {dimension_numbers = #tpu.dot_dimension_numbers<[1], [0], [0], [1], [0, 0, 1, 1], [], []>} : vector<2x128xbf16>, vector<128x256xbf16>, vector<2x256xf32> -> vector<2x256xf32>
    %c0_8 = arith.constant 0 : index
    %c0_9 = arith.constant 0 : index
    %10 = vector.load %arg5[%c0_8, %c0_9] : memref<1x256xf32, #tpu.memory_space<vmem>>, vector<1x256xf32>
    %11 = vector.broadcast %10 : vector<1x256xf32> to vector<2x256xf32>
    %12 = arith.addf %9, %11 : vector<2x256xf32>
    %cst_10 = arith.constant 0.000000e+00 : f32
    %13 = vector.broadcast %cst_10 : f32 to vector<2x256xf32>
    %14 = arith.maximumf %12, %13 : vector<2x256xf32>
    %15 = arith.truncf %14 : vector<2x256xf32> to vector<2x256xbf16>
    %c0_11 = arith.constant 0 : index
    %c0_12 = arith.constant 0 : index
    %16 = vector.load %arg6[%c0_11, %c0_12] : memref<256x256xbf16, #tpu.memory_space<vmem>>, vector<256x256xbf16>
    %cst_13 = arith.constant dense<0.000000e+00> : vector<2x256xf32>
    %17 = tpu.matmul %15, %16, %cst_13 {dimension_numbers = #tpu.dot_dimension_numbers<[1], [0], [0], [1], [0, 0, 1, 1], [], []>} : vector<2x256xbf16>, vector<256x256xbf16>, vector<2x256xf32> -> vector<2x256xf32>
    %c0_14 = arith.constant 0 : index
    %c0_15 = arith.constant 0 : index
    %18 = vector.load %arg7[%c0_14, %c0_15] : memref<1x256xf32, #tpu.memory_space<vmem>>, vector<1x256xf32>
    %19 = vector.broadcast %18 : vector<1x256xf32> to vector<2x256xf32>
    %20 = arith.addf %17, %19 : vector<2x256xf32>
    %cst_16 = arith.constant 0.000000e+00 : f32
    %21 = vector.broadcast %cst_16 : f32 to vector<2x256xf32>
    %22 = arith.maximumf %20, %21 : vector<2x256xf32>
    %23 = arith.truncf %22 : vector<2x256xf32> to vector<2x256xbf16>
    %c0_17 = arith.constant 0 : index
    %c0_18 = arith.constant 0 : index
    %c0_19 = arith.constant 0 : index
    %24 = vector.load %arg8[%c0_17, %c0_18, %c0_19] : memref<1x256x3072xbf16, #tpu.memory_space<vmem>>, vector<1x256x3072xbf16>
    %25 = vector.shape_cast %24 : vector<1x256x3072xbf16> to vector<256x3072xbf16>
    %cst_20 = arith.constant dense<0.000000e+00> : vector<2x3072xf32>
    %26 = tpu.matmul %23, %25, %cst_20 {dimension_numbers = #tpu.dot_dimension_numbers<[1], [0], [0], [1], [0, 0, 1, 1], [], []>} : vector<2x256xbf16>, vector<256x3072xbf16>, vector<2x3072xf32> -> vector<2x3072xf32>
    %c0_21 = arith.constant 0 : index
    %c0_22 = arith.constant 0 : index
    %c0_23 = arith.constant 0 : index
    %27 = vector.load %arg9[%c0_21, %c0_22, %c0_23] : memref<1x1x3072xf32, #tpu.memory_space<vmem>>, vector<1x1x3072xf32>
    %28 = vector.shape_cast %27 : vector<1x1x3072xf32> to vector<1x3072xf32>
    %29 = vector.broadcast %28 : vector<1x3072xf32> to vector<2x3072xf32>
    %30 = arith.addf %26, %29 : vector<2x3072xf32>
    %c0_24 = arith.constant 0 : index
    %c0_25 = arith.constant 0 : index
    %31 = vector.load %arg10[%c0_24, %c0_25] : memref<2x3072xf32, #tpu.memory_space<vmem>>, vector<2x3072xf32>
    tpu.vector_store %arg10[%c0_24, %c0_25], %30 {strides = array<i32>} : memref<2x3072xf32, #tpu.memory_space<vmem>>, vector<2x3072xf32>,
    return
  }
  func.func @transform_0(%arg0: i32) -> (i32, i32) {
    %c0_i32 = arith.constant 0 : i32
    %c0_i32_0 = arith.constant 0 : i32
    %c0_i32_1 = arith.constant 0 : i32
    return %c0_i32, %c0_i32_0 : i32, i32
  }
  func.func @transform_1(%arg0: i32) -> (i32, i32) {
    %c0_i32 = arith.constant 0 : i32
    %c0_i32_0 = arith.constant 0 : i32
    %c0_i32_1 = arith.constant 0 : i32
    return %c0_i32, %c0_i32_0 : i32, i32
  }
  func.func @transform_2(%arg0: i32) -> (i32, i32) {
    %c0_i32 = arith.constant 0 : i32
    %c0_i32_0 = arith.constant 0 : i32
    %c0_i32_1 = arith.constant 0 : i32
    return %c0_i32, %c0_i32_0 : i32, i32
  }
  func.func @transform_3(%arg0: i32) -> (i32, i32) {
    %c0_i32 = arith.constant 0 : i32
    %c0_i32_0 = arith.constant 0 : i32
    %c0_i32_1 = arith.constant 0 : i32
    return %c0_i32, %c0_i32_0 : i32, i32
  }
  func.func @transform_4(%arg0: i32) -> (i32, i32) {
    %c0_i32 = arith.constant 0 : i32
    %c0_i32_0 = arith.constant 0 : i32
    %c0_i32_1 = arith.constant 0 : i32
    return %c0_i32, %c0_i32_0 : i32, i32
  }
  func.func @transform_5(%arg0: i32) -> (i32, i32) {
    %c0_i32 = arith.constant 0 : i32
    %c0_i32_0 = arith.constant 0 : i32
    %c0_i32_1 = arith.constant 0 : i32
    return %c0_i32, %c0_i32_0 : i32, i32
  }
  func.func @transform_6(%arg0: i32) -> (i32, i32) {
    %c0_i32 = arith.constant 0 : i32
    %c0_i32_0 = arith.constant 0 : i32
    %c0_i32_1 = arith.constant 0 : i32
    return %c0_i32, %c0_i32_0 : i32, i32
  }
  func.func @transform_7(%arg0: i32) -> (i32, i32, i32) {
    %c0_i32 = arith.constant 0 : i32
    %c0_i32_0 = arith.constant 0 : i32
    %c0_i32_1 = arith.constant 0 : i32
    return %arg0, %c0_i32, %c0_i32_0 : i32, i32, i32
  }
  func.func @transform_8(%arg0: i32) -> (i32, i32, i32) {
    %c0_i32 = arith.constant 0 : i32
    %c0_i32_0 = arith.constant 0 : i32
    %c0_i32_1 = arith.constant 0 : i32
    return %arg0, %c0_i32, %c0_i32_0 : i32, i32, i32
  }
  func.func @transform_9(%arg0: i32) -> (i32, i32) {
    %c0_i32 = arith.constant 0 : i32
    %c0_i32_0 = arith.constant 0 : i32
    return %c0_i32, %arg0 : i32, i32
  }
}

</mosaic_0001>

<llo_original>
// kernel: decoder_fc_forward.1
$region0: #{decoder_fc_forward.1}
  #allocation0 [shape = 'u32[]', space=smem, size = 0x4, offset = 0x4, fixed_abs, tag = 'smem constant byte address 0x4 - core index']
  #allocation1 [shape = 'u32[144,128]{1,0:T(1,128)}', space=vmem, size = 0x12000, scoped, tag = 'internal scratch']
  %s0 = inlined_call_operand.hbm [shape: f32[2,64], index: 0, kind: input, shape index: {}]
  %s1 = inlined_call_operand.hbm [shape: bf16[64,128], index: 1, kind: input, shape index: {}]
  %s2 = inlined_call_operand.hbm [shape: f32[1,128], index: 2, kind: input, shape index: {}]
  %s3 = inlined_call_operand.hbm [shape: bf16[128,256], index: 3, kind: input, shape index: {}]
  %s4 = inlined_call_operand.hbm [shape: f32[1,256], index: 4, kind: input, shape index: {}]
  %s5 = inlined_call_operand.hbm [shape: bf16[256,256], index: 5, kind: input, shape index: {}]
  %s6 = inlined_call_operand.hbm [shape: f32[1,256], index: 6, kind: input, shape index: {}]
  %s7 = inlined_call_operand.hbm [shape: bf16[2,256,3072], index: 7, kind: input, shape index: {}]
  %s8 = inlined_call_operand.hbm [shape: f32[2,1,3072], index: 8, kind: input, shape index: {}]
  %s9 = inlined_call_operand.hbm [shape: f32[2,6144], index: 9, kind: output, shape index: {}]
  %s10 = sld [smem:[#allocation0]]
  $region105: #{decoder_fc_forward.1} parent=0
    _
  %s12 = ssub.s32 1, %s10
  %s13 = scalar_select 0, %s12, %s10
  $region1: #{decoder_fc_forward.1} parent=0
    #allocation2 [shape = 'u8[1024]{0}', space=vmem, size = 0x400, scoped, tag = 'input window, operand 0, single buffered']
    #allocation3 [shape = 's32[2]{0}', space=sflag, size = 0x8, scoped, tag = 'scoped memory for decoder_fc_forward.1']
    #allocation4 [shape = 's32[2]{0}', space=sflag, size = 0x8, scoped, tag = 'scoped memory for decoder_fc_forward.1']
    #allocation5 [shape = 'u8[16384]{0}', space=vmem, size = 0x4000, scoped, tag = 'input window, operand 1, single buffered']
    #allocation6 [shape = 's32[1]{0}', space=sflag, size = 0x4, scoped, tag = 'scoped memory for decoder_fc_forward.1']
    #allocation7 [shape = 'u8[512]{0}', space=vmem, size = 0x400, scoped, tag = 'input window, operand 2, single buffered']
    #allocation8 [shape = 'u8[65536]{0}', space=vmem, size = 0x10000, scoped, tag = 'input window, operand 3, single buffered']
    #allocation9 [shape = 's32[1]{0}', space=sflag, size = 0x4, scoped, tag = 'scoped memory for decoder_fc_forward.1']
    #allocation10 [shape = 'u8[1024]{0}', space=vmem, size = 0x400, scoped, tag = 'input window, operand 4, single buffered']
    #allocation11 [shape = 'u8[131072]{0}', space=vmem, size = 0x20000, scoped, tag = 'input window, operand 5, single buffered']
    #allocation12 [shape = 's32[1]{0}', space=sflag, size = 0x4, scoped, tag = 'scoped memory for decoder_fc_forward.1']
    #allocation13 [shape = 'u8[1024]{0}', space=vmem, size = 0x400, scoped, tag = 'input window, operand 6, single buffered']
    #allocation14 [shape = 'u8[3145728]{0}', space=vmem, size = 0x300000, scoped, tag = 'input window, operand 7']
    #allocation15 [shape = 's32[2]{0}', space=sflag, size = 0x8, scoped, tag = 'scoped memory for decoder_fc_forward.1']
    #allocation16 [shape = 'u8[24576]{0}', space=vmem, size = 0x6000, scoped, tag = 'input window, operand 8']
    #allocation17 [shape = 'u8[49152]{0}', space=vmem, size = 0xc000, scoped, tag = 'output window, operand 0']
    %14 = vsyncpa [#allocation3], 0
    %15 = vsyncpa [#allocation6], 0
    %16 = vsyncpa [#allocation9], 0
    %17 = vsyncpa [#allocation12], 0
    %18 = vsyncpa [#allocation15], 0
    %s19 = scalar_lea.sflag [#allocation15], 1
    %20 = vsyncpa %s19, 0
    %21 = vsyncpa [#allocation4], 0
    %s22 = scalar_lea.sflag [#allocation4], 1
    %23 = vsyncpa %s22, 0
    loop: start=0, step=1, limit=4
    $region2: #{decoder_fc_forward.1} parent=1 // loop_pre_header
      _
    $region3: #{decoder_fc_forward.1} parent=1 // loop_header
      %s25 = sphi 0, %s29
      %p26 = scmp.ge.s32.totalorder %s25, 4
      %s33 = sphi 0, %s33
      %s35 = sphi 0, %s33
      %s36 = sphi 0, %s35
      %s50 = sphi 0, %s36
      %s54 = sphi 0, %s54
      %s56 = sphi 0, %s54
      %s57 = sphi 0, %s56
      %s71 = sphi 0, %s57
      %s75 = sphi 0, %s75
      %s77 = sphi 0, %s75
      %s78 = sphi 0, %s77
      %s92 = sphi 0, %s78
      %s96 = sphi 0, %s96
      %s98 = sphi 0, %s96
      %s99 = sphi 0, %s98
      %s113 = sphi 0, %s99
      %s117 = sphi 0, %s117
      %s119 = sphi 0, %s117
      %s120 = sphi 0, %s119
      %s134 = sphi 0, %s120
      %s138 = sphi 0, %s138
      %s140 = sphi 0, %s138
      %s141 = sphi 0, %s140
      %s155 = sphi 0, %s141
      %s159 = sphi 0, %s159
      %s161 = sphi 0, %s159
      %s162 = sphi 0, %s161
      %s176 = sphi 0, %s162
      %s182 = sphi 0, %s184
      %s185 = sphi 0, %s182
      %s186 = sphi 0, %s185
      %s202 = sphi 0, %s186
      %s208 = sphi 0, %s210
      %s211 = sphi 0, %s208
      %s212 = sphi 0, %s211
      %s228 = sphi 0, %s212
      %s234 = sphi 0, %s236
      %s237 = sphi 0, %s234
      %s238 = sphi 0, %s237
      %s254 = sphi 0, %s238
    $region4: #{decoder_fc_forward.1} parent=1 // loop_header_branch
      %28 = sbr.rel (%p26) target = $region8
    $region5: #{decoder_fc_forward.1} parent=1 // loop_body
      %s30 = ssub.s32 %s25, 1
      %s31 = ssub.s32 %s25, 2
      %s32 = sadd.s32 %s25, 1
      %s34 = sadd.s32 %s33, 1
      %p37 = scmp.eq.s32.totalorder %s25, 1
      %p38 = scmp.ne.s32.totalorder %s33, %s35
      %p39 = scmp.eq.s32.totalorder %s25, 0
      %p40 = por %p38, %p39
      %p41 = scmp.ne.s32.totalorder %s33, %s35
      %p42 = scmp.eq.s32.totalorder %s30, 1
      %p43 = por %p41, %p42
      %p44 = scmp.ne.s32.totalorder %s35, %s36
      %p45 = scmp.eq.s32.totalorder %s30, 0
      %p46 = por %p44, %p45
      %p47 = scmp.ne.s32.totalorder %s35, %s36
      %p48 = scmp.eq.s32.totalorder %s31, 1
      %p49 = por %p47, %p48
      %p51 = scmp.ne.s32.totalorder %s36, %s50
      %p52 = scmp.eq.s32.totalorder %s31, 0
      %p53 = por %p51, %p52
      %s55 = sadd.s32 %s54, 1
      %p58 = scmp.eq.s32.totalorder %s25, 1
      %p59 = scmp.ne.s32.totalorder %s54, %s56
      %p60 = scmp.eq.s32.totalorder %s25, 0
      %p61 = por %p59, %p60
      %p62 = scmp.ne.s32.totalorder %s54, %s56
      %p63 = scmp.eq.s32.totalorder %s30, 1
      %p64 = por %p62, %p63
      %p65 = scmp.ne.s32.totalorder %s56, %s57
      %p66 = scmp.eq.s32.totalorder %s30, 0
      %p67 = por %p65, %p66
      %p68 = scmp.ne.s32.totalorder %s56, %s57
      %p69 = scmp.eq.s32.totalorder %s31, 1
      %p70 = por %p68, %p69
      %p72 = scmp.ne.s32.totalorder %s57, %s71
      %p73 = scmp.eq.s32.totalorder %s31, 0
      %p74 = por %p72, %p73
      %s76 = sadd.s32 %s75, 1
      %p79 = scmp.eq.s32.totalorder %s25, 1
      %p80 = scmp.ne.s32.totalorder %s75, %s77
      %p81 = scmp.eq.s32.totalorder %s25, 0
      %p82 = por %p80, %p81
      %p83 = scmp.ne.s32.totalorder %s75, %s77
      %p84 = scmp.eq.s32.totalorder %s30, 1
      %p85 = por %p83, %p84
      %p86 = scmp.ne.s32.totalorder %s77, %s78
      %p87 = scmp.eq.s32.totalorder %s30, 0
      %p88 = por %p86, %p87
      %p89 = scmp.ne.s32.totalorder %s77, %s78
      %p90 = scmp.eq.s32.totalorder %s31, 1
      %p91 = por %p89, %p90
      %p93 = scmp.ne.s32.totalorder %s78, %s92
      %p94 = scmp.eq.s32.totalorder %s31, 0
      %p95 = por %p93, %p94
      %s97 = sadd.s32 %s96, 1
      %p100 = scmp.eq.s32.totalorder %s25, 1
      %p101 = scmp.ne.s32.totalorder %s96, %s98
      %p102 = scmp.eq.s32.totalorder %s25, 0
      %p103 = por %p101, %p102
      %p104 = scmp.ne.s32.totalorder %s96, %s98
      %p105 = scmp.eq.s32.totalorder %s30, 1
      %p106 = por %p104, %p105
      %p107 = scmp.ne.s32.totalorder %s98, %s99
      %p108 = scmp.eq.s32.totalorder %s30, 0
      %p109 = por %p107, %p108
      %p110 = scmp.ne.s32.totalorder %s98, %s99
      %p111 = scmp.eq.s32.totalorder %s31, 1
      %p112 = por %p110, %p111
      %p114 = scmp.ne.s32.totalorder %s99, %s113
      %p115 = scmp.eq.s32.totalorder %s31, 0
      %p116 = por %p114, %p115
      %s118 = sadd.s32 %s117, 1
      %p121 = scmp.eq.s32.totalorder %s25, 1
      %p122 = scmp.ne.s32.totalorder %s117, %s119
      %p123 = scmp.eq.s32.totalorder %s25, 0
      %p124 = por %p122, %p123
      %p125 = scmp.ne.s32.totalorder %s117, %s119
      %p126 = scmp.eq.s32.totalorder %s30, 1
      %p127 = por %p125, %p126
      %p128 = scmp.ne.s32.totalorder %s119, %s120
      %p129 = scmp.eq.s32.totalorder %s30, 0
      %p130 = por %p128, %p129
      %p131 = scmp.ne.s32.totalorder %s119, %s120
      %p132 = scmp.eq.s32.totalorder %s31, 1
      %p133 = por %p131, %p132
      %p135 = scmp.ne.s32.totalorder %s120, %s134
      %p136 = scmp.eq.s32.totalorder %s31, 0
      %p137 = por %p135, %p136
      %s139 = sadd.s32 %s138, 1
      %p142 = scmp.eq.s32.totalorder %s25, 1
      %p143 = scmp.ne.s32.totalorder %s138, %s140
      %p144 = scmp.eq.s32.totalorder %s25, 0
      %p145 = por %p143, %p144
      %p146 = scmp.ne.s32.totalorder %s138, %s140
      %p147 = scmp.eq.s32.totalorder %s30, 1
      %p148 = por %p146, %p147
      %p149 = scmp.ne.s32.totalorder %s140, %s141
      %p150 = scmp.eq.s32.totalorder %s30, 0
      %p151 = por %p149, %p150
      %p152 = scmp.ne.s32.totalorder %s140, %s141
      %p153 = scmp.eq.s32.totalorder %s31, 1
      %p154 = por %p152, %p153
      %p156 = scmp.ne.s32.totalorder %s141, %s155
      %p157 = scmp.eq.s32.totalorder %s31, 0
      %p158 = por %p156, %p157
      %s160 = sadd.s32 %s159, 1
      %p163 = scmp.eq.s32.totalorder %s25, 1
      %p164 = scmp.ne.s32.totalorder %s159, %s161
      %p165 = scmp.eq.s32.totalorder %s25, 0
      %p166 = por %p164, %p165
      %p167 = scmp.ne.s32.totalorder %s159, %s161
      %p168 = scmp.eq.s32.totalorder %s30, 1
      %p169 = por %p167, %p168
      %p170 = scmp.ne.s32.totalorder %s161, %s162
      %p171 = scmp.eq.s32.totalorder %s30, 0
      %p172 = por %p170, %p171
      %p173 = scmp.ne.s32.totalorder %s161, %s162
      %p174 = scmp.eq.s32.totalorder %s31, 1
      %p175 = por %p173, %p174
      %p177 = scmp.ne.s32.totalorder %s162, %s176
      %p178 = scmp.eq.s32.totalorder %s31, 0
      %p179 = por %p177, %p178
      %s180 = ssub.s32 %s25, %s32
      %p181 = scmp.eq.s32.totalorder %s180, 0
      %s183 = sadd.s32 %s182, 1
      %s184 = scalar_select %p181, %s182, %s183
      %p187 = pneg %p181
      %p188 = scmp.eq.s32.totalorder %s25, 1
      %p189 = por %p187, %p188
      %p190 = scmp.ne.s32.totalorder %s182, %s185
      %p191 = scmp.eq.s32.totalorder %s25, 0
      %p192 = por %p190, %p191
      %p193 = scmp.ne.s32.totalorder %s182, %s185
      %p194 = scmp.eq.s32.totalorder %s30, 1
      %p195 = por %p193, %p194
      %p196 = scmp.ne.s32.totalorder %s185, %s186
      %p197 = scmp.eq.s32.totalorder %s30, 0
      %p198 = por %p196, %p197
      %p199 = scmp.ne.s32.totalorder %s185, %s186
      %p200 = scmp.eq.s32.totalorder %s31, 1
      %p201 = por %p199, %p200
      %p203 = scmp.ne.s32.totalorder %s186, %s202
      %p204 = scmp.eq.s32.totalorder %s31, 0
      %p205 = por %p203, %p204
      %s206 = ssub.s32 %s25, %s32
      %p207 = scmp.eq.s32.totalorder %s206, 0
      %s209 = sadd.s32 %s208, 1
      %s210 = scalar_select %p207, %s208, %s209
      %p213 = pneg %p207
      %p214 = scmp.eq.s32.totalorder %s25, 1
      %p215 = por %p213, %p214
      %p216 = scmp.ne.s32.totalorder %s208, %s211
      %p217 = scmp.eq.s32.totalorder %s25, 0
      %p218 = por %p216, %p217
      %p219 = scmp.ne.s32.totalorder %s208, %s211
      %p220 = scmp.eq.s32.totalorder %s30, 1
      %p221 = por %p219, %p220
      %p222 = scmp.ne.s32.totalorder %s211, %s212
      %p223 = scmp.eq.s32.totalorder %s30, 0
      %p224 = por %p222, %p223
      %p225 = scmp.ne.s32.totalorder %s211, %s212
      %p226 = scmp.eq.s32.totalorder %s31, 1
      %p227 = por %p225, %p226
      %p229 = scmp.ne.s32.totalorder %s212, %s228
      %p230 = scmp.eq.s32.totalorder %s31, 0
      %p231 = por %p229, %p230
      %s232 = ssub.s32 %s25, %s32
      %p233 = scmp.eq.s32.totalorder %s232, 0
      %s235 = sadd.s32 %s234, 1
      %s236 = scalar_select %p233, %s234, %s235
      %p239 = pneg %p233
      %p240 = scmp.eq.s32.totalorder %s25, 1
      %p241 = por %p239, %p240
      %p242 = scmp.ne.s32.totalorder %s234, %s237
      %p243 = scmp.eq.s32.totalorder %s25, 0
      %p244 = por %p242, %p243
      %p245 = scmp.ne.s32.totalorder %s234, %s237
      %p246 = scmp.eq.s32.totalorder %s30, 1
      %p247 = por %p245, %p246
      %p248 = scmp.ne.s32.totalorder %s237, %s238
      %p249 = scmp.eq.s32.totalorder %s30, 0
      %p250 = por %p248, %p249
      %p251 = scmp.ne.s32.totalorder %s237, %s238
      %p252 = scmp.eq.s32.totalorder %s31, 1
      %p253 = por %p251, %p252
      %p255 = scmp.ne.s32.totalorder %s238, %s254
      %p256 = scmp.eq.s32.totalorder %s31, 0
      %p257 = por %p255, %p256
      %p258 = scmp.le.s32.totalorder 1, %s25
      %p259 = scmp.lt.s32.totalorder %s25, 3
      %p260 = pnand %p258, %p259
      %p261 = pneg %p260
      // Predicated region
      $region9: #{decoder_fc_forward.1} parent=5 // pred_check
        _
      $region10: #{decoder_fc_forward.1} parent=5 // pred_check_branch
        %263 = sbr.rel (%p260) target = $region12
      $region11: #{decoder_fc_forward.1} parent=5 // pred_region
        %s264 = ssub.s32 %s25, 1
        // Predicated region
        $region13: #{decoder_fc_forward.1} parent=11 // pred_check
          %p265 = pneg %p46
        $region14: #{decoder_fc_forward.1} parent=11 // pred_check_branch
          %267 = sbr.rel (%p265) target = $region16
        $region15: #{decoder_fc_forward.1} parent=11 // pred_region
          %s269 = ssub.s32 32, 32
          %270 = vsyncadd [#allocation3], %s269
          %s272 = sshll.u32 [#allocation2], 4
          %s273 = int_to_ptr.vmem [resolvable:$true] %s272
          %275 = dma.hbm_to_vmem [thread:$0]  %s0, 32, %s273, [#allocation3]
        $region16: #{decoder_fc_forward.1} parent=11 // pred_fallthru
          _
        // Predicated region
        $region17: #{decoder_fc_forward.1} parent=11 // pred_check
          %p276 = pneg %p67
        $region18: #{decoder_fc_forward.1} parent=11 // pred_check_branch
          %278 = sbr.rel (%p276) target = $region20
        $region19: #{decoder_fc_forward.1} parent=11 // pred_region
          %s280 = ssub.s32 512, 512
          %281 = vsyncadd [#allocation6], %s280
          %s282 = sshll.u32 [#allocation5], 4
          %s283 = int_to_ptr.vmem [resolvable:$true] %s282
          %288 = dma.hbm_to_vmem [thread:$0]  %s1, 512, %s283, [#allocation6], 64, 64, 4
        $region20: #{decoder_fc_forward.1} parent=11 // pred_fallthru
          _
        // Predicated region
        $region21: #{decoder_fc_forward.1} parent=11 // pred_check
          %p289 = pneg %p88
        $region22: #{decoder_fc_forward.1} parent=11 // pred_check_branch
          %291 = sbr.rel (%p289) target = $region24
        $region23: #{decoder_fc_forward.1} parent=11 // pred_region
          %s293 = ssub.s32 16, 16
          %294 = vsyncadd [#allocation6], %s293
          %s296 = sshll.u32 [#allocation7], 4
          %s297 = int_to_ptr.vmem [resolvable:$true] %s296
          %299 = dma.hbm_to_vmem [thread:$0]  %s2, 16, %s297, [#allocation6]
        $region24: #{decoder_fc_forward.1} parent=11 // pred_fallthru
          _
        // Predicated region
        $region25: #{decoder_fc_forward.1} parent=11 // pred_check
          %p300 = pneg %p109
        $region26: #{decoder_fc_forward.1} parent=11 // pred_check_branch
          %302 = sbr.rel (%p300) target = $region28
        $region27: #{decoder_fc_forward.1} parent=11 // pred_region
          %s304 = ssub.s32 2048, 2048
          %305 = vsyncadd [#allocation9], %s304
          %s306 = sshll.u32 [#allocation8], 4
          %s307 = int_to_ptr.vmem [resolvable:$true] %s306
          %312 = dma.hbm_to_vmem [thread:$0]  %s3, 2048, %s307, [#allocation9], 128, 128, 8
        $region28: #{decoder_fc_forward.1} parent=11 // pred_fallthru
          _
        // Predicated region
        $region29: #{decoder_fc_forward.1} parent=11 // pred_check
          %p313 = pneg %p130
        $region30: #{decoder_fc_forward.1} parent=11 // pred_check_branch
          %315 = sbr.rel (%p313) target = $region32
        $region31: #{decoder_fc_forward.1} parent=11 // pred_region
          %s317 = ssub.s32 32, 32
          %318 = vsyncadd [#allocation9], %s317
          %s320 = sshll.u32 [#allocation10], 4
          %s321 = int_to_ptr.vmem [resolvable:$true] %s320
          %323 = dma.hbm_to_vmem [thread:$0]  %s4, 32, %s321, [#allocation9]
        $region32: #{decoder_fc_forward.1} parent=11 // pred_fallthru
          _
        // Predicated region
        $region33: #{decoder_fc_forward.1} parent=11 // pred_check
          %p324 = pneg %p151
        $region34: #{decoder_fc_forward.1} parent=11 // pred_check_branch
          %326 = sbr.rel (%p324) target = $region36
        $region35: #{decoder_fc_forward.1} parent=11 // pred_region
          %s328 = ssub.s32 4096, 4096
          %329 = vsyncadd [#allocation12], %s328
          %s330 = sshll.u32 [#allocation11], 4
          %s331 = int_to_ptr.vmem [resolvable:$true] %s330
          %336 = dma.hbm_to_vmem [thread:$0]  %s5, 4096, %s331, [#allocation12], 128, 128, 8
        $region36: #{decoder_fc_forward.1} parent=11 // pred_fallthru
          _
        // Predicated region
        $region37: #{decoder_fc_forward.1} parent=11 // pred_check
          %p337 = pneg %p172
        $region38: #{decoder_fc_forward.1} parent=11 // pred_check_branch
          %339 = sbr.rel (%p337) target = $region40
        $region39: #{decoder_fc_forward.1} parent=11 // pred_region
          %s341 = ssub.s32 32, 32
          %342 = vsyncadd [#allocation12], %s341
          %s344 = sshll.u32 [#allocation13], 4
          %s345 = int_to_ptr.vmem [resolvable:$true] %s344
          %347 = dma.hbm_to_vmem [thread:$0]  %s6, 32, %s345, [#allocation12]
        $region40: #{decoder_fc_forward.1} parent=11 // pred_fallthru
          _
      $region12: #{decoder_fc_forward.1} parent=5 // pred_fallthru
        _
      %p348 = scmp.lt.s32.totalorder %s25, 2
      // Predicated region
      $region41: #{decoder_fc_forward.1} parent=5 // pred_check
        %p349 = pneg %p348
      $region42: #{decoder_fc_forward.1} parent=5 // pred_check_branch
        %351 = sbr.rel (%p349) target = $region44
      $region43: #{decoder_fc_forward.1} parent=5 // pred_region
        // Predicated region
        $region45: #{decoder_fc_forward.1} parent=43 // pred_check
          %p352 = pneg %p192
        $region46: #{decoder_fc_forward.1} parent=43 // pred_check_branch
          %354 = sbr.rel (%p352) target = $region48
        $region47: #{decoder_fc_forward.1} parent=43 // pred_region
          %s355 = sand.u32 %s25, 1
          %s356 = scalar_lea.sflag [#allocation15], %s355
          %s357 = sand.u32 %s182, 1
          %s358 = smul.addr %s357, 3072
          %s359 = scalar_lea.vmem [#allocation14], %s358
          %s361 = ssub.s32 49152, 49152
          %362 = vsyncadd %s356, %s361
          %s363 = smul.addr %s25, 768
          %s364 = smul.addr %s363, 64
          %s365 = scalar_lea.hbm %s7, %s364
          %s366 = sshll.u32 %s359, 4
          %s367 = int_to_ptr.vmem [resolvable:$true] %s366
          %372 = dma.hbm_to_vmem [thread:$0]  %s365, 49152, %s367, %s356, 1536, 1536, 96
        $region48: #{decoder_fc_forward.1} parent=43 // pred_fallthru
          _
        // Predicated region
        $region49: #{decoder_fc_forward.1} parent=43 // pred_check
          %p373 = pneg %p218
        $region50: #{decoder_fc_forward.1} parent=43 // pred_check_branch
          %375 = sbr.rel (%p373) target = $region52
        $region51: #{decoder_fc_forward.1} parent=43 // pred_region
          %s376 = sand.u32 %s25, 1
          %s377 = scalar_lea.sflag [#allocation15], %s376
          %s378 = sand.u32 %s208, 1
          %s379 = smul.addr %s378, 24
          %s380 = scalar_lea.vmem [#allocation16], %s379
          %s382 = ssub.s32 384, 384
          %383 = vsyncadd %s377, %s382
          %s384 = smul.addr %s25, 24
          %s385 = smul.addr %s384, 16
          %s386 = scalar_lea.hbm %s8, %s385
          %s388 = sshll.u32 %s380, 4
          %s389 = int_to_ptr.vmem [resolvable:$true] %s388
          %391 = dma.hbm_to_vmem [thread:$0]  %s386, 384, %s389, %s377
        $region52: #{decoder_fc_forward.1} parent=43 // pred_fallthru
          _
      $region44: #{decoder_fc_forward.1} parent=5 // pred_fallthru
        _
      %p392 = scmp.le.s32.totalorder 1, %s25
      %p393 = scmp.lt.s32.totalorder %s25, 3
      %p394 = pnand %p392, %p393
      %p395 = pneg %p394
      // Predicated region
      $region53: #{decoder_fc_forward.1} parent=5 // pred_check
        _
      $region54: #{decoder_fc_forward.1} parent=5 // pred_check_branch
        %397 = sbr.rel (%p394) target = $region56
      $region55: #{decoder_fc_forward.1} parent=5 // pred_region
        %s398 = ssub.s32 %s25, 1
        // Predicated region
        $region57: #{decoder_fc_forward.1} parent=55 // pred_check
          %p399 = pneg %p46
        $region58: #{decoder_fc_forward.1} parent=55 // pred_check_branch
          %401 = sbr.rel (%p399) target = $region60
        $region59: #{decoder_fc_forward.1} parent=55 // pred_region
          %402 = dma.done [#allocation3], 32
        $region60: #{decoder_fc_forward.1} parent=55 // pred_fallthru
          _
        // Predicated region
        $region61: #{decoder_fc_forward.1} parent=55 // pred_check
          %p403 = pneg %p67
        $region62: #{decoder_fc_forward.1} parent=55 // pred_check_branch
          %405 = sbr.rel (%p403) target = $region64
        $region63: #{decoder_fc_forward.1} parent=55 // pred_region
          %406 = dma.done [#allocation6], 512
        $region64: #{decoder_fc_forward.1} parent=55 // pred_fallthru
          _
        // Predicated region
        $region65: #{decoder_fc_forward.1} parent=55 // pred_check
          %p407 = pneg %p88
        $region66: #{decoder_fc_forward.1} parent=55 // pred_check_branch
          %409 = sbr.rel (%p407) target = $region68
        $region67: #{decoder_fc_forward.1} parent=55 // pred_region
          %410 = dma.done [#allocation6], 16
        $region68: #{decoder_fc_forward.1} parent=55 // pred_fallthru
          _
        // Predicated region
        $region69: #{decoder_fc_forward.1} parent=55 // pred_check
          %p411 = pneg %p109
        $region70: #{decoder_fc_forward.1} parent=55 // pred_check_branch
          %413 = sbr.rel (%p411) target = $region72
        $region71: #{decoder_fc_forward.1} parent=55 // pred_region
          %414 = dma.done [#allocation9], 2048
        $region72: #{decoder_fc_forward.1} parent=55 // pred_fallthru
          _
        // Predicated region
        $region73: #{decoder_fc_forward.1} parent=55 // pred_check
          %p415 = pneg %p130
        $region74: #{decoder_fc_forward.1} parent=55 // pred_check_branch
          %417 = sbr.rel (%p415) target = $region76
        $region75: #{decoder_fc_forward.1} parent=55 // pred_region
          %418 = dma.done [#allocation9], 32
        $region76: #{decoder_fc_forward.1} parent=55 // pred_fallthru
          _
        // Predicated region
        $region77: #{decoder_fc_forward.1} parent=55 // pred_check
          %p419 = pneg %p151
        $region78: #{decoder_fc_forward.1} parent=55 // pred_check_branch
          %421 = sbr.rel (%p419) target = $region80
        $region79: #{decoder_fc_forward.1} parent=55 // pred_region
          %422 = dma.done [#allocation12], 4096
        $region80: #{decoder_fc_forward.1} parent=55 // pred_fallthru
          _
        // Predicated region
        $region81: #{decoder_fc_forward.1} parent=55 // pred_check
          %p423 = pneg %p172
        $region82: #{decoder_fc_forward.1} parent=55 // pred_check_branch
          %425 = sbr.rel (%p423) target = $region84
        $region83: #{decoder_fc_forward.1} parent=55 // pred_region
          %426 = dma.done [#allocation12], 32
        $region84: #{decoder_fc_forward.1} parent=55 // pred_fallthru
          _
        %s427 = sand.u32 %s30, 1
        %s428 = scalar_lea.sflag [#allocation15], %s427
        %s429 = sand.u32 %s185, 1
        %s430 = smul.addr %s429, 3072
        %s431 = scalar_lea.vmem [#allocation14], %s430
        // Predicated region
        $region85: #{decoder_fc_forward.1} parent=55 // pred_check
          %p432 = pneg %p198
        $region86: #{decoder_fc_forward.1} parent=55 // pred_check_branch
          %434 = sbr.rel (%p432) target = $region88
        $region87: #{decoder_fc_forward.1} parent=55 // pred_region
          %435 = dma.done %s428, 49152
        $region88: #{decoder_fc_forward.1} parent=55 // pred_fallthru
          _
        %s436 = sand.u32 %s30, 1
        %s437 = scalar_lea.sflag [#allocation15], %s436
        %s438 = sand.u32 %s211, 1
        %s439 = smul.addr %s438, 24
        %s440 = scalar_lea.vmem [#allocation16], %s439
        // Predicated region
        $region89: #{decoder_fc_forward.1} parent=55 // pred_check
          %p441 = pneg %p224
        $region90: #{decoder_fc_forward.1} parent=55 // pred_check_branch
          %443 = sbr.rel (%p441) target = $region92
        $region91: #{decoder_fc_forward.1} parent=55 // pred_region
          %444 = dma.done %s437, 384
        $region92: #{decoder_fc_forward.1} parent=55 // pred_fallthru
          _
        %p445 = pneg %p46
        %p446 = pneg %p43
        %p447 = pneg %p67
        %p448 = pneg %p64
        %p449 = pneg %p88
        %p450 = pneg %p85
        %p451 = pneg %p109
        %p452 = pneg %p106
        %p453 = pneg %p130
        %p454 = pneg %p127
        %p455 = pneg %p151
        %p456 = pneg %p148
        %p457 = pneg %p172
        %p458 = pneg %p169
        %s459 = sand.u32 %s30, 1
        %s460 = scalar_lea.sflag [#allocation15], %s459
        %s461 = sand.u32 %s185, 1
        %s462 = smul.addr %s461, 3072
        %s463 = scalar_lea.vmem [#allocation14], %s462
        %p464 = pneg %p198
        %p465 = pneg %p195
        %s466 = sand.u32 %s30, 1
        %s467 = scalar_lea.sflag [#allocation15], %s466
        %s468 = sand.u32 %s211, 1
        %s469 = smul.addr %s468, 24
        %s470 = scalar_lea.vmem [#allocation16], %s469
        %p471 = pneg %p224
        %p472 = pneg %p221
        %p473 = pneg %p250
        %p474 = pneg %p247
        %s475 = sand.u32 %s237, 1
        %s476 = scalar_lea.sflag [#allocation4], %s475
        %s477 = sand.u32 %s237, 1
        %s478 = smul.addr %s477, 48
        %s479 = scalar_lea.vmem [#allocation17], %s478
        %s480 = smul.u32 24, %s30
        %v482 = vld [vmem:[#allocation2] sm:$0x3]
        %v483 = vpack.c.bf16 %v482, %v482
        %v484 = vld [vmem:[#allocation5] sm:$0xf]
        %v485 = vld [vmem:[#allocation5 + $0x4] sm:$0xf]
        %v486 = vld [vmem:[#allocation5 + $0x8] sm:$0xf]
        %v487 = vld [vmem:[#allocation5 + $0xc] sm:$0xf]
        %v488 = vld [vmem:[#allocation5 + $0x10] sm:$0xf]
        %v489 = vld [vmem:[#allocation5 + $0x14] sm:$0xf]
        %v490 = vld [vmem:[#allocation5 + $0x18] sm:$0xf]
        %v491 = vld [vmem:[#allocation5 + $0x1c] sm:$0xf]
        %v492 = vld [vmem:[#allocation7] sm:$0x1]
        %v494 = vlaneseq
        %v495 = vshrl.u32 %v494, 7
        %v496 = vsub.s32 0, %v495
        %v497 = vrot.slane %v492, %v496
        %v507 = vunpack.c.l.b16 %v484
        %v508 = vunpack.c.l.b16 %v485
        %v509 = vunpack.c.l.b16 %v486
        %v510 = vunpack.c.l.b16 %v487
        %v511 = vunpack.c.l.b16 %v488
        %v512 = vunpack.c.l.b16 %v489
        %v513 = vunpack.c.l.b16 %v490
        %v514 = vunpack.c.l.b16 %v491
        %v515 = vpack.c.b16 %v508, %v507
        %v516 = vpack.c.b16 %v510, %v509
        %v517 = vpack.c.b16 %v512, %v511
        %v518 = vpack.c.b16 %v514, %v513
        %vm523 = vcmask 523264
        %v525 = vsel %vm523, %v483, 0
        %527 = vmatprep.subr.bf16.mxu0 0
        %528 = vmatpush1.bf16.msra.mxu0 %v515
        %529 = vmatprep.subr.bf16.mxu0 0
        %530 = vmatpush1.bf16.msra.mxu0 %v516
        %531 = vmatprep.subr.bf16.mxu0 0
        %532 = vmatpush1.bf16.msra.mxu0 %v517
        %533 = vmatprep.subr.bf16.mxu0 0
        %534 = vmatpush1.bf16.msra.mxu0 %v518
        %535 = vmatprep.subr.bf16.mxu0 0
        %536 = vmatpush1.bf16.msra.mxu0 0
        %537 = vmatprep.subr.bf16.mxu0 0
        %538 = vmatpush1.bf16.msra.mxu0 0
        %539 = vmatprep.subr.bf16.mxu0 0
        %540 = vmatpush1.bf16.msra.mxu0 0
        %541 = vmatprep.subr.bf16.mxu0 0
        %542 = vmatpush1.bf16.msra.mxu0 0
        %543 = vmatprep.subr.bf16.mxu0 0
        %544 = vmatpush1.bf16.msra.mxu0 0
        %545 = vmatprep.subr.bf16.mxu0 0
        %546 = vmatpush1.bf16.msra.mxu0 0
        %547 = vmatprep.subr.bf16.mxu0 0
        %548 = vmatpush1.bf16.msra.mxu0 0
        %549 = vmatprep.subr.bf16.mxu0 0
        %550 = vmatpush1.bf16.msra.mxu0 0
        %551 = vmatprep.subr.bf16.mxu0 0
        %552 = vmatpush1.bf16.msra.mxu0 0
        %553 = vmatprep.subr.bf16.mxu0 0
        %554 = vmatpush1.bf16.msra.mxu0 0
        %555 = vmatprep.subr.bf16.mxu0 0
        %556 = vmatpush1.bf16.msra.mxu0 0
        %557 = vmatprep.subr.bf16.mxu0 0
        %558 = vmatpush1.bf16.msra.mxu0 0
        %559 = vmatprep.mubr.bf16.mxu0 0
        %560 = vmatmul.mubr.bf16.gmra.mrb[0].mxu0 %v525
        %v561 = vpop.f32.mrb[0].mxu0
        %v562 = vadd.f32 %v497, %v561
        %v563 = vpop.f32.mrb[0].mxu0
        %v564 = vpop.f32.mrb[0].mxu0
        %v565 = vpop.f32.mrb[0].mxu0
        %566 = vdwg.mxu0
        %v567 = vpack.c.bf16 %v562, %v562
        %v568 = vld [vmem:[#allocation8] sm:$0xff]
        %v569 = vld [vmem:[#allocation8 + $0x8] sm:$0xff]
        %v570 = vld [vmem:[#allocation8 + $0x10] sm:$0xff]
        %v571 = vld [vmem:[#allocation8 + $0x18] sm:$0xff]
        %v572 = vld [vmem:[#allocation8 + $0x20] sm:$0xff]
        %v573 = vld [vmem:[#allocation8 + $0x28] sm:$0xff]
        %v574 = vld [vmem:[#allocation8 + $0x30] sm:$0xff]
        %v575 = vld [vmem:[#allocation8 + $0x38] sm:$0xff]
        %v576 = vld [vmem:[#allocation8 + $0x40] sm:$0xff]
        %v577 = vld [vmem:[#allocation8 + $0x48] sm:$0xff]
        %v578 = vld [vmem:[#allocation8 + $0x50] sm:$0xff]
        %v579 = vld [vmem:[#allocation8 + $0x58] sm:$0xff]
        %v580 = vld [vmem:[#allocation8 + $0x60] sm:$0xff]
        %v581 = vld [vmem:[#allocation8 + $0x68] sm:$0xff]
        %v582 = vld [vmem:[#allocation8 + $0x70] sm:$0xff]
        %v583 = vld [vmem:[#allocation8 + $0x78] sm:$0xff]
        %v584 = vld [vmem:[#allocation10] sm:$0x3]
        %v586 = vlaneseq
        %v587 = vshrl.u32 %v586, 7
        %v588 = vsub.s32 0, %v587
        %v589 = vrot.slane %v584, %v588
        %v590 = vlaneseq
        %v591 = vshrl.u32 %v590, 7
        %v592 = vsub.s32 1, %v591
        %v593 = vrot.slane %v584, %v592
        %v612 = vunpack.c.l.b16 %v568
        %v613 = vunpack.c.h.b16 %v568
        %v614 = vunpack.c.l.b16 %v569
        %v615 = vunpack.c.h.b16 %v569
        %v616 = vunpack.c.l.b16 %v570
        %v617 = vunpack.c.h.b16 %v570
        %v618 = vunpack.c.l.b16 %v571
        %v619 = vunpack.c.h.b16 %v571
        %v620 = vunpack.c.l.b16 %v572
        %v621 = vunpack.c.h.b16 %v572
        %v622 = vunpack.c.l.b16 %v573
        %v623 = vunpack.c.h.b16 %v573
        %v624 = vunpack.c.l.b16 %v574
        %v625 = vunpack.c.h.b16 %v574
        %v626 = vunpack.c.l.b16 %v575
        %v627 = vunpack.c.h.b16 %v575
        %v628 = vunpack.c.l.b16 %v576
        %v629 = vunpack.c.h.b16 %v576
        %v630 = vunpack.c.l.b16 %v577
        %v631 = vunpack.c.h.b16 %v577
        %v632 = vunpack.c.l.b16 %v578
        %v633 = vunpack.c.h.b16 %v578
        %v634 = vunpack.c.l.b16 %v579
        %v635 = vunpack.c.h.b16 %v579
        %v636 = vunpack.c.l.b16 %v580
        %v637 = vunpack.c.h.b16 %v580
        %v638 = vunpack.c.l.b16 %v581
        %v639 = vunpack.c.h.b16 %v581
        %v640 = vunpack.c.l.b16 %v582
        %v641 = vunpack.c.h.b16 %v582
        %v642 = vunpack.c.l.b16 %v583
        %v643 = vunpack.c.h.b16 %v583
        %v644 = vpack.c.b16 %v614, %v612
        %v645 = vpack.c.b16 %v615, %v613
        %v646 = vpack.c.b16 %v618, %v616
        %v647 = vpack.c.b16 %v619, %v617
        %v648 = vpack.c.b16 %v622, %v620
        %v649 = vpack.c.b16 %v623, %v621
        %v650 = vpack.c.b16 %v626, %v624
        %v651 = vpack.c.b16 %v627, %v625
        %v652 = vpack.c.b16 %v630, %v628
        %v653 = vpack.c.b16 %v631, %v629
        %v654 = vpack.c.b16 %v634, %v632
        %v655 = vpack.c.b16 %v635, %v633
        %v656 = vpack.c.b16 %v638, %v636
        %v657 = vpack.c.b16 %v639, %v637
        %v658 = vpack.c.b16 %v642, %v640
        %v659 = vpack.c.b16 %v643, %v641
        %676 = vmatprep.subr.bf16.mxu0 %v645
        %677 = vmatpush1.bf16.msra.mxu0 %v644
        %678 = vmatprep.subr.bf16.mxu0 %v647
        %679 = vmatpush1.bf16.msra.mxu0 %v646
        %680 = vmatprep.subr.bf16.mxu0 %v649
        %681 = vmatpush1.bf16.msra.mxu0 %v648
        %682 = vmatprep.subr.bf16.mxu0 %v651
        %683 = vmatpush1.bf16.msra.mxu0 %v650
        %684 = vmatprep.subr.bf16.mxu0 %v653
        %685 = vmatpush1.bf16.msra.mxu0 %v652
        %686 = vmatprep.subr.bf16.mxu0 %v655
        %687 = vmatpush1.bf16.msra.mxu0 %v654
        %688 = vmatprep.subr.bf16.mxu0 %v657
        %689 = vmatpush1.bf16.msra.mxu0 %v656
        %690 = vmatprep.subr.bf16.mxu0 %v659
        %691 = vmatpush1.bf16.msra.mxu0 %v658
        %692 = vmatprep.subr.bf16.mxu0 0
        %693 = vmatpush1.bf16.msra.mxu0 0
        %694 = vmatprep.subr.bf16.mxu0 0
        %695 = vmatpush1.bf16.msra.mxu0 0
        %696 = vmatprep.subr.bf16.mxu0 0
        %697 = vmatpush1.bf16.msra.mxu0 0
        %698 = vmatprep.subr.bf16.mxu0 0
        %699 = vmatpush1.bf16.msra.mxu0 0
        %700 = vmatprep.subr.bf16.mxu0 0
        %701 = vmatpush1.bf16.msra.mxu0 0
        %702 = vmatprep.subr.bf16.mxu0 0
        %703 = vmatpush1.bf16.msra.mxu0 0
        %704 = vmatprep.subr.bf16.mxu0 0
        %705 = vmatpush1.bf16.msra.mxu0 0
        %706 = vmatprep.subr.bf16.mxu0 0
        %707 = vmatpush1.bf16.msra.mxu0 0
        %708 = vmatprep.mubr.bf16.mxu0 0
        %709 = vmatmul.mubr.bf16.gmra.mrb[0].mxu0 %v567
        %v710 = vpop.f32.mrb[0].mxu0
        %v711 = vadd.f32 %v589, %v710
        %v712 = vpop.f32.mrb[0].mxu0
        %v713 = vadd.f32 %v593, %v712
        %v714 = vpop.f32.mrb[0].mxu0
        %v715 = vpop.f32.mrb[0].mxu0
        %716 = vdwg.mxu0
        %v717 = vmax.f32 %v711, 0.0
        %v718 = vmax.f32 %v713, 0.0
        %v719 = vpack.c.bf16 %v717, %v717
        %v720 = vpack.c.bf16 %v718, %v718
        %v721 = vld [vmem:[#allocation11] sm:$0xff]
        %v722 = vld [vmem:[#allocation11 + $0x8] sm:$0xff]
        %v723 = vld [vmem:[#allocation11 + $0x10] sm:$0xff]
        %v724 = vld [vmem:[#allocation11 + $0x18] sm:$0xff]
        %v725 = vld [vmem:[#allocation11 + $0x20] sm:$0xff]
        %v726 = vld [vmem:[#allocation11 + $0x28] sm:$0xff]
        %v727 = vld [vmem:[#allocation11 + $0x30] sm:$0xff]
        %v728 = vld [vmem:[#allocation11 + $0x38] sm:$0xff]
        %v729 = vld [vmem:[#allocation11 + $0x40] sm:$0xff]
        %v730 = vld [vmem:[#allocation11 + $0x48] sm:$0xff]
        %v731 = vld [vmem:[#allocation11 + $0x50] sm:$0xff]
        %v732 = vld [vmem:[#allocation11 + $0x58] sm:$0xff]
        %v733 = vld [vmem:[#allocation11 + $0x60] sm:$0xff]
        %v734 = vld [vmem:[#allocation11 + $0x68] sm:$0xff]
        %v735 = vld [vmem:[#allocation11 + $0x70] sm:$0xff]
        %v736 = vld [vmem:[#allocation11 + $0x78] sm:$0xff]
        %v737 = vld [vmem:[#allocation11 + $0x80] sm:$0xff]
        %v738 = vld [vmem:[#allocation11 + $0x88] sm:$0xff]
        %v739 = vld [vmem:[#allocation11 + $0x90] sm:$0xff]
        %v740 = vld [vmem:[#allocation11 + $0x98] sm:$0xff]
        %v741 = vld [vmem:[#allocation11 + $0xa0] sm:$0xff]
        %v742 = vld [vmem:[#allocation11 + $0xa8] sm:$0xff]
        %v743 = vld [vmem:[#allocation11 + $0xb0] sm:$0xff]
        %v744 = vld [vmem:[#allocation11 + $0xb8] sm:$0xff]
        %v745 = vld [vmem:[#allocation11 + $0xc0] sm:$0xff]
        %v746 = vld [vmem:[#allocation11 + $0xc8] sm:$0xff]
        %v747 = vld [vmem:[#allocation11 + $0xd0] sm:$0xff]
        %v748 = vld [vmem:[#allocation11 + $0xd8] sm:$0xff]
        %v749 = vld [vmem:[#allocation11 + $0xe0] sm:$0xff]
        %v750 = vld [vmem:[#allocation11 + $0xe8] sm:$0xff]
        %v751 = vld [vmem:[#allocation11 + $0xf0] sm:$0xff]
        %v752 = vld [vmem:[#allocation11 + $0xf8] sm:$0xff]
        %v753 = vld [vmem:[#allocation13] sm:$0x3]
        %v755 = vlaneseq
        %v756 = vshrl.u32 %v755, 7
        %v757 = vsub.s32 0, %v756
        %v758 = vrot.slane %v753, %v757
        %v759 = vlaneseq
        %v760 = vshrl.u32 %v759, 7
        %v761 = vsub.s32 1, %v760
        %v762 = vrot.slane %v753, %v761
        %v797 = vunpack.c.l.b16 %v721
        %v798 = vunpack.c.h.b16 %v721
        %v799 = vunpack.c.l.b16 %v722
        %v800 = vunpack.c.h.b16 %v722
        %v801 = vunpack.c.l.b16 %v723
        %v802 = vunpack.c.h.b16 %v723
        %v803 = vunpack.c.l.b16 %v724
        %v804 = vunpack.c.h.b16 %v724
        %v805 = vunpack.c.l.b16 %v725
        %v806 = vunpack.c.h.b16 %v725
        %v807 = vunpack.c.l.b16 %v726
        %v808 = vunpack.c.h.b16 %v726
        %v809 = vunpack.c.l.b16 %v727
        %v810 = vunpack.c.h.b16 %v727
        %v811 = vunpack.c.l.b16 %v728
        %v812 = vunpack.c.h.b16 %v728
        %v813 = vunpack.c.l.b16 %v729
        %v814 = vunpack.c.h.b16 %v729
        %v815 = vunpack.c.l.b16 %v730
        %v816 = vunpack.c.h.b16 %v730
        %v817 = vunpack.c.l.b16 %v731
        %v818 = vunpack.c.h.b16 %v731
        %v819 = vunpack.c.l.b16 %v732
        %v820 = vunpack.c.h.b16 %v732
        %v821 = vunpack.c.l.b16 %v733
        %v822 = vunpack.c.h.b16 %v733
        %v823 = vunpack.c.l.b16 %v734
        %v824 = vunpack.c.h.b16 %v734
        %v825 = vunpack.c.l.b16 %v735
        %v826 = vunpack.c.h.b16 %v735
        %v827 = vunpack.c.l.b16 %v736
        %v828 = vunpack.c.h.b16 %v736
        %v829 = vunpack.c.l.b16 %v737
        %v830 = vunpack.c.h.b16 %v737
        %v831 = vunpack.c.l.b16 %v738
        %v832 = vunpack.c.h.b16 %v738
        %v833 = vunpack.c.l.b16 %v739
        %v834 = vunpack.c.h.b16 %v739
        %v835 = vunpack.c.l.b16 %v740
        %v836 = vunpack.c.h.b16 %v740
        %v837 = vunpack.c.l.b16 %v741
        %v838 = vunpack.c.h.b16 %v741
        %v839 = vunpack.c.l.b16 %v742
        %v840 = vunpack.c.h.b16 %v742
        %v841 = vunpack.c.l.b16 %v743
        %v842 = vunpack.c.h.b16 %v743
        %v843 = vunpack.c.l.b16 %v744
        %v844 = vunpack.c.h.b16 %v744
        %v845 = vunpack.c.l.b16 %v745
        %v846 = vunpack.c.h.b16 %v745
        %v847 = vunpack.c.l.b16 %v746
        %v848 = vunpack.c.h.b16 %v746
        %v849 = vunpack.c.l.b16 %v747
        %v850 = vunpack.c.h.b16 %v747
        %v851 = vunpack.c.l.b16 %v748
        %v852 = vunpack.c.h.b16 %v748
        %v853 = vunpack.c.l.b16 %v749
        %v854 = vunpack.c.h.b16 %v749
        %v855 = vunpack.c.l.b16 %v750
        %v856 = vunpack.c.h.b16 %v750
        %v857 = vunpack.c.l.b16 %v751
        %v858 = vunpack.c.h.b16 %v751
        %v859 = vunpack.c.l.b16 %v752
        %v860 = vunpack.c.h.b16 %v752
        %v861 = vpack.c.b16 %v799, %v797
        %v862 = vpack.c.b16 %v800, %v798
        %v863 = vpack.c.b16 %v803, %v801
        %v864 = vpack.c.b16 %v804, %v802
        %v865 = vpack.c.b16 %v807, %v805
        %v866 = vpack.c.b16 %v808, %v806
        %v867 = vpack.c.b16 %v811, %v809
        %v868 = vpack.c.b16 %v812, %v810
        %v869 = vpack.c.b16 %v815, %v813
        %v870 = vpack.c.b16 %v816, %v814
        %v871 = vpack.c.b16 %v819, %v817
        %v872 = vpack.c.b16 %v820, %v818
        %v873 = vpack.c.b16 %v823, %v821
        %v874 = vpack.c.b16 %v824, %v822
        %v875 = vpack.c.b16 %v827, %v825
        %v876 = vpack.c.b16 %v828, %v826
        %v877 = vpack.c.b16 %v831, %v829
        %v878 = vpack.c.b16 %v832, %v830
        %v879 = vpack.c.b16 %v835, %v833
        %v880 = vpack.c.b16 %v836, %v834
        %v881 = vpack.c.b16 %v839, %v837
        %v882 = vpack.c.b16 %v840, %v838
        %v883 = vpack.c.b16 %v843, %v841
        %v884 = vpack.c.b16 %v844, %v842
        %v885 = vpack.c.b16 %v847, %v845
        %v886 = vpack.c.b16 %v848, %v846
        %v887 = vpack.c.b16 %v851, %v849
        %v888 = vpack.c.b16 %v852, %v850
        %v889 = vpack.c.b16 %v855, %v853
        %v890 = vpack.c.b16 %v856, %v854
        %v891 = vpack.c.b16 %v859, %v857
        %v892 = vpack.c.b16 %v860, %v858
        %925 = vmatprep.subr.bf16.mxu0 %v862
        %926 = vmatpush1.bf16.msra.mxu0 %v861
        %927 = vmatprep.subr.bf16.mxu0 %v864
        %928 = vmatpush1.bf16.msra.mxu0 %v863
        %929 = vmatprep.subr.bf16.mxu0 %v866
        %930 = vmatpush1.bf16.msra.mxu0 %v865
        %931 = vmatprep.subr.bf16.mxu0 %v868
        %932 = vmatpush1.bf16.msra.mxu0 %v867
        %933 = vmatprep.subr.bf16.mxu0 %v870
        %934 = vmatpush1.bf16.msra.mxu0 %v869
        %935 = vmatprep.subr.bf16.mxu0 %v872
        %936 = vmatpush1.bf16.msra.mxu0 %v871
        %937 = vmatprep.subr.bf16.mxu0 %v874
        %938 = vmatpush1.bf16.msra.mxu0 %v873
        %939 = vmatprep.subr.bf16.mxu0 %v876
        %940 = vmatpush1.bf16.msra.mxu0 %v875
        %941 = vmatprep.subr.bf16.mxu0 %v878
        %942 = vmatpush1.bf16.msra.mxu0 %v877
        %943 = vmatprep.subr.bf16.mxu0 %v880
        %944 = vmatpush1.bf16.msra.mxu0 %v879
        %945 = vmatprep.subr.bf16.mxu0 %v882
        %946 = vmatpush1.bf16.msra.mxu0 %v881
        %947 = vmatprep.subr.bf16.mxu0 %v884
        %948 = vmatpush1.bf16.msra.mxu0 %v883
        %949 = vmatprep.subr.bf16.mxu0 %v886
        %950 = vmatpush1.bf16.msra.mxu0 %v885
        %951 = vmatprep.subr.bf16.mxu0 %v888
        %952 = vmatpush1.bf16.msra.mxu0 %v887
        %953 = vmatprep.subr.bf16.mxu0 %v890
        %954 = vmatpush1.bf16.msra.mxu0 %v889
        %955 = vmatprep.subr.bf16.mxu0 %v892
        %956 = vmatpush1.bf16.msra.mxu0 %v891
        %957 = vmatprep.mubr.bf16.mxu0 %v720
        %958 = vmatmul.mubr.bf16.gmra.mrb[0].mxu0 %v719
        %v959 = vpop.f32.mrb[0].mxu0
        %v960 = vadd.f32 %v758, %v959
        %v961 = vpop.f32.mrb[0].mxu0
        %v962 = vadd.f32 %v762, %v961
        %v963 = vpop.f32.mrb[0].mxu0
        %v964 = vpop.f32.mrb[0].mxu0
        %965 = vdwg.mxu0
        %v966 = vmax.f32 %v960, 0.0
        %v967 = vmax.f32 %v962, 0.0
        %v968 = vpack.c.bf16 %v966, %v966
        %v969 = vpack.c.bf16 %v967, %v967
        %v970 = vld [vmem:[%s431] sm:$0xff]
        %v971 = vld [vmem:[%s431 + $0x8] sm:$0xff]
        %v972 = vld [vmem:[%s431 + $0x10] sm:$0xff]
        %v973 = vld [vmem:[%s431 + $0x18] sm:$0xff]
        %v974 = vld [vmem:[%s431 + $0x20] sm:$0xff]
        %v975 = vld [vmem:[%s431 + $0x28] sm:$0xff]
        %v976 = vld [vmem:[%s431 + $0x30] sm:$0xff]
        %v977 = vld [vmem:[%s431 + $0x38] sm:$0xff]
        %v978 = vld [vmem:[%s431 + $0x40] sm:$0xff]
        %v979 = vld [vmem:[%s431 + $0x48] sm:$0xff]
        %v980 = vld [vmem:[%s431 + $0x50] sm:$0xff]
        %v981 = vld [vmem:[%s431 + $0x58] sm:$0xff]
        %v982 = vld [vmem:[%s431 + $0x60] sm:$0xff]
        %v983 = vld [vmem:[%s431 + $0x68] sm:$0xff]
        %v984 = vld [vmem:[%s431 + $0x70] sm:$0xff]
        %v985 = vld [vmem:[%s431 + $0x78] sm:$0xff]
        %v986 = vld [vmem:[%s431 + $0x80] sm:$0xff]
        %v987 = vld [vmem:[%s431 + $0x88] sm:$0xff]
        %v988 = vld [vmem:[%s431 + $0x90] sm:$0xff]
        %v989 = vld [vmem:[%s431 + $0x98] sm:$0xff]
        %v990 = vld [vmem:[%s431 + $0xa0] sm:$0xff]
        %v991 = vld [vmem:[%s431 + $0xa8] sm:$0xff]
        %v992 = vld [vmem:[%s431 + $0xb0] sm:$0xff]
        %v993 = vld [vmem:[%s431 + $0xb8] sm:$0xff]
        %v994 = vld [vmem:[%s431 + $0xc0] sm:$0xff]
        %v995 = vld [vmem:[%s431 + $0xc8] sm:$0xff]
        %v996 = vld [vmem:[%s431 + $0xd0] sm:$0xff]
        %v997 = vld [vmem:[%s431 + $0xd8] sm:$0xff]
        %v998 = vld [vmem:[%s431 + $0xe0] sm:$0xff]
        %v999 = vld [vmem:[%s431 + $0xe8] sm:$0xff]
        %v1000 = vld [vmem:[%s431 + $0xf0] sm:$0xff]
        %v1001 = vld [vmem:[%s431 + $0xf8] sm:$0xff]
        %v1002 = vld [vmem:[%s431 + $0x100] sm:$0xff]
        %v1003 = vld [vmem:[%s431 + $0x108] sm:$0xff]
        %v1004 = vld [vmem:[%s431 + $0x110] sm:$0xff]
        %v1005 = vld [vmem:[%s431 + $0x118] sm:$0xff]
        %v1006 = vld [vmem:[%s431 + $0x120] sm:$0xff]
        %v1007 = vld [vmem:[%s431 + $0x128] sm:$0xff]
        %v1008 = vld [vmem:[%s431 + $0x130] sm:$0xff]
        %v1009 = vld [vmem:[%s431 + $0x138] sm:$0xff]
        %v1010 = vld [vmem:[%s431 + $0x140] sm:$0xff]
        %v1011 = vld [vmem:[%s431 + $0x148] sm:$0xff]
        %v1012 = vld [vmem:[%s431 + $0x150] sm:$0xff]
        %v1013 = vld [vmem:[%s431 + $0x158] sm:$0xff]
        %v1014 = vld [vmem:[%s431 + $0x160] sm:$0xff]
        %v1015 = vld [vmem:[%s431 + $0x168] sm:$0xff]
        %v1016 = vld [vmem:[%s431 + $0x170] sm:$0xff]
        %v1017 = vld [vmem:[%s431 + $0x178] sm:$0xff]
        %v1018 = vld [vmem:[%s431 + $0x180] sm:$0xff]
        %v1019 = vld [vmem:[%s431 + $0x188] sm:$0xff]
        %v1020 = vld [vmem:[%s431 + $0x190] sm:$0xff]
        %v1021 = vld [vmem:[%s431 + $0x198] sm:$0xff]
        %v1022 = vld [vmem:[%s431 + $0x1a0] sm:$0xff]
        %v1023 = vld [vmem:[%s431 + $0x1a8] sm:$0xff]
        %v1024 = vld [vmem:[%s431 + $0x1b0] sm:$0xff]
        %v1025 = vld [vmem:[%s431 + $0x1b8] sm:$0xff]
        %v1026 = vld [vmem:[%s431 + $0x1c0] sm:$0xff]
        %v1027 = vld [vmem:[%s431 + $0x1c8] sm:$0xff]
        %v1028 = vld [vmem:[%s431 + $0x1d0] sm:$0xff]
        %v1029 = vld [vmem:[%s431 + $0x1d8] sm:$0xff]
        %v1030 = vld [vmem:[%s431 + $0x1e0] sm:$0xff]
        %v1031 = vld [vmem:[%s431 + $0x1e8] sm:$0xff]
        %v1032 = vld [vmem:[%s431 + $0x1f0] sm:$0xff]
        %v1033 = vld [vmem:[%s431 + $0x1f8] sm:$0xff]
        %v1034 = vld [vmem:[%s431 + $0x200] sm:$0xff]
        %v1035 = vld [vmem:[%s431 + $0x208] sm:$0xff]
        %v1036 = vld [vmem:[%s431 + $0x210] sm:$0xff]
        %v1037 = vld [vmem:[%s431 + $0x218] sm:$0xff]
        %v1038 = vld [vmem:[%s431 + $0x220] sm:$0xff]
        %v1039 = vld [vmem:[%s431 + $0x228] sm:$0xff]
        %v1040 = vld [vmem:[%s431 + $0x230] sm:$0xff]
        %v1041 = vld [vmem:[%s431 + $0x238] sm:$0xff]
        %v1042 = vld [vmem:[%s431 + $0x240] sm:$0xff]
        %v1043 = vld [vmem:[%s431 + $0x248] sm:$0xff]
        %v1044 = vld [vmem:[%s431 + $0x250] sm:$0xff]
        %v1045 = vld [vmem:[%s431 + $0x258] sm:$0xff]
        %v1046 = vld [vmem:[%s431 + $0x260] sm:$0xff]
        %v1047 = vld [vmem:[%s431 + $0x268] sm:$0xff]
        %v1048 = vld [vmem:[%s431 + $0x270] sm:$0xff]
        %v1049 = vld [vmem:[%s431 + $0x278] sm:$0xff]
        %v1050 = vld [vmem:[%s431 + $0x280] sm:$0xff]
        %v1051 = vld [vmem:[%s431 + $0x288] sm:$0xff]
        %v1052 = vld [vmem:[%s431 + $0x290] sm:$0xff]
        %v1053 = vld [vmem:[%s431 + $0x298] sm:$0xff]
        %v1054 = vld [vmem:[%s431 + $0x2a0] sm:$0xff]
        %v1055 = vld [vmem:[%s431 + $0x2a8] sm:$0xff]
        %v1056 = vld [vmem:[%s431 + $0x2b0] sm:$0xff]
        %v1057 = vld [vmem:[%s431 + $0x2b8] sm:$0xff]
        %v1058 = vld [vmem:[%s431 + $0x2c0] sm:$0xff]
        %v1059 = vld [vmem:[%s431 + $0x2c8] sm:$0xff]
        %v1060 = vld [vmem:[%s431 + $0x2d0] sm:$0xff]
        %v1061 = vld [vmem:[%s431 + $0x2d8] sm:$0xff]
        %v1062 = vld [vmem:[%s431 + $0x2e0] sm:$0xff]
        %v1063 = vld [vmem:[%s431 + $0x2e8] sm:$0xff]
        %v1064 = vld [vmem:[%s431 + $0x2f0] sm:$0xff]
        %v1065 = vld [vmem:[%s431 + $0x2f8] sm:$0xff]
        %v1066 = vld [vmem:[%s431 + $0x300] sm:$0xff]
        %v1067 = vld [vmem:[%s431 + $0x308] sm:$0xff]
        %v1068 = vld [vmem:[%s431 + $0x310] sm:$0xff]
        %v1069 = vld [vmem:[%s431 + $0x318] sm:$0xff]
        %v1070 = vld [vmem:[%s431 + $0x320] sm:$0xff]
        %v1071 = vld [vmem:[%s431 + $0x328] sm:$0xff]
        %v1072 = vld [vmem:[%s431 + $0x330] sm:$0xff]
        %v1073 = vld [vmem:[%s431 + $0x338] sm:$0xff]
        %v1074 = vld [vmem:[%s431 + $0x340] sm:$0xff]
        %v1075 = vld [vmem:[%s431 + $0x348] sm:$0xff]
        %v1076 = vld [vmem:[%s431 + $0x350] sm:$0xff]
        %v1077 = vld [vmem:[%s431 + $0x358] sm:$0xff]
        %v1078 = vld [vmem:[%s431 + $0x360] sm:$0xff]
        %v1079 = vld [vmem:[%s431 + $0x368] sm:$0xff]
        %v1080 = vld [vmem:[%s431 + $0x370] sm:$0xff]
        %v1081 = vld [vmem:[%s431 + $0x378] sm:$0xff]
        %v1082 = vld [vmem:[%s431 + $0x380] sm:$0xff]
        %v1083 = vld [vmem:[%s431 + $0x388] sm:$0xff]
        %v1084 = vld [vmem:[%s431 + $0x390] sm:$0xff]
        %v1085 = vld [vmem:[%s431 + $0x398] sm:$0xff]
        %v1086 = vld [vmem:[%s431 + $0x3a0] sm:$0xff]
        %v1087 = vld [vmem:[%s431 + $0x3a8] sm:$0xff]
        %v1088 = vld [vmem:[%s431 + $0x3b0] sm:$0xff]
        %v1089 = vld [vmem:[%s431 + $0x3b8] sm:$0xff]
        %v1090 = vld [vmem:[%s431 + $0x3c0] sm:$0xff]
        %v1091 = vld [vmem:[%s431 + $0x3c8] sm:$0xff]
        %v1092 = vld [vmem:[%s431 + $0x3d0] sm:$0xff]
        %v1093 = vld [vmem:[%s431 + $0x3d8] sm:$0xff]
        %v1094 = vld [vmem:[%s431 + $0x3e0] sm:$0xff]
        %v1095 = vld [vmem:[%s431 + $0x3e8] sm:$0xff]
        %v1096 = vld [vmem:[%s431 + $0x3f0] sm:$0xff]
        %v1097 = vld [vmem:[%s431 + $0x3f8] sm:$0xff]
        %v1098 = vld [vmem:[%s431 + $0x400] sm:$0xff]
        %v1099 = vld [vmem:[%s431 + $0x408] sm:$0xff]
        %v1100 = vld [vmem:[%s431 + $0x410] sm:$0xff]
        %v1101 = vld [vmem:[%s431 + $0x418] sm:$0xff]
        %v1102 = vld [vmem:[%s431 + $0x420] sm:$0xff]
        %v1103 = vld [vmem:[%s431 + $0x428] sm:$0xff]
        %v1104 = vld [vmem:[%s431 + $0x430] sm:$0xff]
        %v1105 = vld [vmem:[%s431 + $0x438] sm:$0xff]
        %v1106 = vld [vmem:[%s431 + $0x440] sm:$0xff]
        %v1107 = vld [vmem:[%s431 + $0x448] sm:$0xff]
        %v1108 = vld [vmem:[%s431 + $0x450] sm:$0xff]
        %v1109 = vld [vmem:[%s431 + $0x458] sm:$0xff]
        %v1110 = vld [vmem:[%s431 + $0x460] sm:$0xff]
        %v1111 = vld [vmem:[%s431 + $0x468] sm:$0xff]
        %v1112 = vld [vmem:[%s431 + $0x470] sm:$0xff]
        %v1113 = vld [vmem:[%s431 + $0x478] sm:$0xff]
        %v1114 = vld [vmem:[%s431 + $0x480] sm:$0xff]
        %v1115 = vld [vmem:[%s431 + $0x488] sm:$0xff]
        %v1116 = vld [vmem:[%s431 + $0x490] sm:$0xff]
        %v1117 = vld [vmem:[%s431 + $0x498] sm:$0xff]
        %v1118 = vld [vmem:[%s431 + $0x4a0] sm:$0xff]
        %v1119 = vld [vmem:[%s431 + $0x4a8] sm:$0xff]
        %v1120 = vld [vmem:[%s431 + $0x4b0] sm:$0xff]
        %v1121 = vld [vmem:[%s431 + $0x4b8] sm:$0xff]
        %v1122 = vld [vmem:[%s431 + $0x4c0] sm:$0xff]
        %v1123 = vld [vmem:[%s431 + $0x4c8] sm:$0xff]
        %v1124 = vld [vmem:[%s431 + $0x4d0] sm:$0xff]
        %v1125 = vld [vmem:[%s431 + $0x4d8] sm:$0xff]
        %v1126 = vld [vmem:[%s431 + $0x4e0] sm:$0xff]
        %v1127 = vld [vmem:[%s431 + $0x4e8] sm:$0xff]
        %v1128 = vld [vmem:[%s431 + $0x4f0] sm:$0xff]
        %v1129 = vld [vmem:[%s431 + $0x4f8] sm:$0xff]
        %v1130 = vld [vmem:[%s431 + $0x500] sm:$0xff]
        %v1131 = vld [vmem:[%s431 + $0x508] sm:$0xff]
        %v1132 = vld [vmem:[%s431 + $0x510] sm:$0xff]
        %v1133 = vld [vmem:[%s431 + $0x518] sm:$0xff]
        %v1134 = vld [vmem:[%s431 + $0x520] sm:$0xff]
        %v1135 = vld [vmem:[%s431 + $0x528] sm:$0xff]
        %v1136 = vld [vmem:[%s431 + $0x530] sm:$0xff]
        %v1137 = vld [vmem:[%s431 + $0x538] sm:$0xff]
        %v1138 = vld [vmem:[%s431 + $0x540] sm:$0xff]
        %v1139 = vld [vmem:[%s431 + $0x548] sm:$0xff]
        %v1140 = vld [vmem:[%s431 + $0x550] sm:$0xff]
        %v1141 = vld [vmem:[%s431 + $0x558] sm:$0xff]
        %v1142 = vld [vmem:[%s431 + $0x560] sm:$0xff]
        %v1143 = vld [vmem:[%s431 + $0x568] sm:$0xff]
        %v1144 = vld [vmem:[%s431 + $0x570] sm:$0xff]
        %v1145 = vld [vmem:[%s431 + $0x578] sm:$0xff]
        %v1146 = vld [vmem:[%s431 + $0x580] sm:$0xff]
        %v1147 = vld [vmem:[%s431 + $0x588] sm:$0xff]
        %v1148 = vld [vmem:[%s431 + $0x590] sm:$0xff]
        %v1149 = vld [vmem:[%s431 + $0x598] sm:$0xff]
        %v1150 = vld [vmem:[%s431 + $0x5a0] sm:$0xff]
        %v1151 = vld [vmem:[%s431 + $0x5a8] sm:$0xff]
        %v1152 = vld [vmem:[%s431 + $0x5b0] sm:$0xff]
        %v1153 = vld [vmem:[%s431 + $0x5b8] sm:$0xff]
        %v1154 = vld [vmem:[%s431 + $0x5c0] sm:$0xff]
        %v1155 = vld [vmem:[%s431 + $0x5c8] sm:$0xff]
        %v1156 = vld [vmem:[%s431 + $0x5d0] sm:$0xff]
        %v1157 = vld [vmem:[%s431 + $0x5d8] sm:$0xff]
        %v1158 = vld [vmem:[%s431 + $0x5e0] sm:$0xff]
        %v1159 = vld [vmem:[%s431 + $0x5e8] sm:$0xff]
        %v1160 = vld [vmem:[%s431 + $0x5f0] sm:$0xff]
        %v1161 = vld [vmem:[%s431 + $0x5f8] sm:$0xff]
        %v1162 = vld [vmem:[%s431 + $0x600] sm:$0xff]
        %v1163 = vld [vmem:[%s431 + $0x608] sm:$0xff]
        %v1164 = vld [vmem:[%s431 + $0x610] sm:$0xff]
        %v1165 = vld [vmem:[%s431 + $0x618] sm:$0xff]
        %v1166 = vld [vmem:[%s431 + $0x620] sm:$0xff]
        %v1167 = vld [vmem:[%s431 + $0x628] sm:$0xff]
        %v1168 = vld [vmem:[%s431 + $0x630] sm:$0xff]
        %v1169 = vld [vmem:[%s431 + $0x638] sm:$0xff]
        %v1170 = vld [vmem:[%s431 + $0x640] sm:$0xff]
        %v1171 = vld [vmem:[%s431 + $0x648] sm:$0xff]
        %v1172 = vld [vmem:[%s431 + $0x650] sm:$0xff]
        %v1173 = vld [vmem:[%s431 + $0x658] sm:$0xff]
        %v1174 = vld [vmem:[%s431 + $0x660] sm:$0xff]
        %v1175 = vld [vmem:[%s431 + $0x668] sm:$0xff]
        %v1176 = vld [vmem:[%s431 + $0x670] sm:$0xff]
        %v1177 = vld [vmem:[%s431 + $0x678] sm:$0xff]
        %v1178 = vld [vmem:[%s431 + $0x680] sm:$0xff]
        %v1179 = vld [vmem:[%s431 + $0x688] sm:$0xff]
        %v1180 = vld [vmem:[%s431 + $0x690] sm:$0xff]
        %v1181 = vld [vmem:[%s431 + $0x698] sm:$0xff]
        %v1182 = vld [vmem:[%s431 + $0x6a0] sm:$0xff]
        %v1183 = vld [vmem:[%s431 + $0x6a8] sm:$0xff]
        %v1184 = vld [vmem:[%s431 + $0x6b0] sm:$0xff]
        %v1185 = vld [vmem:[%s431 + $0x6b8] sm:$0xff]
        %v1186 = vld [vmem:[%s431 + $0x6c0] sm:$0xff]
        %v1187 = vld [vmem:[%s431 + $0x6c8] sm:$0xff]
        %v1188 = vld [vmem:[%s431 + $0x6d0] sm:$0xff]
        %v1189 = vld [vmem:[%s431 + $0x6d8] sm:$0xff]
        %v1190 = vld [vmem:[%s431 + $0x6e0] sm:$0xff]
        %v1191 = vld [vmem:[%s431 + $0x6e8] sm:$0xff]
        %v1192 = vld [vmem:[%s431 + $0x6f0] sm:$0xff]
        %v1193 = vld [vmem:[%s431 + $0x6f8] sm:$0xff]
        %v1194 = vld [vmem:[%s431 + $0x700] sm:$0xff]
        %v1195 = vld [vmem:[%s431 + $0x708] sm:$0xff]
        %v1196 = vld [vmem:[%s431 + $0x710] sm:$0xff]
        %v1197 = vld [vmem:[%s431 + $0x718] sm:$0xff]
        %v1198 = vld [vmem:[%s431 + $0x720] sm:$0xff]
        %v1199 = vld [vmem:[%s431 + $0x728] sm:$0xff]
        %v1200 = vld [vmem:[%s431 + $0x730] sm:$0xff]
        %v1201 = vld [vmem:[%s431 + $0x738] sm:$0xff]
        %v1202 = vld [vmem:[%s431 + $0x740] sm:$0xff]
        %v1203 = vld [vmem:[%s431 + $0x748] sm:$0xff]
        %v1204 = vld [vmem:[%s431 + $0x750] sm:$0xff]
        %v1205 = vld [vmem:[%s431 + $0x758] sm:$0xff]
        %v1206 = vld [vmem:[%s431 + $0x760] sm:$0xff]
        %v1207 = vld [vmem:[%s431 + $0x768] sm:$0xff]
        %v1208 = vld [vmem:[%s431 + $0x770] sm:$0xff]
        %v1209 = vld [vmem:[%s431 + $0x778] sm:$0xff]
        %v1210 = vld [vmem:[%s431 + $0x780] sm:$0xff]
        %v1211 = vld [vmem:[%s431 + $0x788] sm:$0xff]
        %v1212 = vld [vmem:[%s431 + $0x790] sm:$0xff]
        %v1213 = vld [vmem:[%s431 + $0x798] sm:$0xff]
        %v1214 = vld [vmem:[%s431 + $0x7a0] sm:$0xff]
        %v1215 = vld [vmem:[%s431 + $0x7a8] sm:$0xff]
        %v1216 = vld [vmem:[%s431 + $0x7b0] sm:$0xff]
        %v1217 = vld [vmem:[%s431 + $0x7b8] sm:$0xff]
        %v1218 = vld [vmem:[%s431 + $0x7c0] sm:$0xff]
        %v1219 = vld [vmem:[%s431 + $0x7c8] sm:$0xff]
        %v1220 = vld [vmem:[%s431 + $0x7d0] sm:$0xff]
        %v1221 = vld [vmem:[%s431 + $0x7d8] sm:$0xff]
        %v1222 = vld [vmem:[%s431 + $0x7e0] sm:$0xff]
        %v1223 = vld [vmem:[%s431 + $0x7e8] sm:$0xff]
        %v1224 = vld [vmem:[%s431 + $0x7f0] sm:$0xff]
        %v1225 = vld [vmem:[%s431 + $0x7f8] sm:$0xff]
        %v1226 = vld [vmem:[%s431 + $0x800] sm:$0xff]
        %v1227 = vld [vmem:[%s431 + $0x808] sm:$0xff]
        %v1228 = vld [vmem:[%s431 + $0x810] sm:$0xff]
        %v1229 = vld [vmem:[%s431 + $0x818] sm:$0xff]
        %v1230 = vld [vmem:[%s431 + $0x820] sm:$0xff]
        %v1231 = vld [vmem:[%s431 + $0x828] sm:$0xff]
        %v1232 = vld [vmem:[%s431 + $0x830] sm:$0xff]
        %v1233 = vld [vmem:[%s431 + $0x838] sm:$0xff]
        %v1234 = vld [vmem:[%s431 + $0x840] sm:$0xff]
        %v1235 = vld [vmem:[%s431 + $0x848] sm:$0xff]
        %v1236 = vld [vmem:[%s431 + $0x850] sm:$0xff]
        %v1237 = vld [vmem:[%s431 + $0x858] sm:$0xff]
        %v1238 = vld [vmem:[%s431 + $0x860] sm:$0xff]
        %v1239 = vld [vmem:[%s431 + $0x868] sm:$0xff]
        %v1240 = vld [vmem:[%s431 + $0x870] sm:$0xff]
        %v1241 = vld [vmem:[%s431 + $0x878] sm:$0xff]
        %v1242 = vld [vmem:[%s431 + $0x880] sm:$0xff]
        %v1243 = vld [vmem:[%s431 + $0x888] sm:$0xff]
        %v1244 = vld [vmem:[%s431 + $0x890] sm:$0xff]
        %v1245 = vld [vmem:[%s431 + $0x898] sm:$0xff]
        %v1246 = vld [vmem:[%s431 + $0x8a0] sm:$0xff]
        %v1247 = vld [vmem:[%s431 + $0x8a8] sm:$0xff]
        %v1248 = vld [vmem:[%s431 + $0x8b0] sm:$0xff]
        %v1249 = vld [vmem:[%s431 + $0x8b8] sm:$0xff]
        %v1250 = vld [vmem:[%s431 + $0x8c0] sm:$0xff]
        %v1251 = vld [vmem:[%s431 + $0x8c8] sm:$0xff]
        %v1252 = vld [vmem:[%s431 + $0x8d0] sm:$0xff]
        %v1253 = vld [vmem:[%s431 + $0x8d8] sm:$0xff]
        %v1254 = vld [vmem:[%s431 + $0x8e0] sm:$0xff]
        %v1255 = vld [vmem:[%s431 + $0x8e8] sm:$0xff]
        %v1256 = vld [vmem:[%s431 + $0x8f0] sm:$0xff]
        %v1257 = vld [vmem:[%s431 + $0x8f8] sm:$0xff]
        %v1258 = vld [vmem:[%s431 + $0x900] sm:$0xff]
        %v1259 = vld [vmem:[%s431 + $0x908] sm:$0xff]
        %v1260 = vld [vmem:[%s431 + $0x910] sm:$0xff]
        %v1261 = vld [vmem:[%s431 + $0x918] sm:$0xff]
        %v1262 = vld [vmem:[%s431 + $0x920] sm:$0xff]
        %v1263 = vld [vmem:[%s431 + $0x928] sm:$0xff]
        %v1264 = vld [vmem:[%s431 + $0x930] sm:$0xff]
        %v1265 = vld [vmem:[%s431 + $0x938] sm:$0xff]
        %v1266 = vld [vmem:[%s431 + $0x940] sm:$0xff]
        %v1267 = vld [vmem:[%s431 + $0x948] sm:$0xff]
        %v1268 = vld [vmem:[%s431 + $0x950] sm:$0xff]
        %v1269 = vld [vmem:[%s431 + $0x958] sm:$0xff]
        %v1270 = vld [vmem:[%s431 + $0x960] sm:$0xff]
        %v1271 = vld [vmem:[%s431 + $0x968] sm:$0xff]
        %v1272 = vld [vmem:[%s431 + $0x970] sm:$0xff]
        %v1273 = vld [vmem:[%s431 + $0x978] sm:$0xff]
        %v1274 = vld [vmem:[%s431 + $0x980] sm:$0xff]
        %v1275 = vld [vmem:[%s431 + $0x988] sm:$0xff]
        %v1276 = vld [vmem:[%s431 + $0x990] sm:$0xff]
        %v1277 = vld [vmem:[%s431 + $0x998] sm:$0xff]
        %v1278 = vld [vmem:[%s431 + $0x9a0] sm:$0xff]
        %v1279 = vld [vmem:[%s431 + $0x9a8] sm:$0xff]
        %v1280 = vld [vmem:[%s431 + $0x9b0] sm:$0xff]
        %v1281 = vld [vmem:[%s431 + $0x9b8] sm:$0xff]
        %v1282 = vld [vmem:[%s431 + $0x9c0] sm:$0xff]
        %v1283 = vld [vmem:[%s431 + $0x9c8] sm:$0xff]
        %v1284 = vld [vmem:[%s431 + $0x9d0] sm:$0xff]
        %v1285 = vld [vmem:[%s431 + $0x9d8] sm:$0xff]
        %v1286 = vld [vmem:[%s431 + $0x9e0] sm:$0xff]
        %v1287 = vld [vmem:[%s431 + $0x9e8] sm:$0xff]
        %v1288 = vld [vmem:[%s431 + $0x9f0] sm:$0xff]
        %v1289 = vld [vmem:[%s431 + $0x9f8] sm:$0xff]
        %v1290 = vld [vmem:[%s431 + $0xa00] sm:$0xff]
        %v1291 = vld [vmem:[%s431 + $0xa08] sm:$0xff]
        %v1292 = vld [vmem:[%s431 + $0xa10] sm:$0xff]
        %v1293 = vld [vmem:[%s431 + $0xa18] sm:$0xff]
        %v1294 = vld [vmem:[%s431 + $0xa20] sm:$0xff]
        %v1295 = vld [vmem:[%s431 + $0xa28] sm:$0xff]
        %v1296 = vld [vmem:[%s431 + $0xa30] sm:$0xff]
        %v1297 = vld [vmem:[%s431 + $0xa38] sm:$0xff]
        %v1298 = vld [vmem:[%s431 + $0xa40] sm:$0xff]
        %v1299 = vld [vmem:[%s431 + $0xa48] sm:$0xff]
        %v1300 = vld [vmem:[%s431 + $0xa50] sm:$0xff]
        %v1301 = vld [vmem:[%s431 + $0xa58] sm:$0xff]
        %v1302 = vld [vmem:[%s431 + $0xa60] sm:$0xff]
        %v1303 = vld [vmem:[%s431 + $0xa68] sm:$0xff]
        %v1304 = vld [vmem:[%s431 + $0xa70] sm:$0xff]
        %v1305 = vld [vmem:[%s431 + $0xa78] sm:$0xff]
        %v1306 = vld [vmem:[%s431 + $0xa80] sm:$0xff]
        %v1307 = vld [vmem:[%s431 + $0xa88] sm:$0xff]
        %v1308 = vld [vmem:[%s431 + $0xa90] sm:$0xff]
        %v1309 = vld [vmem:[%s431 + $0xa98] sm:$0xff]
        %v1310 = vld [vmem:[%s431 + $0xaa0] sm:$0xff]
        %v1311 = vld [vmem:[%s431 + $0xaa8] sm:$0xff]
        %v1312 = vld [vmem:[%s431 + $0xab0] sm:$0xff]
        %v1313 = vld [vmem:[%s431 + $0xab8] sm:$0xff]
        %v1314 = vld [vmem:[%s431 + $0xac0] sm:$0xff]
        %v1315 = vld [vmem:[%s431 + $0xac8] sm:$0xff]
        %v1316 = vld [vmem:[%s431 + $0xad0] sm:$0xff]
        %v1317 = vld [vmem:[%s431 + $0xad8] sm:$0xff]
        %v1318 = vld [vmem:[%s431 + $0xae0] sm:$0xff]
        %v1319 = vld [vmem:[%s431 + $0xae8] sm:$0xff]
        %v1320 = vld [vmem:[%s431 + $0xaf0] sm:$0xff]
        %v1321 = vld [vmem:[%s431 + $0xaf8] sm:$0xff]
        %v1322 = vld [vmem:[%s431 + $0xb00] sm:$0xff]
        %v1323 = vld [vmem:[%s431 + $0xb08] sm:$0xff]
        %v1324 = vld [vmem:[%s431 + $0xb10] sm:$0xff]
        %v1325 = vld [vmem:[%s431 + $0xb18] sm:$0xff]
        %v1326 = vld [vmem:[%s431 + $0xb20] sm:$0xff]
        %v1327 = vld [vmem:[%s431 + $0xb28] sm:$0xff]
        %v1328 = vld [vmem:[%s431 + $0xb30] sm:$0xff]
        %v1329 = vld [vmem:[%s431 + $0xb38] sm:$0xff]
        %v1330 = vld [vmem:[%s431 + $0xb40] sm:$0xff]
        %v1331 = vld [vmem:[%s431 + $0xb48] sm:$0xff]
        %v1332 = vld [vmem:[%s431 + $0xb50] sm:$0xff]
        %v1333 = vld [vmem:[%s431 + $0xb58] sm:$0xff]
        %v1334 = vld [vmem:[%s431 + $0xb60] sm:$0xff]
        %v1335 = vld [vmem:[%s431 + $0xb68] sm:$0xff]
        %v1336 = vld [vmem:[%s431 + $0xb70] sm:$0xff]
        %v1337 = vld [vmem:[%s431 + $0xb78] sm:$0xff]
        %v1338 = vld [vmem:[%s431 + $0xb80] sm:$0xff]
        %v1339 = vld [vmem:[%s431 + $0xb88] sm:$0xff]
        %v1340 = vld [vmem:[%s431 + $0xb90] sm:$0xff]
        %v1341 = vld [vmem:[%s431 + $0xb98] sm:$0xff]
        %v1342 = vld [vmem:[%s431 + $0xba0] sm:$0xff]
        %v1343 = vld [vmem:[%s431 + $0xba8] sm:$0xff]
        %v1344 = vld [vmem:[%s431 + $0xbb0] sm:$0xff]
        %v1345 = vld [vmem:[%s431 + $0xbb8] sm:$0xff]
        %v1346 = vld [vmem:[%s431 + $0xbc0] sm:$0xff]
        %v1347 = vld [vmem:[%s431 + $0xbc8] sm:$0xff]
        %v1348 = vld [vmem:[%s431 + $0xbd0] sm:$0xff]
        %v1349 = vld [vmem:[%s431 + $0xbd8] sm:$0xff]
        %v1350 = vld [vmem:[%s431 + $0xbe0] sm:$0xff]
        %v1351 = vld [vmem:[%s431 + $0xbe8] sm:$0xff]
        %v1352 = vld [vmem:[%s431 + $0xbf0] sm:$0xff]
        %v1353 = vld [vmem:[%s431 + $0xbf8] sm:$0xff]
        %v1354 = vld [vmem:[%s440] sm:$0xff]
        %v1355 = vld [vmem:[%s440 + $0x8] sm:$0xff]
        %v1356 = vld [vmem:[%s440 + $0x10] sm:$0xff]
        %v1360 = vlaneseq
        %v1361 = vshrl.u32 %v1360, 7
        %v1362 = vsub.s32 0, %v1361
        %v1363 = vrot.slane %v1354, %v1362
        %v1364 = vlaneseq
        %v1365 = vshrl.u32 %v1364, 7
        %v1366 = vsub.s32 1, %v1365
        %v1367 = vrot.slane %v1354, %v1366
        %v1368 = vlaneseq
        %v1369 = vshrl.u32 %v1368, 7
        %v1370 = vsub.s32 2, %v1369
        %v1371 = vrot.slane %v1354, %v1370
        %v1372 = vlaneseq
        %v1373 = vshrl.u32 %v1372, 7
        %v1374 = vsub.s32 3, %v1373
        %v1375 = vrot.slane %v1354, %v1374
        %v1376 = vlaneseq
        %v1377 = vshrl.u32 %v1376, 7
        %v1378 = vsub.s32 4, %v1377
        %v1379 = vrot.slane %v1354, %v1378
        %v1380 = vlaneseq
        %v1381 = vshrl.u32 %v1380, 7
        %v1382 = vsub.s32 5, %v1381
        %v1383 = vrot.slane %v1354, %v1382
        %v1384 = vlaneseq
        %v1385 = vshrl.u32 %v1384, 7
        %v1386 = vsub.s32 6, %v1385
        %v1387 = vrot.slane %v1354, %v1386
        %v1388 = vlaneseq
        %v1389 = vshrl.u32 %v1388, 7
        %v1390 = vsub.s32 7, %v1389
        %v1391 = vrot.slane %v1354, %v1390
        %v1392 = vlaneseq
        %v1393 = vshrl.u32 %v1392, 7
        %v1394 = vsub.s32 0, %v1393
        %v1395 = vrot.slane %v1355, %v1394
        %v1396 = vlaneseq
        %v1397 = vshrl.u32 %v1396, 7
        %v1398 = vsub.s32 1, %v1397
        %v1399 = vrot.slane %v1355, %v1398
        %v1400 = vlaneseq
        %v1401 = vshrl.u32 %v1400, 7
        %v1402 = vsub.s32 2, %v1401
        %v1403 = vrot.slane %v1355, %v1402
        %v1404 = vlaneseq
        %v1405 = vshrl.u32 %v1404, 7
        %v1406 = vsub.s32 3, %v1405
        %v1407 = vrot.slane %v1355, %v1406
        %v1408 = vlaneseq
        %v1409 = vshrl.u32 %v1408, 7
        %v1410 = vsub.s32 4, %v1409
        %v1411 = vrot.slane %v1355, %v1410
        %v1412 = vlaneseq
        %v1413 = vshrl.u32 %v1412, 7
        %v1414 = vsub.s32 5, %v1413
        %v1415 = vrot.slane %v1355, %v1414
        %v1416 = vlaneseq
        %v1417 = vshrl.u32 %v1416, 7
        %v1418 = vsub.s32 6, %v1417
        %v1419 = vrot.slane %v1355, %v1418
        %v1420 = vlaneseq
        %v1421 = vshrl.u32 %v1420, 7
        %v1422 = vsub.s32 7, %v1421
        %v1423 = vrot.slane %v1355, %v1422
        %v1424 = vlaneseq
        %v1425 = vshrl.u32 %v1424, 7
        %v1426 = vsub.s32 0, %v1425
        %v1427 = vrot.slane %v1356, %v1426
        %v1428 = vlaneseq
        %v1429 = vshrl.u32 %v1428, 7
        %v1430 = vsub.s32 1, %v1429
        %v1431 = vrot.slane %v1356, %v1430
        %v1432 = vlaneseq
        %v1433 = vshrl.u32 %v1432, 7
        %v1434 = vsub.s32 2, %v1433
        %v1435 = vrot.slane %v1356, %v1434
        %v1436 = vlaneseq
        %v1437 = vshrl.u32 %v1436, 7
        %v1438 = vsub.s32 3, %v1437
        %v1439 = vrot.slane %v1356, %v1438
        %v1440 = vlaneseq
        %v1441 = vshrl.u32 %v1440, 7
        %v1442 = vsub.s32 4, %v1441
        %v1443 = vrot.slane %v1356, %v1442
        %v1444 = vlaneseq
        %v1445 = vshrl.u32 %v1444, 7
        %v1446 = vsub.s32 5, %v1445
        %v1447 = vrot.slane %v1356, %v1446
        %v1448 = vlaneseq
        %v1449 = vshrl.u32 %v1448, 7
        %v1450 = vsub.s32 6, %v1449
        %v1451 = vrot.slane %v1356, %v1450
        %v1452 = vlaneseq
        %v1453 = vshrl.u32 %v1452, 7
        %v1454 = vsub.s32 7, %v1453
        %v1455 = vrot.slane %v1356, %v1454
        %v1864 = vunpack.c.l.b16 %v970
        %v1865 = vunpack.c.h.b16 %v970
        %v1866 = vunpack.c.l.b16 %v971
        %v1867 = vunpack.c.h.b16 %v971
        %v1868 = vunpack.c.l.b16 %v972
        %v1869 = vunpack.c.h.b16 %v972
        %v1870 = vunpack.c.l.b16 %v973
        %v1871 = vunpack.c.h.b16 %v973
        %v1872 = vunpack.c.l.b16 %v974
        %v1873 = vunpack.c.h.b16 %v974
        %v1874 = vunpack.c.l.b16 %v975
        %v1875 = vunpack.c.h.b16 %v975
        %v1876 = vunpack.c.l.b16 %v976
        %v1877 = vunpack.c.h.b16 %v976
        %v1878 = vunpack.c.l.b16 %v977
        %v1879 = vunpack.c.h.b16 %v977
        %v1880 = vunpack.c.l.b16 %v978
        %v1881 = vunpack.c.h.b16 %v978
        %v1882 = vunpack.c.l.b16 %v979
        %v1883 = vunpack.c.h.b16 %v979
        %v1884 = vunpack.c.l.b16 %v980
        %v1885 = vunpack.c.h.b16 %v980
        %v1886 = vunpack.c.l.b16 %v981
        %v1887 = vunpack.c.h.b16 %v981
        %v1888 = vunpack.c.l.b16 %v982
        %v1889 = vunpack.c.h.b16 %v982
        %v1890 = vunpack.c.l.b16 %v983
        %v1891 = vunpack.c.h.b16 %v983
        %v1892 = vunpack.c.l.b16 %v984
        %v1893 = vunpack.c.h.b16 %v984
        %v1894 = vunpack.c.l.b16 %v985
        %v1895 = vunpack.c.h.b16 %v985
        %v1896 = vunpack.c.l.b16 %v986
        %v1897 = vunpack.c.h.b16 %v986
        %v1898 = vunpack.c.l.b16 %v987
        %v1899 = vunpack.c.h.b16 %v987
        %v1900 = vunpack.c.l.b16 %v988
        %v1901 = vunpack.c.h.b16 %v988
        %v1902 = vunpack.c.l.b16 %v989
        %v1903 = vunpack.c.h.b16 %v989
        %v1904 = vunpack.c.l.b16 %v990
        %v1905 = vunpack.c.h.b16 %v990
        %v1906 = vunpack.c.l.b16 %v991
        %v1907 = vunpack.c.h.b16 %v991
        %v1908 = vunpack.c.l.b16 %v992
        %v1909 = vunpack.c.h.b16 %v992
        %v1910 = vunpack.c.l.b16 %v993
        %v1911 = vunpack.c.h.b16 %v993
        %v1912 = vunpack.c.l.b16 %v994
        %v1913 = vunpack.c.h.b16 %v994
        %v1914 = vunpack.c.l.b16 %v995
        %v1915 = vunpack.c.h.b16 %v995
        %v1916 = vunpack.c.l.b16 %v996
        %v1917 = vunpack.c.h.b16 %v996
        %v1918 = vunpack.c.l.b16 %v997
        %v1919 = vunpack.c.h.b16 %v997
        %v1920 = vunpack.c.l.b16 %v998
        %v1921 = vunpack.c.h.b16 %v998
        %v1922 = vunpack.c.l.b16 %v999
        %v1923 = vunpack.c.h.b16 %v999
        %v1924 = vunpack.c.l.b16 %v1000
        %v1925 = vunpack.c.h.b16 %v1000
        %v1926 = vunpack.c.l.b16 %v1001
        %v1927 = vunpack.c.h.b16 %v1001
        %v1928 = vunpack.c.l.b16 %v1002
        %v1929 = vunpack.c.h.b16 %v1002
        %v1930 = vunpack.c.l.b16 %v1003
        %v1931 = vunpack.c.h.b16 %v1003
        %v1932 = vunpack.c.l.b16 %v1004
        %v1933 = vunpack.c.h.b16 %v1004
        %v1934 = vunpack.c.l.b16 %v1005
        %v1935 = vunpack.c.h.b16 %v1005
        %v1936 = vunpack.c.l.b16 %v1006
        %v1937 = vunpack.c.h.b16 %v1006
        %v1938 = vunpack.c.l.b16 %v1007
        %v1939 = vunpack.c.h.b16 %v1007
        %v1940 = vunpack.c.l.b16 %v1008
        %v1941 = vunpack.c.h.b16 %v1008
        %v1942 = vunpack.c.l.b16 %v1009
        %v1943 = vunpack.c.h.b16 %v1009
        %v1944 = vunpack.c.l.b16 %v1010
        %v1945 = vunpack.c.h.b16 %v1010
        %v1946 = vunpack.c.l.b16 %v1011
        %v1947 = vunpack.c.h.b16 %v1011
        %v1948 = vunpack.c.l.b16 %v1012
        %v1949 = vunpack.c.h.b16 %v1012
        %v1950 = vunpack.c.l.b16 %v1013
        %v1951 = vunpack.c.h.b16 %v1013
        %v1952 = vunpack.c.l.b16 %v1014
        %v1953 = vunpack.c.h.b16 %v1014
        %v1954 = vunpack.c.l.b16 %v1015
        %v1955 = vunpack.c.h.b16 %v1015
        %v1956 = vunpack.c.l.b16 %v1016
        %v1957 = vunpack.c.h.b16 %v1016
        %v1958 = vunpack.c.l.b16 %v1017
        %v1959 = vunpack.c.h.b16 %v1017
        %v1960 = vunpack.c.l.b16 %v1018
        %v1961 = vunpack.c.h.b16 %v1018
        %v1962 = vunpack.c.l.b16 %v1019
        %v1963 = vunpack.c.h.b16 %v1019
        %v1964 = vunpack.c.l.b16 %v1020
        %v1965 = vunpack.c.h.b16 %v1020
        %v1966 = vunpack.c.l.b16 %v1021
        %v1967 = vunpack.c.h.b16 %v1021
        %v1968 = vunpack.c.l.b16 %v1022
        %v1969 = vunpack.c.h.b16 %v1022
        %v1970 = vunpack.c.l.b16 %v1023
        %v1971 = vunpack.c.h.b16 %v1023
        %v1972 = vunpack.c.l.b16 %v1024
        %v1973 = vunpack.c.h.b16 %v1024
        %v1974 = vunpack.c.l.b16 %v1025
        %v1975 = vunpack.c.h.b16 %v1025
        %v1976 = vunpack.c.l.b16 %v1026
        %v1977 = vunpack.c.h.b16 %v1026
        %v1978 = vunpack.c.l.b16 %v1027
        %v1979 = vunpack.c.h.b16 %v1027
        %v1980 = vunpack.c.l.b16 %v1028
        %v1981 = vunpack.c.h.b16 %v1028
        %v1982 = vunpack.c.l.b16 %v1029
        %v1983 = vunpack.c.h.b16 %v1029
        %v1984 = vunpack.c.l.b16 %v1030
        %v1985 = vunpack.c.h.b16 %v1030
        %v1986 = vunpack.c.l.b16 %v1031
        %v1987 = vunpack.c.h.b16 %v1031
        %v1988 = vunpack.c.l.b16 %v1032
        %v1989 = vunpack.c.h.b16 %v1032
        %v1990 = vunpack.c.l.b16 %v1033
        %v1991 = vunpack.c.h.b16 %v1033
        %v1992 = vunpack.c.l.b16 %v1034
        %v1993 = vunpack.c.h.b16 %v1034
        %v1994 = vunpack.c.l.b16 %v1035
        %v1995 = vunpack.c.h.b16 %v1035
        %v1996 = vunpack.c.l.b16 %v1036
        %v1997 = vunpack.c.h.b16 %v1036
        %v1998 = vunpack.c.l.b16 %v1037
        %v1999 = vunpack.c.h.b16 %v1037
        %v2000 = vunpack.c.l.b16 %v1038
        %v2001 = vunpack.c.h.b16 %v1038
        %v2002 = vunpack.c.l.b16 %v1039
        %v2003 = vunpack.c.h.b16 %v1039
        %v2004 = vunpack.c.l.b16 %v1040
        %v2005 = vunpack.c.h.b16 %v1040
        %v2006 = vunpack.c.l.b16 %v1041
        %v2007 = vunpack.c.h.b16 %v1041
        %v2008 = vunpack.c.l.b16 %v1042
        %v2009 = vunpack.c.h.b16 %v1042
        %v2010 = vunpack.c.l.b16 %v1043
        %v2011 = vunpack.c.h.b16 %v1043
        %v2012 = vunpack.c.l.b16 %v1044
        %v2013 = vunpack.c.h.b16 %v1044
        %v2014 = vunpack.c.l.b16 %v1045
        %v2015 = vunpack.c.h.b16 %v1045
        %v2016 = vunpack.c.l.b16 %v1046
        %v2017 = vunpack.c.h.b16 %v1046
        %v2018 = vunpack.c.l.b16 %v1047
        %v2019 = vunpack.c.h.b16 %v1047
        %v2020 = vunpack.c.l.b16 %v1048
        %v2021 = vunpack.c.h.b16 %v1048
        %v2022 = vunpack.c.l.b16 %v1049
        %v2023 = vunpack.c.h.b16 %v1049
        %v2024 = vunpack.c.l.b16 %v1050
        %v2025 = vunpack.c.h.b16 %v1050
        %v2026 = vunpack.c.l.b16 %v1051
        %v2027 = vunpack.c.h.b16 %v1051
        %v2028 = vunpack.c.l.b16 %v1052
        %v2029 = vunpack.c.h.b16 %v1052
        %v2030 = vunpack.c.l.b16 %v1053
        %v2031 = vunpack.c.h.b16 %v1053
        %v2032 = vunpack.c.l.b16 %v1054
        %v2033 = vunpack.c.h.b16 %v1054
        %v2034 = vunpack.c.l.b16 %v1055
        %v2035 = vunpack.c.h.b16 %v1055
        %v2036 = vunpack.c.l.b16 %v1056
        %v2037 = vunpack.c.h.b16 %v1056
        %v2038 = vunpack.c.l.b16 %v1057
        %v2039 = vunpack.c.h.b16 %v1057
        %v2040 = vunpack.c.l.b16 %v1058
        %v2041 = vunpack.c.h.b16 %v1058
        %v2042 = vunpack.c.l.b16 %v1059
        %v2043 = vunpack.c.h.b16 %v1059
        %v2044 = vunpack.c.l.b16 %v1060
        %v2045 = vunpack.c.h.b16 %v1060
        %v2046 = vunpack.c.l.b16 %v1061
        %v2047 = vunpack.c.h.b16 %v1061
        %v2048 = vunpack.c.l.b16 %v1062
        %v2049 = vunpack.c.h.b16 %v1062
        %v2050 = vunpack.c.l.b16 %v1063
        %v2051 = vunpack.c.h.b16 %v1063
        %v2052 = vunpack.c.l.b16 %v1064
        %v2053 = vunpack.c.h.b16 %v1064
        %v2054 = vunpack.c.l.b16 %v1065
        %v2055 = vunpack.c.h.b16 %v1065
        %v2056 = vunpack.c.l.b16 %v1066
        %v2057 = vunpack.c.h.b16 %v1066
        %v2058 = vunpack.c.l.b16 %v1067
        %v2059 = vunpack.c.h.b16 %v1067
        %v2060 = vunpack.c.l.b16 %v1068
        %v2061 = vunpack.c.h.b16 %v1068
        %v2062 = vunpack.c.l.b16 %v1069
        %v2063 = vunpack.c.h.b16 %v1069
        %v2064 = vunpack.c.l.b16 %v1070
        %v2065 = vunpack.c.h.b16 %v1070
        %v2066 = vunpack.c.l.b16 %v1071
        %v2067 = vunpack.c.h.b16 %v1071
        %v2068 = vunpack.c.l.b16 %v1072
        %v2069 = vunpack.c.h.b16 %v1072
        %v2070 = vunpack.c.l.b16 %v1073
        %v2071 = vunpack.c.h.b16 %v1073
        %v2072 = vunpack.c.l.b16 %v1074
        %v2073 = vunpack.c.h.b16 %v1074
        %v2074 = vunpack.c.l.b16 %v1075
        %v2075 = vunpack.c.h.b16 %v1075
        %v2076 = vunpack.c.l.b16 %v1076
        %v2077 = vunpack.c.h.b16 %v1076
        %v2078 = vunpack.c.l.b16 %v1077
        %v2079 = vunpack.c.h.b16 %v1077
        %v2080 = vunpack.c.l.b16 %v1078
        %v2081 = vunpack.c.h.b16 %v1078
        %v2082 = vunpack.c.l.b16 %v1079
        %v2083 = vunpack.c.h.b16 %v1079
        %v2084 = vunpack.c.l.b16 %v1080
        %v2085 = vunpack.c.h.b16 %v1080
        %v2086 = vunpack.c.l.b16 %v1081
        %v2087 = vunpack.c.h.b16 %v1081
        %v2088 = vunpack.c.l.b16 %v1082
        %v2089 = vunpack.c.h.b16 %v1082
        %v2090 = vunpack.c.l.b16 %v1083
        %v2091 = vunpack.c.h.b16 %v1083
        %v2092 = vunpack.c.l.b16 %v1084
        %v2093 = vunpack.c.h.b16 %v1084
        %v2094 = vunpack.c.l.b16 %v1085
        %v2095 = vunpack.c.h.b16 %v1085
        %v2096 = vunpack.c.l.b16 %v1086
        %v2097 = vunpack.c.h.b16 %v1086
        %v2098 = vunpack.c.l.b16 %v1087
        %v2099 = vunpack.c.h.b16 %v1087
        %v2100 = vunpack.c.l.b16 %v1088
        %v2101 = vunpack.c.h.b16 %v1088
        %v2102 = vunpack.c.l.b16 %v1089
        %v2103 = vunpack.c.h.b16 %v1089
        %v2104 = vunpack.c.l.b16 %v1090
        %v2105 = vunpack.c.h.b16 %v1090
        %v2106 = vunpack.c.l.b16 %v1091
        %v2107 = vunpack.c.h.b16 %v1091
        %v2108 = vunpack.c.l.b16 %v1092
        %v2109 = vunpack.c.h.b16 %v1092
        %v2110 = vunpack.c.l.b16 %v1093
        %v2111 = vunpack.c.h.b16 %v1093
        %v2112 = vunpack.c.l.b16 %v1094
        %v2113 = vunpack.c.h.b16 %v1094
        %v2114 = vunpack.c.l.b16 %v1095
        %v2115 = vunpack.c.h.b16 %v1095
        %v2116 = vunpack.c.l.b16 %v1096
        %v2117 = vunpack.c.h.b16 %v1096
        %v2118 = vunpack.c.l.b16 %v1097
        %v2119 = vunpack.c.h.b16 %v1097
        %v2120 = vunpack.c.l.b16 %v1098
        %v2121 = vunpack.c.h.b16 %v1098
        %v2122 = vunpack.c.l.b16 %v1099
        %v2123 = vunpack.c.h.b16 %v1099
        %v2124 = vunpack.c.l.b16 %v1100
        %v2125 = vunpack.c.h.b16 %v1100
        %v2126 = vunpack.c.l.b16 %v1101
        %v2127 = vunpack.c.h.b16 %v1101
        %v2128 = vunpack.c.l.b16 %v1102
        %v2129 = vunpack.c.h.b16 %v1102
        %v2130 = vunpack.c.l.b16 %v1103
        %v2131 = vunpack.c.h.b16 %v1103
        %v2132 = vunpack.c.l.b16 %v1104
        %v2133 = vunpack.c.h.b16 %v1104
        %v2134 = vunpack.c.l.b16 %v1105
        %v2135 = vunpack.c.h.b16 %v1105
        %v2136 = vunpack.c.l.b16 %v1106
        %v2137 = vunpack.c.h.b16 %v1106
        %v2138 = vunpack.c.l.b16 %v1107
        %v2139 = vunpack.c.h.b16 %v1107
        %v2140 = vunpack.c.l.b16 %v1108
        %v2141 = vunpack.c.h.b16 %v1108
        %v2142 = vunpack.c.l.b16 %v1109
        %v2143 = vunpack.c.h.b16 %v1109
        %v2144 = vunpack.c.l.b16 %v1110
        %v2145 = vunpack.c.h.b16 %v1110
        %v2146 = vunpack.c.l.b16 %v1111
        %v2147 = vunpack.c.h.b16 %v1111
        %v2148 = vunpack.c.l.b16 %v1112
        %v2149 = vunpack.c.h.b16 %v1112
        %v2150 = vunpack.c.l.b16 %v1113
        %v2151 = vunpack.c.h.b16 %v1113
        %v2152 = vunpack.c.l.b16 %v1114
        %v2153 = vunpack.c.h.b16 %v1114
        %v2154 = vunpack.c.l.b16 %v1115
        %v2155 = vunpack.c.h.b16 %v1115
        %v2156 = vunpack.c.l.b16 %v1116
        %v2157 = vunpack.c.h.b16 %v1116
        %v2158 = vunpack.c.l.b16 %v1117
        %v2159 = vunpack.c.h.b16 %v1117
        %v2160 = vunpack.c.l.b16 %v1118
        %v2161 = vunpack.c.h.b16 %v1118
        %v2162 = vunpack.c.l.b16 %v1119
        %v2163 = vunpack.c.h.b16 %v1119
        %v2164 = vunpack.c.l.b16 %v1120
        %v2165 = vunpack.c.h.b16 %v1120
        %v2166 = vunpack.c.l.b16 %v1121
        %v2167 = vunpack.c.h.b16 %v1121
        %v2168 = vunpack.c.l.b16 %v1122
        %v2169 = vunpack.c.h.b16 %v1122
        %v2170 = vunpack.c.l.b16 %v1123
        %v2171 = vunpack.c.h.b16 %v1123
        %v2172 = vunpack.c.l.b16 %v1124
        %v2173 = vunpack.c.h.b16 %v1124
        %v2174 = vunpack.c.l.b16 %v1125
        %v2175 = vunpack.c.h.b16 %v1125
        %v2176 = vunpack.c.l.b16 %v1126
        %v2177 = vunpack.c.h.b16 %v1126
        %v2178 = vunpack.c.l.b16 %v1127
        %v2179 = vunpack.c.h.b16 %v1127
        %v2180 = vunpack.c.l.b16 %v1128
        %v2181 = vunpack.c.h.b16 %v1128
        %v2182 = vunpack.c.l.b16 %v1129
        %v2183 = vunpack.c.h.b16 %v1129
        %v2184 = vunpack.c.l.b16 %v1130
        %v2185 = vunpack.c.h.b16 %v1130
        %v2186 = vunpack.c.l.b16 %v1131
        %v2187 = vunpack.c.h.b16 %v1131
        %v2188 = vunpack.c.l.b16 %v1132
        %v2189 = vunpack.c.h.b16 %v1132
        %v2190 = vunpack.c.l.b16 %v1133
        %v2191 = vunpack.c.h.b16 %v1133
        %v2192 = vunpack.c.l.b16 %v1134
        %v2193 = vunpack.c.h.b16 %v1134
        %v2194 = vunpack.c.l.b16 %v1135
        %v2195 = vunpack.c.h.b16 %v1135
        %v2196 = vunpack.c.l.b16 %v1136
        %v2197 = vunpack.c.h.b16 %v1136
        %v2198 = vunpack.c.l.b16 %v1137
        %v2199 = vunpack.c.h.b16 %v1137
        %v2200 = vunpack.c.l.b16 %v1138
        %v2201 = vunpack.c.h.b16 %v1138
        %v2202 = vunpack.c.l.b16 %v1139
        %v2203 = vunpack.c.h.b16 %v1139
        %v2204 = vunpack.c.l.b16 %v1140
        %v2205 = vunpack.c.h.b16 %v1140
        %v2206 = vunpack.c.l.b16 %v1141
        %v2207 = vunpack.c.h.b16 %v1141
        %v2208 = vunpack.c.l.b16 %v1142
        %v2209 = vunpack.c.h.b16 %v1142
        %v2210 = vunpack.c.l.b16 %v1143
        %v2211 = vunpack.c.h.b16 %v1143
        %v2212 = vunpack.c.l.b16 %v1144
        %v2213 = vunpack.c.h.b16 %v1144
        %v2214 = vunpack.c.l.b16 %v1145
        %v2215 = vunpack.c.h.b16 %v1145
        %v2216 = vunpack.c.l.b16 %v1146
        %v2217 = vunpack.c.h.b16 %v1146
        %v2218 = vunpack.c.l.b16 %v1147
        %v2219 = vunpack.c.h.b16 %v1147
        %v2220 = vunpack.c.l.b16 %v1148
        %v2221 = vunpack.c.h.b16 %v1148
        %v2222 = vunpack.c.l.b16 %v1149
        %v2223 = vunpack.c.h.b16 %v1149
        %v2224 = vunpack.c.l.b16 %v1150
        %v2225 = vunpack.c.h.b16 %v1150
        %v2226 = vunpack.c.l.b16 %v1151
        %v2227 = vunpack.c.h.b16 %v1151
        %v2228 = vunpack.c.l.b16 %v1152
        %v2229 = vunpack.c.h.b16 %v1152
        %v2230 = vunpack.c.l.b16 %v1153
        %v2231 = vunpack.c.h.b16 %v1153
        %v2232 = vunpack.c.l.b16 %v1154
        %v2233 = vunpack.c.h.b16 %v1154
        %v2234 = vunpack.c.l.b16 %v1155
        %v2235 = vunpack.c.h.b16 %v1155
        %v2236 = vunpack.c.l.b16 %v1156
        %v2237 = vunpack.c.h.b16 %v1156
        %v2238 = vunpack.c.l.b16 %v1157
        %v2239 = vunpack.c.h.b16 %v1157
        %v2240 = vunpack.c.l.b16 %v1158
        %v2241 = vunpack.c.h.b16 %v1158
        %v2242 = vunpack.c.l.b16 %v1159
        %v2243 = vunpack.c.h.b16 %v1159
        %v2244 = vunpack.c.l.b16 %v1160
        %v2245 = vunpack.c.h.b16 %v1160
        %v2246 = vunpack.c.l.b16 %v1161
        %v2247 = vunpack.c.h.b16 %v1161
        %v2248 = vunpack.c.l.b16 %v1162
        %v2249 = vunpack.c.h.b16 %v1162
        %v2250 = vunpack.c.l.b16 %v1163
        %v2251 = vunpack.c.h.b16 %v1163
        %v2252 = vunpack.c.l.b16 %v1164
        %v2253 = vunpack.c.h.b16 %v1164
        %v2254 = vunpack.c.l.b16 %v1165
        %v2255 = vunpack.c.h.b16 %v1165
        %v2256 = vunpack.c.l.b16 %v1166
        %v2257 = vunpack.c.h.b16 %v1166
        %v2258 = vunpack.c.l.b16 %v1167
        %v2259 = vunpack.c.h.b16 %v1167
        %v2260 = vunpack.c.l.b16 %v1168
        %v2261 = vunpack.c.h.b16 %v1168
        %v2262 = vunpack.c.l.b16 %v1169
        %v2263 = vunpack.c.h.b16 %v1169
        %v2264 = vunpack.c.l.b16 %v1170
        %v2265 = vunpack.c.h.b16 %v1170
        %v2266 = vunpack.c.l.b16 %v1171
        %v2267 = vunpack.c.h.b16 %v1171
        %v2268 = vunpack.c.l.b16 %v1172
        %v2269 = vunpack.c.h.b16 %v1172
        %v2270 = vunpack.c.l.b16 %v1173
        %v2271 = vunpack.c.h.b16 %v1173
        %v2272 = vunpack.c.l.b16 %v1174
        %v2273 = vunpack.c.h.b16 %v1174
        %v2274 = vunpack.c.l.b16 %v1175
        %v2275 = vunpack.c.h.b16 %v1175
        %v2276 = vunpack.c.l.b16 %v1176
        %v2277 = vunpack.c.h.b16 %v1176
        %v2278 = vunpack.c.l.b16 %v1177
        %v2279 = vunpack.c.h.b16 %v1177
        %v2280 = vunpack.c.l.b16 %v1178
        %v2281 = vunpack.c.h.b16 %v1178
        %v2282 = vunpack.c.l.b16 %v1179
        %v2283 = vunpack.c.h.b16 %v1179
        %v2284 = vunpack.c.l.b16 %v1180
        %v2285 = vunpack.c.h.b16 %v1180
        %v2286 = vunpack.c.l.b16 %v1181
        %v2287 = vunpack.c.h.b16 %v1181
        %v2288 = vunpack.c.l.b16 %v1182
        %v2289 = vunpack.c.h.b16 %v1182
        %v2290 = vunpack.c.l.b16 %v1183
        %v2291 = vunpack.c.h.b16 %v1183
        %v2292 = vunpack.c.l.b16 %v1184
        %v2293 = vunpack.c.h.b16 %v1184
        %v2294 = vunpack.c.l.b16 %v1185
        %v2295 = vunpack.c.h.b16 %v1185
        %v2296 = vunpack.c.l.b16 %v1186
        %v2297 = vunpack.c.h.b16 %v1186
        %v2298 = vunpack.c.l.b16 %v1187
        %v2299 = vunpack.c.h.b16 %v1187
        %v2300 = vunpack.c.l.b16 %v1188
        %v2301 = vunpack.c.h.b16 %v1188
        %v2302 = vunpack.c.l.b16 %v1189
        %v2303 = vunpack.c.h.b16 %v1189
        %v2304 = vunpack.c.l.b16 %v1190
        %v2305 = vunpack.c.h.b16 %v1190
        %v2306 = vunpack.c.l.b16 %v1191
        %v2307 = vunpack.c.h.b16 %v1191
        %v2308 = vunpack.c.l.b16 %v1192
        %v2309 = vunpack.c.h.b16 %v1192
        %v2310 = vunpack.c.l.b16 %v1193
        %v2311 = vunpack.c.h.b16 %v1193
        %v2312 = vunpack.c.l.b16 %v1194
        %v2313 = vunpack.c.h.b16 %v1194
        %v2314 = vunpack.c.l.b16 %v1195
        %v2315 = vunpack.c.h.b16 %v1195
        %v2316 = vunpack.c.l.b16 %v1196
        %v2317 = vunpack.c.h.b16 %v1196
        %v2318 = vunpack.c.l.b16 %v1197
        %v2319 = vunpack.c.h.b16 %v1197
        %v2320 = vunpack.c.l.b16 %v1198
        %v2321 = vunpack.c.h.b16 %v1198
        %v2322 = vunpack.c.l.b16 %v1199
        %v2323 = vunpack.c.h.b16 %v1199
        %v2324 = vunpack.c.l.b16 %v1200
        %v2325 = vunpack.c.h.b16 %v1200
        %v2326 = vunpack.c.l.b16 %v1201
        %v2327 = vunpack.c.h.b16 %v1201
        %v2328 = vunpack.c.l.b16 %v1202
        %v2329 = vunpack.c.h.b16 %v1202
        %v2330 = vunpack.c.l.b16 %v1203
        %v2331 = vunpack.c.h.b16 %v1203
        %v2332 = vunpack.c.l.b16 %v1204
        %v2333 = vunpack.c.h.b16 %v1204
        %v2334 = vunpack.c.l.b16 %v1205
        %v2335 = vunpack.c.h.b16 %v1205
        %v2336 = vunpack.c.l.b16 %v1206
        %v2337 = vunpack.c.h.b16 %v1206
        %v2338 = vunpack.c.l.b16 %v1207
        %v2339 = vunpack.c.h.b16 %v1207
        %v2340 = vunpack.c.l.b16 %v1208
        %v2341 = vunpack.c.h.b16 %v1208
        %v2342 = vunpack.c.l.b16 %v1209
        %v2343 = vunpack.c.h.b16 %v1209
        %v2344 = vunpack.c.l.b16 %v1210
        %v2345 = vunpack.c.h.b16 %v1210
        %v2346 = vunpack.c.l.b16 %v1211
        %v2347 = vunpack.c.h.b16 %v1211
        %v2348 = vunpack.c.l.b16 %v1212
        %v2349 = vunpack.c.h.b16 %v1212
        %v2350 = vunpack.c.l.b16 %v1213
        %v2351 = vunpack.c.h.b16 %v1213
        %v2352 = vunpack.c.l.b16 %v1214
        %v2353 = vunpack.c.h.b16 %v1214
        %v2354 = vunpack.c.l.b16 %v1215
        %v2355 = vunpack.c.h.b16 %v1215
        %v2356 = vunpack.c.l.b16 %v1216
        %v2357 = vunpack.c.h.b16 %v1216
        %v2358 = vunpack.c.l.b16 %v1217
        %v2359 = vunpack.c.h.b16 %v1217
        %v2360 = vunpack.c.l.b16 %v1218
        %v2361 = vunpack.c.h.b16 %v1218
        %v2362 = vunpack.c.l.b16 %v1219
        %v2363 = vunpack.c.h.b16 %v1219
        %v2364 = vunpack.c.l.b16 %v1220
        %v2365 = vunpack.c.h.b16 %v1220
        %v2366 = vunpack.c.l.b16 %v1221
        %v2367 = vunpack.c.h.b16 %v1221
        %v2368 = vunpack.c.l.b16 %v1222
        %v2369 = vunpack.c.h.b16 %v1222
        %v2370 = vunpack.c.l.b16 %v1223
        %v2371 = vunpack.c.h.b16 %v1223
        %v2372 = vunpack.c.l.b16 %v1224
        %v2373 = vunpack.c.h.b16 %v1224
        %v2374 = vunpack.c.l.b16 %v1225
        %v2375 = vunpack.c.h.b16 %v1225
        %v2376 = vunpack.c.l.b16 %v1226
        %v2377 = vunpack.c.h.b16 %v1226
        %v2378 = vunpack.c.l.b16 %v1227
        %v2379 = vunpack.c.h.b16 %v1227
        %v2380 = vunpack.c.l.b16 %v1228
        %v2381 = vunpack.c.h.b16 %v1228
        %v2382 = vunpack.c.l.b16 %v1229
        %v2383 = vunpack.c.h.b16 %v1229
        %v2384 = vunpack.c.l.b16 %v1230
        %v2385 = vunpack.c.h.b16 %v1230
        %v2386 = vunpack.c.l.b16 %v1231
        %v2387 = vunpack.c.h.b16 %v1231
        %v2388 = vunpack.c.l.b16 %v1232
        %v2389 = vunpack.c.h.b16 %v1232
        %v2390 = vunpack.c.l.b16 %v1233
        %v2391 = vunpack.c.h.b16 %v1233
        %v2392 = vunpack.c.l.b16 %v1234
        %v2393 = vunpack.c.h.b16 %v1234
        %v2394 = vunpack.c.l.b16 %v1235
        %v2395 = vunpack.c.h.b16 %v1235
        %v2396 = vunpack.c.l.b16 %v1236
        %v2397 = vunpack.c.h.b16 %v1236
        %v2398 = vunpack.c.l.b16 %v1237
        %v2399 = vunpack.c.h.b16 %v1237
        %v2400 = vunpack.c.l.b16 %v1238
        %v2401 = vunpack.c.h.b16 %v1238
        %v2402 = vunpack.c.l.b16 %v1239
        %v2403 = vunpack.c.h.b16 %v1239
        %v2404 = vunpack.c.l.b16 %v1240
        %v2405 = vunpack.c.h.b16 %v1240
        %v2406 = vunpack.c.l.b16 %v1241
        %v2407 = vunpack.c.h.b16 %v1241
        %v2408 = vunpack.c.l.b16 %v1242
        %v2409 = vunpack.c.h.b16 %v1242
        %v2410 = vunpack.c.l.b16 %v1243
        %v2411 = vunpack.c.h.b16 %v1243
        %v2412 = vunpack.c.l.b16 %v1244
        %v2413 = vunpack.c.h.b16 %v1244
        %v2414 = vunpack.c.l.b16 %v1245
        %v2415 = vunpack.c.h.b16 %v1245
        %v2416 = vunpack.c.l.b16 %v1246
        %v2417 = vunpack.c.h.b16 %v1246
        %v2418 = vunpack.c.l.b16 %v1247
        %v2419 = vunpack.c.h.b16 %v1247
        %v2420 = vunpack.c.l.b16 %v1248
        %v2421 = vunpack.c.h.b16 %v1248
        %v2422 = vunpack.c.l.b16 %v1249
        %v2423 = vunpack.c.h.b16 %v1249
        %v2424 = vunpack.c.l.b16 %v1250
        %v2425 = vunpack.c.h.b16 %v1250
        %v2426 = vunpack.c.l.b16 %v1251
        %v2427 = vunpack.c.h.b16 %v1251
        %v2428 = vunpack.c.l.b16 %v1252
        %v2429 = vunpack.c.h.b16 %v1252
        %v2430 = vunpack.c.l.b16 %v1253
        %v2431 = vunpack.c.h.b16 %v1253
        %v2432 = vunpack.c.l.b16 %v1254
        %v2433 = vunpack.c.h.b16 %v1254
        %v2434 = vunpack.c.l.b16 %v1255
        %v2435 = vunpack.c.h.b16 %v1255
        %v2436 = vunpack.c.l.b16 %v1256
        %v2437 = vunpack.c.h.b16 %v1256
        %v2438 = vunpack.c.l.b16 %v1257
        %v2439 = vunpack.c.h.b16 %v1257
        %v2440 = vunpack.c.l.b16 %v1258
        %v2441 = vunpack.c.h.b16 %v1258
        %v2442 = vunpack.c.l.b16 %v1259
        %v2443 = vunpack.c.h.b16 %v1259
        %v2444 = vunpack.c.l.b16 %v1260
        %v2445 = vunpack.c.h.b16 %v1260
        %v2446 = vunpack.c.l.b16 %v1261
        %v2447 = vunpack.c.h.b16 %v1261
        %v2448 = vunpack.c.l.b16 %v1262
        %v2449 = vunpack.c.h.b16 %v1262
        %v2450 = vunpack.c.l.b16 %v1263
        %v2451 = vunpack.c.h.b16 %v1263
        %v2452 = vunpack.c.l.b16 %v1264
        %v2453 = vunpack.c.h.b16 %v1264
        %v2454 = vunpack.c.l.b16 %v1265
        %v2455 = vunpack.c.h.b16 %v1265
        %v2456 = vunpack.c.l.b16 %v1266
        %v2457 = vunpack.c.h.b16 %v1266
        %v2458 = vunpack.c.l.b16 %v1267
        %v2459 = vunpack.c.h.b16 %v1267
        %v2460 = vunpack.c.l.b16 %v1268
        %v2461 = vunpack.c.h.b16 %v1268
        %v2462 = vunpack.c.l.b16 %v1269
        %v2463 = vunpack.c.h.b16 %v1269
        %v2464 = vunpack.c.l.b16 %v1270
        %v2465 = vunpack.c.h.b16 %v1270
        %v2466 = vunpack.c.l.b16 %v1271
        %v2467 = vunpack.c.h.b16 %v1271
        %v2468 = vunpack.c.l.b16 %v1272
        %v2469 = vunpack.c.h.b16 %v1272
        %v2470 = vunpack.c.l.b16 %v1273
        %v2471 = vunpack.c.h.b16 %v1273
        %v2472 = vunpack.c.l.b16 %v1274
        %v2473 = vunpack.c.h.b16 %v1274
        %v2474 = vunpack.c.l.b16 %v1275
        %v2475 = vunpack.c.h.b16 %v1275
        %v2476 = vunpack.c.l.b16 %v1276
        %v2477 = vunpack.c.h.b16 %v1276
        %v2478 = vunpack.c.l.b16 %v1277
        %v2479 = vunpack.c.h.b16 %v1277
        %v2480 = vunpack.c.l.b16 %v1278
        %v2481 = vunpack.c.h.b16 %v1278
        %v2482 = vunpack.c.l.b16 %v1279
        %v2483 = vunpack.c.h.b16 %v1279
        %v2484 = vunpack.c.l.b16 %v1280
        %v2485 = vunpack.c.h.b16 %v1280
        %v2486 = vunpack.c.l.b16 %v1281
        %v2487 = vunpack.c.h.b16 %v1281
        %v2488 = vunpack.c.l.b16 %v1282
        %v2489 = vunpack.c.h.b16 %v1282
        %v2490 = vunpack.c.l.b16 %v1283
        %v2491 = vunpack.c.h.b16 %v1283
        %v2492 = vunpack.c.l.b16 %v1284
        %v2493 = vunpack.c.h.b16 %v1284
        %v2494 = vunpack.c.l.b16 %v1285
        %v2495 = vunpack.c.h.b16 %v1285
        %v2496 = vunpack.c.l.b16 %v1286
        %v2497 = vunpack.c.h.b16 %v1286
        %v2498 = vunpack.c.l.b16 %v1287
        %v2499 = vunpack.c.h.b16 %v1287
        %v2500 = vunpack.c.l.b16 %v1288
        %v2501 = vunpack.c.h.b16 %v1288
        %v2502 = vunpack.c.l.b16 %v1289
        %v2503 = vunpack.c.h.b16 %v1289
        %v2504 = vunpack.c.l.b16 %v1290
        %v2505 = vunpack.c.h.b16 %v1290
        %v2506 = vunpack.c.l.b16 %v1291
        %v2507 = vunpack.c.h.b16 %v1291
        %v2508 = vunpack.c.l.b16 %v1292
        %v2509 = vunpack.c.h.b16 %v1292
        %v2510 = vunpack.c.l.b16 %v1293
        %v2511 = vunpack.c.h.b16 %v1293
        %v2512 = vunpack.c.l.b16 %v1294
        %v2513 = vunpack.c.h.b16 %v1294
        %v2514 = vunpack.c.l.b16 %v1295
        %v2515 = vunpack.c.h.b16 %v1295
        %v2516 = vunpack.c.l.b16 %v1296
        %v2517 = vunpack.c.h.b16 %v1296
        %v2518 = vunpack.c.l.b16 %v1297
        %v2519 = vunpack.c.h.b16 %v1297
        %v2520 = vunpack.c.l.b16 %v1298
        %v2521 = vunpack.c.h.b16 %v1298
        %v2522 = vunpack.c.l.b16 %v1299
        %v2523 = vunpack.c.h.b16 %v1299
        %v2524 = vunpack.c.l.b16 %v1300
        %v2525 = vunpack.c.h.b16 %v1300
        %v2526 = vunpack.c.l.b16 %v1301
        %v2527 = vunpack.c.h.b16 %v1301
        %v2528 = vunpack.c.l.b16 %v1302
        %v2529 = vunpack.c.h.b16 %v1302
        %v2530 = vunpack.c.l.b16 %v1303
        %v2531 = vunpack.c.h.b16 %v1303
        %v2532 = vunpack.c.l.b16 %v1304
        %v2533 = vunpack.c.h.b16 %v1304
        %v2534 = vunpack.c.l.b16 %v1305
        %v2535 = vunpack.c.h.b16 %v1305
        %v2536 = vunpack.c.l.b16 %v1306
        %v2537 = vunpack.c.h.b16 %v1306
        %v2538 = vunpack.c.l.b16 %v1307
        %v2539 = vunpack.c.h.b16 %v1307
        %v2540 = vunpack.c.l.b16 %v1308
        %v2541 = vunpack.c.h.b16 %v1308
        %v2542 = vunpack.c.l.b16 %v1309
        %v2543 = vunpack.c.h.b16 %v1309
        %v2544 = vunpack.c.l.b16 %v1310
        %v2545 = vunpack.c.h.b16 %v1310
        %v2546 = vunpack.c.l.b16 %v1311
        %v2547 = vunpack.c.h.b16 %v1311
        %v2548 = vunpack.c.l.b16 %v1312
        %v2549 = vunpack.c.h.b16 %v1312
        %v2550 = vunpack.c.l.b16 %v1313
        %v2551 = vunpack.c.h.b16 %v1313
        %v2552 = vunpack.c.l.b16 %v1314
        %v2553 = vunpack.c.h.b16 %v1314
        %v2554 = vunpack.c.l.b16 %v1315
        %v2555 = vunpack.c.h.b16 %v1315
        %v2556 = vunpack.c.l.b16 %v1316
        %v2557 = vunpack.c.h.b16 %v1316
        %v2558 = vunpack.c.l.b16 %v1317
        %v2559 = vunpack.c.h.b16 %v1317
        %v2560 = vunpack.c.l.b16 %v1318
        %v2561 = vunpack.c.h.b16 %v1318
        %v2562 = vunpack.c.l.b16 %v1319
        %v2563 = vunpack.c.h.b16 %v1319
        %v2564 = vunpack.c.l.b16 %v1320
        %v2565 = vunpack.c.h.b16 %v1320
        %v2566 = vunpack.c.l.b16 %v1321
        %v2567 = vunpack.c.h.b16 %v1321
        %v2568 = vunpack.c.l.b16 %v1322
        %v2569 = vunpack.c.h.b16 %v1322
        %v2570 = vunpack.c.l.b16 %v1323
        %v2571 = vunpack.c.h.b16 %v1323
        %v2572 = vunpack.c.l.b16 %v1324
        %v2573 = vunpack.c.h.b16 %v1324
        %v2574 = vunpack.c.l.b16 %v1325
        %v2575 = vunpack.c.h.b16 %v1325
        %v2576 = vunpack.c.l.b16 %v1326
        %v2577 = vunpack.c.h.b16 %v1326
        %v2578 = vunpack.c.l.b16 %v1327
        %v2579 = vunpack.c.h.b16 %v1327
        %v2580 = vunpack.c.l.b16 %v1328
        %v2581 = vunpack.c.h.b16 %v1328
        %v2582 = vunpack.c.l.b16 %v1329
        %v2583 = vunpack.c.h.b16 %v1329
        %v2584 = vunpack.c.l.b16 %v1330
        %v2585 = vunpack.c.h.b16 %v1330
        %v2586 = vunpack.c.l.b16 %v1331
        %v2587 = vunpack.c.h.b16 %v1331
        %v2588 = vunpack.c.l.b16 %v1332
        %v2589 = vunpack.c.h.b16 %v1332
        %v2590 = vunpack.c.l.b16 %v1333
        %v2591 = vunpack.c.h.b16 %v1333
        %v2592 = vunpack.c.l.b16 %v1334
        %v2593 = vunpack.c.h.b16 %v1334
        %v2594 = vunpack.c.l.b16 %v1335
        %v2595 = vunpack.c.h.b16 %v1335
        %v2596 = vunpack.c.l.b16 %v1336
        %v2597 = vunpack.c.h.b16 %v1336
        %v2598 = vunpack.c.l.b16 %v1337
        %v2599 = vunpack.c.h.b16 %v1337
        %v2600 = vunpack.c.l.b16 %v1338
        %v2601 = vunpack.c.h.b16 %v1338
        %v2602 = vunpack.c.l.b16 %v1339
        %v2603 = vunpack.c.h.b16 %v1339
        %v2604 = vunpack.c.l.b16 %v1340
        %v2605 = vunpack.c.h.b16 %v1340
        %v2606 = vunpack.c.l.b16 %v1341
        %v2607 = vunpack.c.h.b16 %v1341
        %v2608 = vunpack.c.l.b16 %v1342
        %v2609 = vunpack.c.h.b16 %v1342
        %v2610 = vunpack.c.l.b16 %v1343
        %v2611 = vunpack.c.h.b16 %v1343
        %v2612 = vunpack.c.l.b16 %v1344
        %v2613 = vunpack.c.h.b16 %v1344
        %v2614 = vunpack.c.l.b16 %v1345
        %v2615 = vunpack.c.h.b16 %v1345
        %v2616 = vunpack.c.l.b16 %v1346
        %v2617 = vunpack.c.h.b16 %v1346
        %v2618 = vunpack.c.l.b16 %v1347
        %v2619 = vunpack.c.h.b16 %v1347
        %v2620 = vunpack.c.l.b16 %v1348
        %v2621 = vunpack.c.h.b16 %v1348
        %v2622 = vunpack.c.l.b16 %v1349
        %v2623 = vunpack.c.h.b16 %v1349
        %v2624 = vunpack.c.l.b16 %v1350
        %v2625 = vunpack.c.h.b16 %v1350
        %v2626 = vunpack.c.l.b16 %v1351
        %v2627 = vunpack.c.h.b16 %v1351
        %v2628 = vunpack.c.l.b16 %v1352
        %v2629 = vunpack.c.h.b16 %v1352
        %v2630 = vunpack.c.l.b16 %v1353
        %v2631 = vunpack.c.h.b16 %v1353
        %v2632 = vpack.c.b16 %v1888, %v1864
        %v2633 = vpack.c.b16 %v1889, %v1865
        %v2634 = vpack.c.b16 %v1890, %v1866
        %v2635 = vpack.c.b16 %v1891, %v1867
        %v2636 = vpack.c.b16 %v1892, %v1868
        %v2637 = vpack.c.b16 %v1893, %v1869
        %v2638 = vpack.c.b16 %v1894, %v1870
        %v2639 = vpack.c.b16 %v1895, %v1871
        %v2640 = vpack.c.b16 %v1896, %v1872
        %v2641 = vpack.c.b16 %v1897, %v1873
        %v2642 = vpack.c.b16 %v1898, %v1874
        %v2643 = vpack.c.b16 %v1899, %v1875
        %v2644 = vpack.c.b16 %v1900, %v1876
        %v2645 = vpack.c.b16 %v1901, %v1877
        %v2646 = vpack.c.b16 %v1902, %v1878
        %v2647 = vpack.c.b16 %v1903, %v1879
        %v2648 = vpack.c.b16 %v1904, %v1880
        %v2649 = vpack.c.b16 %v1905, %v1881
        %v2650 = vpack.c.b16 %v1906, %v1882
        %v2651 = vpack.c.b16 %v1907, %v1883
        %v2652 = vpack.c.b16 %v1908, %v1884
        %v2653 = vpack.c.b16 %v1909, %v1885
        %v2654 = vpack.c.b16 %v1910, %v1886
        %v2655 = vpack.c.b16 %v1911, %v1887
        %v2656 = vpack.c.b16 %v1936, %v1912
        %v2657 = vpack.c.b16 %v1937, %v1913
        %v2658 = vpack.c.b16 %v1938, %v1914
        %v2659 = vpack.c.b16 %v1939, %v1915
        %v2660 = vpack.c.b16 %v1940, %v1916
        %v2661 = vpack.c.b16 %v1941, %v1917
        %v2662 = vpack.c.b16 %v1942, %v1918
        %v2663 = vpack.c.b16 %v1943, %v1919
        %v2664 = vpack.c.b16 %v1944, %v1920
        %v2665 = vpack.c.b16 %v1945, %v1921
        %v2666 = vpack.c.b16 %v1946, %v1922
        %v2667 = vpack.c.b16 %v1947, %v1923
        %v2668 = vpack.c.b16 %v1948, %v1924
        %v2669 = vpack.c.b16 %v1949, %v1925
        %v2670 = vpack.c.b16 %v1950, %v1926
        %v2671 = vpack.c.b16 %v1951, %v1927
        %v2672 = vpack.c.b16 %v1952, %v1928
        %v2673 = vpack.c.b16 %v1953, %v1929
        %v2674 = vpack.c.b16 %v1954, %v1930
        %v2675 = vpack.c.b16 %v1955, %v1931
        %v2676 = vpack.c.b16 %v1956, %v1932
        %v2677 = vpack.c.b16 %v1957, %v1933
        %v2678 = vpack.c.b16 %v1958, %v1934
        %v2679 = vpack.c.b16 %v1959, %v1935
        %v2680 = vpack.c.b16 %v1984, %v1960
        %v2681 = vpack.c.b16 %v1985, %v1961
        %v2682 = vpack.c.b16 %v1986, %v1962
        %v2683 = vpack.c.b16 %v1987, %v1963
        %v2684 = vpack.c.b16 %v1988, %v1964
        %v2685 = vpack.c.b16 %v1989, %v1965
        %v2686 = vpack.c.b16 %v1990, %v1966
        %v2687 = vpack.c.b16 %v1991, %v1967
        %v2688 = vpack.c.b16 %v1992, %v1968
        %v2689 = vpack.c.b16 %v1993, %v1969
        %v2690 = vpack.c.b16 %v1994, %v1970
        %v2691 = vpack.c.b16 %v1995, %v1971
        %v2692 = vpack.c.b16 %v1996, %v1972
        %v2693 = vpack.c.b16 %v1997, %v1973
        %v2694 = vpack.c.b16 %v1998, %v1974
        %v2695 = vpack.c.b16 %v1999, %v1975
        %v2696 = vpack.c.b16 %v2000, %v1976
        %v2697 = vpack.c.b16 %v2001, %v1977
        %v2698 = vpack.c.b16 %v2002, %v1978
        %v2699 = vpack.c.b16 %v2003, %v1979
        %v2700 = vpack.c.b16 %v2004, %v1980
        %v2701 = vpack.c.b16 %v2005, %v1981
        %v2702 = vpack.c.b16 %v2006, %v1982
        %v2703 = vpack.c.b16 %v2007, %v1983
        %v2704 = vpack.c.b16 %v2032, %v2008
        %v2705 = vpack.c.b16 %v2033, %v2009
        %v2706 = vpack.c.b16 %v2034, %v2010
        %v2707 = vpack.c.b16 %v2035, %v2011
        %v2708 = vpack.c.b16 %v2036, %v2012
        %v2709 = vpack.c.b16 %v2037, %v2013
        %v2710 = vpack.c.b16 %v2038, %v2014
        %v2711 = vpack.c.b16 %v2039, %v2015
        %v2712 = vpack.c.b16 %v2040, %v2016
        %v2713 = vpack.c.b16 %v2041, %v2017
        %v2714 = vpack.c.b16 %v2042, %v2018
        %v2715 = vpack.c.b16 %v2043, %v2019
        %v2716 = vpack.c.b16 %v2044, %v2020
        %v2717 = vpack.c.b16 %v2045, %v2021
        %v2718 = vpack.c.b16 %v2046, %v2022
        %v2719 = vpack.c.b16 %v2047, %v2023
        %v2720 = vpack.c.b16 %v2048, %v2024
        %v2721 = vpack.c.b16 %v2049, %v2025
        %v2722 = vpack.c.b16 %v2050, %v2026
        %v2723 = vpack.c.b16 %v2051, %v2027
        %v2724 = vpack.c.b16 %v2052, %v2028
        %v2725 = vpack.c.b16 %v2053, %v2029
        %v2726 = vpack.c.b16 %v2054, %v2030
        %v2727 = vpack.c.b16 %v2055, %v2031
        %v2728 = vpack.c.b16 %v2080, %v2056
        %v2729 = vpack.c.b16 %v2081, %v2057
        %v2730 = vpack.c.b16 %v2082, %v2058
        %v2731 = vpack.c.b16 %v2083, %v2059
        %v2732 = vpack.c.b16 %v2084, %v2060
        %v2733 = vpack.c.b16 %v2085, %v2061
        %v2734 = vpack.c.b16 %v2086, %v2062
        %v2735 = vpack.c.b16 %v2087, %v2063
        %v2736 = vpack.c.b16 %v2088, %v2064
        %v2737 = vpack.c.b16 %v2089, %v2065
        %v2738 = vpack.c.b16 %v2090, %v2066
        %v2739 = vpack.c.b16 %v2091, %v2067
        %v2740 = vpack.c.b16 %v2092, %v2068
        %v2741 = vpack.c.b16 %v2093, %v2069
        %v2742 = vpack.c.b16 %v2094, %v2070
        %v2743 = vpack.c.b16 %v2095, %v2071
        %v2744 = vpack.c.b16 %v2096, %v2072
        %v2745 = vpack.c.b16 %v2097, %v2073
        %v2746 = vpack.c.b16 %v2098, %v2074
        %v2747 = vpack.c.b16 %v2099, %v2075
        %v2748 = vpack.c.b16 %v2100, %v2076
        %v2749 = vpack.c.b16 %v2101, %v2077
        %v2750 = vpack.c.b16 %v2102, %v2078
        %v2751 = vpack.c.b16 %v2103, %v2079
        %v2752 = vpack.c.b16 %v2128, %v2104
        %v2753 = vpack.c.b16 %v2129, %v2105
        %v2754 = vpack.c.b16 %v2130, %v2106
        %v2755 = vpack.c.b16 %v2131, %v2107
        %v2756 = vpack.c.b16 %v2132, %v2108
        %v2757 = vpack.c.b16 %v2133, %v2109
        %v2758 = vpack.c.b16 %v2134, %v2110
        %v2759 = vpack.c.b16 %v2135, %v2111
        %v2760 = vpack.c.b16 %v2136, %v2112
        %v2761 = vpack.c.b16 %v2137, %v2113
        %v2762 = vpack.c.b16 %v2138, %v2114
        %v2763 = vpack.c.b16 %v2139, %v2115
        %v2764 = vpack.c.b16 %v2140, %v2116
        %v2765 = vpack.c.b16 %v2141, %v2117
        %v2766 = vpack.c.b16 %v2142, %v2118
        %v2767 = vpack.c.b16 %v2143, %v2119
        %v2768 = vpack.c.b16 %v2144, %v2120
        %v2769 = vpack.c.b16 %v2145, %v2121
        %v2770 = vpack.c.b16 %v2146, %v2122
        %v2771 = vpack.c.b16 %v2147, %v2123
        %v2772 = vpack.c.b16 %v2148, %v2124
        %v2773 = vpack.c.b16 %v2149, %v2125
        %v2774 = vpack.c.b16 %v2150, %v2126
        %v2775 = vpack.c.b16 %v2151, %v2127
        %v2776 = vpack.c.b16 %v2176, %v2152
        %v2777 = vpack.c.b16 %v2177, %v2153
        %v2778 = vpack.c.b16 %v2178, %v2154
        %v2779 = vpack.c.b16 %v2179, %v2155
        %v2780 = vpack.c.b16 %v2180, %v2156
        %v2781 = vpack.c.b16 %v2181, %v2157
        %v2782 = vpack.c.b16 %v2182, %v2158
        %v2783 = vpack.c.b16 %v2183, %v2159
        %v2784 = vpack.c.b16 %v2184, %v2160
        %v2785 = vpack.c.b16 %v2185, %v2161
        %v2786 = vpack.c.b16 %v2186, %v2162
        %v2787 = vpack.c.b16 %v2187, %v2163
        %v2788 = vpack.c.b16 %v2188, %v2164
        %v2789 = vpack.c.b16 %v2189, %v2165
        %v2790 = vpack.c.b16 %v2190, %v2166
        %v2791 = vpack.c.b16 %v2191, %v2167
        %v2792 = vpack.c.b16 %v2192, %v2168
        %v2793 = vpack.c.b16 %v2193, %v2169
        %v2794 = vpack.c.b16 %v2194, %v2170
        %v2795 = vpack.c.b16 %v2195, %v2171
        %v2796 = vpack.c.b16 %v2196, %v2172
        %v2797 = vpack.c.b16 %v2197, %v2173
        %v2798 = vpack.c.b16 %v2198, %v2174
        %v2799 = vpack.c.b16 %v2199, %v2175
        %v2800 = vpack.c.b16 %v2224, %v2200
        %v2801 = vpack.c.b16 %v2225, %v2201
        %v2802 = vpack.c.b16 %v2226, %v2202
        %v2803 = vpack.c.b16 %v2227, %v2203
        %v2804 = vpack.c.b16 %v2228, %v2204
        %v2805 = vpack.c.b16 %v2229, %v2205
        %v2806 = vpack.c.b16 %v2230, %v2206
        %v2807 = vpack.c.b16 %v2231, %v2207
        %v2808 = vpack.c.b16 %v2232, %v2208
        %v2809 = vpack.c.b16 %v2233, %v2209
        %v2810 = vpack.c.b16 %v2234, %v2210
        %v2811 = vpack.c.b16 %v2235, %v2211
        %v2812 = vpack.c.b16 %v2236, %v2212
        %v2813 = vpack.c.b16 %v2237, %v2213
        %v2814 = vpack.c.b16 %v2238, %v2214
        %v2815 = vpack.c.b16 %v2239, %v2215
        %v2816 = vpack.c.b16 %v2240, %v2216
        %v2817 = vpack.c.b16 %v2241, %v2217
        %v2818 = vpack.c.b16 %v2242, %v2218
        %v2819 = vpack.c.b16 %v2243, %v2219
        %v2820 = vpack.c.b16 %v2244, %v2220
        %v2821 = vpack.c.b16 %v2245, %v2221
        %v2822 = vpack.c.b16 %v2246, %v2222
        %v2823 = vpack.c.b16 %v2247, %v2223
        %v2824 = vpack.c.b16 %v2272, %v2248
        %v2825 = vpack.c.b16 %v2273, %v2249
        %v2826 = vpack.c.b16 %v2274, %v2250
        %v2827 = vpack.c.b16 %v2275, %v2251
        %v2828 = vpack.c.b16 %v2276, %v2252
        %v2829 = vpack.c.b16 %v2277, %v2253
        %v2830 = vpack.c.b16 %v2278, %v2254
        %v2831 = vpack.c.b16 %v2279, %v2255
        %v2832 = vpack.c.b16 %v2280, %v2256
        %v2833 = vpack.c.b16 %v2281, %v2257
        %v2834 = vpack.c.b16 %v2282, %v2258
        %v2835 = vpack.c.b16 %v2283, %v2259
        %v2836 = vpack.c.b16 %v2284, %v2260
        %v2837 = vpack.c.b16 %v2285, %v2261
        %v2838 = vpack.c.b16 %v2286, %v2262
        %v2839 = vpack.c.b16 %v2287, %v2263
        %v2840 = vpack.c.b16 %v2288, %v2264
        %v2841 = vpack.c.b16 %v2289, %v2265
        %v2842 = vpack.c.b16 %v2290, %v2266
        %v2843 = vpack.c.b16 %v2291, %v2267
        %v2844 = vpack.c.b16 %v2292, %v2268
        %v2845 = vpack.c.b16 %v2293, %v2269
        %v2846 = vpack.c.b16 %v2294, %v2270
        %v2847 = vpack.c.b16 %v2295, %v2271
        %v2848 = vpack.c.b16 %v2320, %v2296
        %v2849 = vpack.c.b16 %v2321, %v2297
        %v2850 = vpack.c.b16 %v2322, %v2298
        %v2851 = vpack.c.b16 %v2323, %v2299
        %v2852 = vpack.c.b16 %v2324, %v2300
        %v2853 = vpack.c.b16 %v2325, %v2301
        %v2854 = vpack.c.b16 %v2326, %v2302
        %v2855 = vpack.c.b16 %v2327, %v2303
        %v2856 = vpack.c.b16 %v2328, %v2304
        %v2857 = vpack.c.b16 %v2329, %v2305
        %v2858 = vpack.c.b16 %v2330, %v2306
        %v2859 = vpack.c.b16 %v2331, %v2307
        %v2860 = vpack.c.b16 %v2332, %v2308
        %v2861 = vpack.c.b16 %v2333, %v2309
        %v2862 = vpack.c.b16 %v2334, %v2310
        %v2863 = vpack.c.b16 %v2335, %v2311
        %v2864 = vpack.c.b16 %v2336, %v2312
        %v2865 = vpack.c.b16 %v2337, %v2313
        %v2866 = vpack.c.b16 %v2338, %v2314
        %v2867 = vpack.c.b16 %v2339, %v2315
        %v2868 = vpack.c.b16 %v2340, %v2316
        %v2869 = vpack.c.b16 %v2341, %v2317
        %v2870 = vpack.c.b16 %v2342, %v2318
        %v2871 = vpack.c.b16 %v2343, %v2319
        %v2872 = vpack.c.b16 %v2368, %v2344
        %v2873 = vpack.c.b16 %v2369, %v2345
        %v2874 = vpack.c.b16 %v2370, %v2346
        %v2875 = vpack.c.b16 %v2371, %v2347
        %v2876 = vpack.c.b16 %v2372, %v2348
        %v2877 = vpack.c.b16 %v2373, %v2349
        %v2878 = vpack.c.b16 %v2374, %v2350
        %v2879 = vpack.c.b16 %v2375, %v2351
        %v2880 = vpack.c.b16 %v2376, %v2352
        %v2881 = vpack.c.b16 %v2377, %v2353
        %v2882 = vpack.c.b16 %v2378, %v2354
        %v2883 = vpack.c.b16 %v2379, %v2355
        %v2884 = vpack.c.b16 %v2380, %v2356
        %v2885 = vpack.c.b16 %v2381, %v2357
        %v2886 = vpack.c.b16 %v2382, %v2358
        %v2887 = vpack.c.b16 %v2383, %v2359
        %v2888 = vpack.c.b16 %v2384, %v2360
        %v2889 = vpack.c.b16 %v2385, %v2361
        %v2890 = vpack.c.b16 %v2386, %v2362
        %v2891 = vpack.c.b16 %v2387, %v2363
        %v2892 = vpack.c.b16 %v2388, %v2364
        %v2893 = vpack.c.b16 %v2389, %v2365
        %v2894 = vpack.c.b16 %v2390, %v2366
        %v2895 = vpack.c.b16 %v2391, %v2367
        %v2896 = vpack.c.b16 %v2416, %v2392
        %v2897 = vpack.c.b16 %v2417, %v2393
        %v2898 = vpack.c.b16 %v2418, %v2394
        %v2899 = vpack.c.b16 %v2419, %v2395
        %v2900 = vpack.c.b16 %v2420, %v2396
        %v2901 = vpack.c.b16 %v2421, %v2397
        %v2902 = vpack.c.b16 %v2422, %v2398
        %v2903 = vpack.c.b16 %v2423, %v2399
        %v2904 = vpack.c.b16 %v2424, %v2400
        %v2905 = vpack.c.b16 %v2425, %v2401
        %v2906 = vpack.c.b16 %v2426, %v2402
        %v2907 = vpack.c.b16 %v2427, %v2403
        %v2908 = vpack.c.b16 %v2428, %v2404
        %v2909 = vpack.c.b16 %v2429, %v2405
        %v2910 = vpack.c.b16 %v2430, %v2406
        %v2911 = vpack.c.b16 %v2431, %v2407
        %v2912 = vpack.c.b16 %v2432, %v2408
        %v2913 = vpack.c.b16 %v2433, %v2409
        %v2914 = vpack.c.b16 %v2434, %v2410
        %v2915 = vpack.c.b16 %v2435, %v2411
        %v2916 = vpack.c.b16 %v2436, %v2412
        %v2917 = vpack.c.b16 %v2437, %v2413
        %v2918 = vpack.c.b16 %v2438, %v2414
        %v2919 = vpack.c.b16 %v2439, %v2415
        %v2920 = vpack.c.b16 %v2464, %v2440
        %v2921 = vpack.c.b16 %v2465, %v2441
        %v2922 = vpack.c.b16 %v2466, %v2442
        %v2923 = vpack.c.b16 %v2467, %v2443
        %v2924 = vpack.c.b16 %v2468, %v2444
        %v2925 = vpack.c.b16 %v2469, %v2445
        %v2926 = vpack.c.b16 %v2470, %v2446
        %v2927 = vpack.c.b16 %v2471, %v2447
        %v2928 = vpack.c.b16 %v2472, %v2448
        %v2929 = vpack.c.b16 %v2473, %v2449
        %v2930 = vpack.c.b16 %v2474, %v2450
        %v2931 = vpack.c.b16 %v2475, %v2451
        %v2932 = vpack.c.b16 %v2476, %v2452
        %v2933 = vpack.c.b16 %v2477, %v2453
        %v2934 = vpack.c.b16 %v2478, %v2454
        %v2935 = vpack.c.b16 %v2479, %v2455
        %v2936 = vpack.c.b16 %v2480, %v2456
        %v2937 = vpack.c.b16 %v2481, %v2457
        %v2938 = vpack.c.b16 %v2482, %v2458
        %v2939 = vpack.c.b16 %v2483, %v2459
        %v2940 = vpack.c.b16 %v2484, %v2460
        %v2941 = vpack.c.b16 %v2485, %v2461
        %v2942 = vpack.c.b16 %v2486, %v2462
        %v2943 = vpack.c.b16 %v2487, %v2463
        %v2944 = vpack.c.b16 %v2512, %v2488
        %v2945 = vpack.c.b16 %v2513, %v2489
        %v2946 = vpack.c.b16 %v2514, %v2490
        %v2947 = vpack.c.b16 %v2515, %v2491
        %v2948 = vpack.c.b16 %v2516, %v2492
        %v2949 = vpack.c.b16 %v2517, %v2493
        %v2950 = vpack.c.b16 %v2518, %v2494
        %v2951 = vpack.c.b16 %v2519, %v2495
        %v2952 = vpack.c.b16 %v2520, %v2496
        %v2953 = vpack.c.b16 %v2521, %v2497
        %v2954 = vpack.c.b16 %v2522, %v2498
        %v2955 = vpack.c.b16 %v2523, %v2499
        %v2956 = vpack.c.b16 %v2524, %v2500
        %v2957 = vpack.c.b16 %v2525, %v2501
        %v2958 = vpack.c.b16 %v2526, %v2502
        %v2959 = vpack.c.b16 %v2527, %v2503
        %v2960 = vpack.c.b16 %v2528, %v2504
        %v2961 = vpack.c.b16 %v2529, %v2505
        %v2962 = vpack.c.b16 %v2530, %v2506
        %v2963 = vpack.c.b16 %v2531, %v2507
        %v2964 = vpack.c.b16 %v2532, %v2508
        %v2965 = vpack.c.b16 %v2533, %v2509
        %v2966 = vpack.c.b16 %v2534, %v2510
        %v2967 = vpack.c.b16 %v2535, %v2511
        %v2968 = vpack.c.b16 %v2560, %v2536
        %v2969 = vpack.c.b16 %v2561, %v2537
        %v2970 = vpack.c.b16 %v2562, %v2538
        %v2971 = vpack.c.b16 %v2563, %v2539
        %v2972 = vpack.c.b16 %v2564, %v2540
        %v2973 = vpack.c.b16 %v2565, %v2541
        %v2974 = vpack.c.b16 %v2566, %v2542
        %v2975 = vpack.c.b16 %v2567, %v2543
        %v2976 = vpack.c.b16 %v2568, %v2544
        %v2977 = vpack.c.b16 %v2569, %v2545
        %v2978 = vpack.c.b16 %v2570, %v2546
        %v2979 = vpack.c.b16 %v2571, %v2547
        %v2980 = vpack.c.b16 %v2572, %v2548
        %v2981 = vpack.c.b16 %v2573, %v2549
        %v2982 = vpack.c.b16 %v2574, %v2550
        %v2983 = vpack.c.b16 %v2575, %v2551
        %v2984 = vpack.c.b16 %v2576, %v2552
        %v2985 = vpack.c.b16 %v2577, %v2553
        %v2986 = vpack.c.b16 %v2578, %v2554
        %v2987 = vpack.c.b16 %v2579, %v2555
        %v2988 = vpack.c.b16 %v2580, %v2556
        %v2989 = vpack.c.b16 %v2581, %v2557
        %v2990 = vpack.c.b16 %v2582, %v2558
        %v2991 = vpack.c.b16 %v2583, %v2559
        %v2992 = vpack.c.b16 %v2608, %v2584
        %v2993 = vpack.c.b16 %v2609, %v2585
        %v2994 = vpack.c.b16 %v2610, %v2586
        %v2995 = vpack.c.b16 %v2611, %v2587
        %v2996 = vpack.c.b16 %v2612, %v2588
        %v2997 = vpack.c.b16 %v2613, %v2589
        %v2998 = vpack.c.b16 %v2614, %v2590
        %v2999 = vpack.c.b16 %v2615, %v2591
        %v3000 = vpack.c.b16 %v2616, %v2592
        %v3001 = vpack.c.b16 %v2617, %v2593
        %v3002 = vpack.c.b16 %v2618, %v2594
        %v3003 = vpack.c.b16 %v2619, %v2595
        %v3004 = vpack.c.b16 %v2620, %v2596
        %v3005 = vpack.c.b16 %v2621, %v2597
        %v3006 = vpack.c.b16 %v2622, %v2598
        %v3007 = vpack.c.b16 %v2623, %v2599
        %v3008 = vpack.c.b16 %v2624, %v2600
        %v3009 = vpack.c.b16 %v2625, %v2601
        %v3010 = vpack.c.b16 %v2626, %v2602
        %v3011 = vpack.c.b16 %v2627, %v2603
        %v3012 = vpack.c.b16 %v2628, %v2604
        %v3013 = vpack.c.b16 %v2629, %v2605
        %v3014 = vpack.c.b16 %v2630, %v2606
        %v3015 = vpack.c.b16 %v2631, %v2607
        %3400 = vmatprep.subr.bf16.mxu0 %v2633
        %3401 = vmatpush1.bf16.msra.mxu0 %v2632
        %3402 = vmatprep.subr.bf16.mxu0 %v2657
        %3403 = vmatpush1.bf16.msra.mxu0 %v2656
        %3404 = vmatprep.subr.bf16.mxu0 %v2681
        %3405 = vmatpush1.bf16.msra.mxu0 %v2680
        %3406 = vmatprep.subr.bf16.mxu0 %v2705
        %3407 = vmatpush1.bf16.msra.mxu0 %v2704
        %3408 = vmatprep.subr.bf16.mxu0 %v2729
        %3409 = vmatpush1.bf16.msra.mxu0 %v2728
        %3410 = vmatprep.subr.bf16.mxu0 %v2753
        %3411 = vmatpush1.bf16.msra.mxu0 %v2752
        %3412 = vmatprep.subr.bf16.mxu0 %v2777
        %3413 = vmatpush1.bf16.msra.mxu0 %v2776
        %3414 = vmatprep.subr.bf16.mxu0 %v2801
        %3415 = vmatpush1.bf16.msra.mxu0 %v2800
        %3416 = vmatprep.subr.bf16.mxu0 %v2825
        %3417 = vmatpush1.bf16.msra.mxu0 %v2824
        %3418 = vmatprep.subr.bf16.mxu0 %v2849
        %3419 = vmatpush1.bf16.msra.mxu0 %v2848
        %3420 = vmatprep.subr.bf16.mxu0 %v2873
        %3421 = vmatpush1.bf16.msra.mxu0 %v2872
        %3422 = vmatprep.subr.bf16.mxu0 %v2897
        %3423 = vmatpush1.bf16.msra.mxu0 %v2896
        %3424 = vmatprep.subr.bf16.mxu0 %v2921
        %3425 = vmatpush1.bf16.msra.mxu0 %v2920
        %3426 = vmatprep.subr.bf16.mxu0 %v2945
        %3427 = vmatpush1.bf16.msra.mxu0 %v2944
        %3428 = vmatprep.subr.bf16.mxu0 %v2969
        %3429 = vmatpush1.bf16.msra.mxu0 %v2968
        %3430 = vmatprep.subr.bf16.mxu0 %v2993
        %3431 = vmatpush1.bf16.msra.mxu0 %v2992
        %3432 = vmatprep.mubr.bf16.mxu0 %v969
        %3433 = vmatmul.mubr.bf16.gmra.mrb[0].mxu0 %v968
        %v3434 = vpop.f32.mrb[0].mxu0
        %v3435 = vadd.f32 %v1363, %v3434
        %v3436 = vpop.f32.mrb[0].mxu0
        %v3437 = vadd.f32 %v1367, %v3436
        %v3438 = vpop.f32.mrb[0].mxu0
        %v3439 = vpop.f32.mrb[0].mxu0
        %3440 = vdwg.mxu0
        %3441 = vmatprep.subr.bf16.mxu0 %v2635
        %3442 = vmatpush1.bf16.msra.mxu0 %v2634
        %3443 = vmatprep.subr.bf16.mxu0 %v2659
        %3444 = vmatpush1.bf16.msra.mxu0 %v2658
        %3445 = vmatprep.subr.bf16.mxu0 %v2683
        %3446 = vmatpush1.bf16.msra.mxu0 %v2682
        %3447 = vmatprep.subr.bf16.mxu0 %v2707
        %3448 = vmatpush1.bf16.msra.mxu0 %v2706
        %3449 = vmatprep.subr.bf16.mxu0 %v2731
        %3450 = vmatpush1.bf16.msra.mxu0 %v2730
        %3451 = vmatprep.subr.bf16.mxu0 %v2755
        %3452 = vmatpush1.bf16.msra.mxu0 %v2754
        %3453 = vmatprep.subr.bf16.mxu0 %v2779
        %3454 = vmatpush1.bf16.msra.mxu0 %v2778
        %3455 = vmatprep.subr.bf16.mxu0 %v2803
        %3456 = vmatpush1.bf16.msra.mxu0 %v2802
        %3457 = vmatprep.subr.bf16.mxu0 %v2827
        %3458 = vmatpush1.bf16.msra.mxu0 %v2826
        %3459 = vmatprep.subr.bf16.mxu0 %v2851
        %3460 = vmatpush1.bf16.msra.mxu0 %v2850
        %3461 = vmatprep.subr.bf16.mxu0 %v2875
        %3462 = vmatpush1.bf16.msra.mxu0 %v2874
        %3463 = vmatprep.subr.bf16.mxu0 %v2899
        %3464 = vmatpush1.bf16.msra.mxu0 %v2898
        %3465 = vmatprep.subr.bf16.mxu0 %v2923
        %3466 = vmatpush1.bf16.msra.mxu0 %v2922
        %3467 = vmatprep.subr.bf16.mxu0 %v2947
        %3468 = vmatpush1.bf16.msra.mxu0 %v2946
        %3469 = vmatprep.subr.bf16.mxu0 %v2971
        %3470 = vmatpush1.bf16.msra.mxu0 %v2970
        %3471 = vmatprep.subr.bf16.mxu0 %v2995
        %3472 = vmatpush1.bf16.msra.mxu0 %v2994
        %3473 = vmatprep.mubr.bf16.mxu0 %v969
        %3474 = vmatmul.mubr.bf16.gmra.mrb[0].mxu0 %v968
        %v3475 = vpop.f32.mrb[0].mxu0
        %v3476 = vadd.f32 %v1371, %v3475
        %v3477 = vpop.f32.mrb[0].mxu0
        %v3478 = vadd.f32 %v1375, %v3477
        %v3479 = vpop.f32.mrb[0].mxu0
        %v3480 = vpop.f32.mrb[0].mxu0
        %3481 = vdwg.mxu0
        %3482 = vmatprep.subr.bf16.mxu0 %v2637
        %3483 = vmatpush1.bf16.msra.mxu0 %v2636
        %3484 = vmatprep.subr.bf16.mxu0 %v2661
        %3485 = vmatpush1.bf16.msra.mxu0 %v2660
        %3486 = vmatprep.subr.bf16.mxu0 %v2685
        %3487 = vmatpush1.bf16.msra.mxu0 %v2684
        %3488 = vmatprep.subr.bf16.mxu0 %v2709
        %3489 = vmatpush1.bf16.msra.mxu0 %v2708
        %3490 = vmatprep.subr.bf16.mxu0 %v2733
        %3491 = vmatpush1.bf16.msra.mxu0 %v2732
        %3492 = vmatprep.subr.bf16.mxu0 %v2757
        %3493 = vmatpush1.bf16.msra.mxu0 %v2756
        %3494 = vmatprep.subr.bf16.mxu0 %v2781
        %3495 = vmatpush1.bf16.msra.mxu0 %v2780
        %3496 = vmatprep.subr.bf16.mxu0 %v2805
        %3497 = vmatpush1.bf16.msra.mxu0 %v2804
        %3498 = vmatprep.subr.bf16.mxu0 %v2829
        %3499 = vmatpush1.bf16.msra.mxu0 %v2828
        %3500 = vmatprep.subr.bf16.mxu0 %v2853
        %3501 = vmatpush1.bf16.msra.mxu0 %v2852
        %3502 = vmatprep.subr.bf16.mxu0 %v2877
        %3503 = vmatpush1.bf16.msra.mxu0 %v2876
        %3504 = vmatprep.subr.bf16.mxu0 %v2901
        %3505 = vmatpush1.bf16.msra.mxu0 %v2900
        %3506 = vmatprep.subr.bf16.mxu0 %v2925
        %3507 = vmatpush1.bf16.msra.mxu0 %v2924
        %3508 = vmatprep.subr.bf16.mxu0 %v2949
        %3509 = vmatpush1.bf16.msra.mxu0 %v2948
        %3510 = vmatprep.subr.bf16.mxu0 %v2973
        %3511 = vmatpush1.bf16.msra.mxu0 %v2972
        %3512 = vmatprep.subr.bf16.mxu0 %v2997
        %3513 = vmatpush1.bf16.msra.mxu0 %v2996
        %3514 = vmatprep.mubr.bf16.mxu0 %v969
        %3515 = vmatmul.mubr.bf16.gmra.mrb[0].mxu0 %v968
        %v3516 = vpop.f32.mrb[0].mxu0
        %v3517 = vadd.f32 %v1379, %v3516
        %v3518 = vpop.f32.mrb[0].mxu0
        %v3519 = vadd.f32 %v1383, %v3518
        %v3520 = vpop.f32.mrb[0].mxu0
        %v3521 = vpop.f32.mrb[0].mxu0
        %3522 = vdwg.mxu0
        %3523 = vmatprep.subr.bf16.mxu0 %v2639
        %3524 = vmatpush1.bf16.msra.mxu0 %v2638
        %3525 = vmatprep.subr.bf16.mxu0 %v2663
        %3526 = vmatpush1.bf16.msra.mxu0 %v2662
        %3527 = vmatprep.subr.bf16.mxu0 %v2687
        %3528 = vmatpush1.bf16.msra.mxu0 %v2686
        %3529 = vmatprep.subr.bf16.mxu0 %v2711
        %3530 = vmatpush1.bf16.msra.mxu0 %v2710
        %3531 = vmatprep.subr.bf16.mxu0 %v2735
        %3532 = vmatpush1.bf16.msra.mxu0 %v2734
        %3533 = vmatprep.subr.bf16.mxu0 %v2759
        %3534 = vmatpush1.bf16.msra.mxu0 %v2758
        %3535 = vmatprep.subr.bf16.mxu0 %v2783
        %3536 = vmatpush1.bf16.msra.mxu0 %v2782
        %3537 = vmatprep.subr.bf16.mxu0 %v2807
        %3538 = vmatpush1.bf16.msra.mxu0 %v2806
        %3539 = vmatprep.subr.bf16.mxu0 %v2831
        %3540 = vmatpush1.bf16.msra.mxu0 %v2830
        %3541 = vmatprep.subr.bf16.mxu0 %v2855
        %3542 = vmatpush1.bf16.msra.mxu0 %v2854
        %3543 = vmatprep.subr.bf16.mxu0 %v2879
        %3544 = vmatpush1.bf16.msra.mxu0 %v2878
        %3545 = vmatprep.subr.bf16.mxu0 %v2903
        %3546 = vmatpush1.bf16.msra.mxu0 %v2902
        %3547 = vmatprep.subr.bf16.mxu0 %v2927
        %3548 = vmatpush1.bf16.msra.mxu0 %v2926
        %3549 = vmatprep.subr.bf16.mxu0 %v2951
        %3550 = vmatpush1.bf16.msra.mxu0 %v2950
        %3551 = vmatprep.subr.bf16.mxu0 %v2975
        %3552 = vmatpush1.bf16.msra.mxu0 %v2974
        %3553 = vmatprep.subr.bf16.mxu0 %v2999
        %3554 = vmatpush1.bf16.msra.mxu0 %v2998
        %3555 = vmatprep.mubr.bf16.mxu0 %v969
        %3556 = vmatmul.mubr.bf16.gmra.mrb[0].mxu0 %v968
        %v3557 = vpop.f32.mrb[0].mxu0
        %v3558 = vadd.f32 %v1387, %v3557
        %v3559 = vpop.f32.mrb[0].mxu0
        %v3560 = vadd.f32 %v1391, %v3559
        %v3561 = vpop.f32.mrb[0].mxu0
        %v3562 = vpop.f32.mrb[0].mxu0
        %3563 = vdwg.mxu0
        %3564 = vmatprep.subr.bf16.mxu0 %v2641
        %3565 = vmatpush1.bf16.msra.mxu0 %v2640
        %3566 = vmatprep.subr.bf16.mxu0 %v2665
        %3567 = vmatpush1.bf16.msra.mxu0 %v2664
        %3568 = vmatprep.subr.bf16.mxu0 %v2689
        %3569 = vmatpush1.bf16.msra.mxu0 %v2688
        %3570 = vmatprep.subr.bf16.mxu0 %v2713
        %3571 = vmatpush1.bf16.msra.mxu0 %v2712
        %3572 = vmatprep.subr.bf16.mxu0 %v2737
        %3573 = vmatpush1.bf16.msra.mxu0 %v2736
        %3574 = vmatprep.subr.bf16.mxu0 %v2761
        %3575 = vmatpush1.bf16.msra.mxu0 %v2760
        %3576 = vmatprep.subr.bf16.mxu0 %v2785
        %3577 = vmatpush1.bf16.msra.mxu0 %v2784
        %3578 = vmatprep.subr.bf16.mxu0 %v2809
        %3579 = vmatpush1.bf16.msra.mxu0 %v2808
        %3580 = vmatprep.subr.bf16.mxu0 %v2833
        %3581 = vmatpush1.bf16.msra.mxu0 %v2832
        %3582 = vmatprep.subr.bf16.mxu0 %v2857
        %3583 = vmatpush1.bf16.msra.mxu0 %v2856
        %3584 = vmatprep.subr.bf16.mxu0 %v2881
        %3585 = vmatpush1.bf16.msra.mxu0 %v2880
        %3586 = vmatprep.subr.bf16.mxu0 %v2905
        %3587 = vmatpush1.bf16.msra.mxu0 %v2904
        %3588 = vmatprep.subr.bf16.mxu0 %v2929
        %3589 = vmatpush1.bf16.msra.mxu0 %v2928
        %3590 = vmatprep.subr.bf16.mxu0 %v2953
        %3591 = vmatpush1.bf16.msra.mxu0 %v2952
        %3592 = vmatprep.subr.bf16.mxu0 %v2977
        %3593 = vmatpush1.bf16.msra.mxu0 %v2976
        %3594 = vmatprep.subr.bf16.mxu0 %v3001
        %3595 = vmatpush1.bf16.msra.mxu0 %v3000
        %3596 = vmatprep.mubr.bf16.mxu0 %v969
        %3597 = vmatmul.mubr.bf16.gmra.mrb[0].mxu0 %v968
        %v3598 = vpop.f32.mrb[0].mxu0
        %v3599 = vadd.f32 %v1395, %v3598
        %v3600 = vpop.f32.mrb[0].mxu0
        %v3601 = vadd.f32 %v1399, %v3600
        %v3602 = vpop.f32.mrb[0].mxu0
        %v3603 = vpop.f32.mrb[0].mxu0
        %3604 = vdwg.mxu0
        %3605 = vmatprep.subr.bf16.mxu0 %v2643
        %3606 = vmatpush1.bf16.msra.mxu0 %v2642
        %3607 = vmatprep.subr.bf16.mxu0 %v2667
        %3608 = vmatpush1.bf16.msra.mxu0 %v2666
        %3609 = vmatprep.subr.bf16.mxu0 %v2691
        %3610 = vmatpush1.bf16.msra.mxu0 %v2690
        %3611 = vmatprep.subr.bf16.mxu0 %v2715
        %3612 = vmatpush1.bf16.msra.mxu0 %v2714
        %3613 = vmatprep.subr.bf16.mxu0 %v2739
        %3614 = vmatpush1.bf16.msra.mxu0 %v2738
        %3615 = vmatprep.subr.bf16.mxu0 %v2763
        %3616 = vmatpush1.bf16.msra.mxu0 %v2762
        %3617 = vmatprep.subr.bf16.mxu0 %v2787
        %3618 = vmatpush1.bf16.msra.mxu0 %v2786
        %3619 = vmatprep.subr.bf16.mxu0 %v2811
        %3620 = vmatpush1.bf16.msra.mxu0 %v2810
        %3621 = vmatprep.subr.bf16.mxu0 %v2835
        %3622 = vmatpush1.bf16.msra.mxu0 %v2834
        %3623 = vmatprep.subr.bf16.mxu0 %v2859
        %3624 = vmatpush1.bf16.msra.mxu0 %v2858
        %3625 = vmatprep.subr.bf16.mxu0 %v2883
        %3626 = vmatpush1.bf16.msra.mxu0 %v2882
        %3627 = vmatprep.subr.bf16.mxu0 %v2907
        %3628 = vmatpush1.bf16.msra.mxu0 %v2906
        %3629 = vmatprep.subr.bf16.mxu0 %v2931
        %3630 = vmatpush1.bf16.msra.mxu0 %v2930
        %3631 = vmatprep.subr.bf16.mxu0 %v2955
        %3632 = vmatpush1.bf16.msra.mxu0 %v2954
        %3633 = vmatprep.subr.bf16.mxu0 %v2979
        %3634 = vmatpush1.bf16.msra.mxu0 %v2978
        %3635 = vmatprep.subr.bf16.mxu0 %v3003
        %3636 = vmatpush1.bf16.msra.mxu0 %v3002
        %3637 = vmatprep.mubr.bf16.mxu0 %v969
        %3638 = vmatmul.mubr.bf16.gmra.mrb[0].mxu0 %v968
        %v3639 = vpop.f32.mrb[0].mxu0
        %v3640 = vadd.f32 %v1403, %v3639
        %v3641 = vpop.f32.mrb[0].mxu0
        %v3642 = vadd.f32 %v1407, %v3641
        %v3643 = vpop.f32.mrb[0].mxu0
        %v3644 = vpop.f32.mrb[0].mxu0
        %3645 = vdwg.mxu0
        %3646 = vmatprep.subr.bf16.mxu0 %v2645
        %3647 = vmatpush1.bf16.msra.mxu0 %v2644
        %3648 = vmatprep.subr.bf16.mxu0 %v2669
        %3649 = vmatpush1.bf16.msra.mxu0 %v2668
        %3650 = vmatprep.subr.bf16.mxu0 %v2693
        %3651 = vmatpush1.bf16.msra.mxu0 %v2692
        %3652 = vmatprep.subr.bf16.mxu0 %v2717
        %3653 = vmatpush1.bf16.msra.mxu0 %v2716
        %3654 = vmatprep.subr.bf16.mxu0 %v2741
        %3655 = vmatpush1.bf16.msra.mxu0 %v2740
        %3656 = vmatprep.subr.bf16.mxu0 %v2765
        %3657 = vmatpush1.bf16.msra.mxu0 %v2764
        %3658 = vmatprep.subr.bf16.mxu0 %v2789
        %3659 = vmatpush1.bf16.msra.mxu0 %v2788
        %3660 = vmatprep.subr.bf16.mxu0 %v2813
        %3661 = vmatpush1.bf16.msra.mxu0 %v2812
        %3662 = vmatprep.subr.bf16.mxu0 %v2837
        %3663 = vmatpush1.bf16.msra.mxu0 %v2836
        %3664 = vmatprep.subr.bf16.mxu0 %v2861
        %3665 = vmatpush1.bf16.msra.mxu0 %v2860
        %3666 = vmatprep.subr.bf16.mxu0 %v2885
        %3667 = vmatpush1.bf16.msra.mxu0 %v2884
        %3668 = vmatprep.subr.bf16.mxu0 %v2909
        %3669 = vmatpush1.bf16.msra.mxu0 %v2908
        %3670 = vmatprep.subr.bf16.mxu0 %v2933
        %3671 = vmatpush1.bf16.msra.mxu0 %v2932
        %3672 = vmatprep.subr.bf16.mxu0 %v2957
        %3673 = vmatpush1.bf16.msra.mxu0 %v2956
        %3674 = vmatprep.subr.bf16.mxu0 %v2981
        %3675 = vmatpush1.bf16.msra.mxu0 %v2980
        %3676 = vmatprep.subr.bf16.mxu0 %v3005
        %3677 = vmatpush1.bf16.msra.mxu0 %v3004
        %3678 = vmatprep.mubr.bf16.mxu0 %v969
        %3679 = vmatmul.mubr.bf16.gmra.mrb[0].mxu0 %v968
        %v3680 = vpop.f32.mrb[0].mxu0
        %v3681 = vadd.f32 %v1411, %v3680
        %v3682 = vpop.f32.mrb[0].mxu0
        %v3683 = vadd.f32 %v1415, %v3682
        %v3684 = vpop.f32.mrb[0].mxu0
        %v3685 = vpop.f32.mrb[0].mxu0
        %3686 = vdwg.mxu0
        %3687 = vmatprep.subr.bf16.mxu0 %v2647
        %3688 = vmatpush1.bf16.msra.mxu0 %v2646
        %3689 = vmatprep.subr.bf16.mxu0 %v2671
        %3690 = vmatpush1.bf16.msra.mxu0 %v2670
        %3691 = vmatprep.subr.bf16.mxu0 %v2695
        %3692 = vmatpush1.bf16.msra.mxu0 %v2694
        %3693 = vmatprep.subr.bf16.mxu0 %v2719
        %3694 = vmatpush1.bf16.msra.mxu0 %v2718
        %3695 = vmatprep.subr.bf16.mxu0 %v2743
        %3696 = vmatpush1.bf16.msra.mxu0 %v2742
        %3697 = vmatprep.subr.bf16.mxu0 %v2767
        %3698 = vmatpush1.bf16.msra.mxu0 %v2766
        %3699 = vmatprep.subr.bf16.mxu0 %v2791
        %3700 = vmatpush1.bf16.msra.mxu0 %v2790
        %3701 = vmatprep.subr.bf16.mxu0 %v2815
        %3702 = vmatpush1.bf16.msra.mxu0 %v2814
        %3703 = vmatprep.subr.bf16.mxu0 %v2839
        %3704 = vmatpush1.bf16.msra.mxu0 %v2838
        %3705 = vmatprep.subr.bf16.mxu0 %v2863
        %3706 = vmatpush1.bf16.msra.mxu0 %v2862
        %3707 = vmatprep.subr.bf16.mxu0 %v2887
        %3708 = vmatpush1.bf16.msra.mxu0 %v2886
        %3709 = vmatprep.subr.bf16.mxu0 %v2911
        %3710 = vmatpush1.bf16.msra.mxu0 %v2910
        %3711 = vmatprep.subr.bf16.mxu0 %v2935
        %3712 = vmatpush1.bf16.msra.mxu0 %v2934
        %3713 = vmatprep.subr.bf16.mxu0 %v2959
        %3714 = vmatpush1.bf16.msra.mxu0 %v2958
        %3715 = vmatprep.subr.bf16.mxu0 %v2983
        %3716 = vmatpush1.bf16.msra.mxu0 %v2982
        %3717 = vmatprep.subr.bf16.mxu0 %v3007
        %3718 = vmatpush1.bf16.msra.mxu0 %v3006
        %3719 = vmatprep.mubr.bf16.mxu0 %v969
        %3720 = vmatmul.mubr.bf16.gmra.mrb[0].mxu0 %v968
        %v3721 = vpop.f32.mrb[0].mxu0
        %v3722 = vadd.f32 %v1419, %v3721
        %v3723 = vpop.f32.mrb[0].mxu0
        %v3724 = vadd.f32 %v1423, %v3723
        %v3725 = vpop.f32.mrb[0].mxu0
        %v3726 = vpop.f32.mrb[0].mxu0
        %3727 = vdwg.mxu0
        %3728 = vmatprep.subr.bf16.mxu0 %v2649
        %3729 = vmatpush1.bf16.msra.mxu0 %v2648
        %3730 = vmatprep.subr.bf16.mxu0 %v2673
        %3731 = vmatpush1.bf16.msra.mxu0 %v2672
        %3732 = vmatprep.subr.bf16.mxu0 %v2697
        %3733 = vmatpush1.bf16.msra.mxu0 %v2696
        %3734 = vmatprep.subr.bf16.mxu0 %v2721
        %3735 = vmatpush1.bf16.msra.mxu0 %v2720
        %3736 = vmatprep.subr.bf16.mxu0 %v2745
        %3737 = vmatpush1.bf16.msra.mxu0 %v2744
        %3738 = vmatprep.subr.bf16.mxu0 %v2769
        %3739 = vmatpush1.bf16.msra.mxu0 %v2768
        %3740 = vmatprep.subr.bf16.mxu0 %v2793
        %3741 = vmatpush1.bf16.msra.mxu0 %v2792
        %3742 = vmatprep.subr.bf16.mxu0 %v2817
        %3743 = vmatpush1.bf16.msra.mxu0 %v2816
        %3744 = vmatprep.subr.bf16.mxu0 %v2841
        %3745 = vmatpush1.bf16.msra.mxu0 %v2840
        %3746 = vmatprep.subr.bf16.mxu0 %v2865
        %3747 = vmatpush1.bf16.msra.mxu0 %v2864
        %3748 = vmatprep.subr.bf16.mxu0 %v2889
        %3749 = vmatpush1.bf16.msra.mxu0 %v2888
        %3750 = vmatprep.subr.bf16.mxu0 %v2913
        %3751 = vmatpush1.bf16.msra.mxu0 %v2912
        %3752 = vmatprep.subr.bf16.mxu0 %v2937
        %3753 = vmatpush1.bf16.msra.mxu0 %v2936
        %3754 = vmatprep.subr.bf16.mxu0 %v2961
        %3755 = vmatpush1.bf16.msra.mxu0 %v2960
        %3756 = vmatprep.subr.bf16.mxu0 %v2985
        %3757 = vmatpush1.bf16.msra.mxu0 %v2984
        %3758 = vmatprep.subr.bf16.mxu0 %v3009
        %3759 = vmatpush1.bf16.msra.mxu0 %v3008
        %3760 = vmatprep.mubr.bf16.mxu0 %v969
        %3761 = vmatmul.mubr.bf16.gmra.mrb[0].mxu0 %v968
        %v3762 = vpop.f32.mrb[0].mxu0
        %v3763 = vadd.f32 %v1427, %v3762
        %v3764 = vpop.f32.mrb[0].mxu0
        %v3765 = vadd.f32 %v1431, %v3764
        %v3766 = vpop.f32.mrb[0].mxu0
        %v3767 = vpop.f32.mrb[0].mxu0
        %3768 = vdwg.mxu0
        %3769 = vmatprep.subr.bf16.mxu0 %v2651
        %3770 = vmatpush1.bf16.msra.mxu0 %v2650
        %3771 = vmatprep.subr.bf16.mxu0 %v2675
        %3772 = vmatpush1.bf16.msra.mxu0 %v2674
        %3773 = vmatprep.subr.bf16.mxu0 %v2699
        %3774 = vmatpush1.bf16.msra.mxu0 %v2698
        %3775 = vmatprep.subr.bf16.mxu0 %v2723
        %3776 = vmatpush1.bf16.msra.mxu0 %v2722
        %3777 = vmatprep.subr.bf16.mxu0 %v2747
        %3778 = vmatpush1.bf16.msra.mxu0 %v2746
        %3779 = vmatprep.subr.bf16.mxu0 %v2771
        %3780 = vmatpush1.bf16.msra.mxu0 %v2770
        %3781 = vmatprep.subr.bf16.mxu0 %v2795
        %3782 = vmatpush1.bf16.msra.mxu0 %v2794
        %3783 = vmatprep.subr.bf16.mxu0 %v2819
        %3784 = vmatpush1.bf16.msra.mxu0 %v2818
        %3785 = vmatprep.subr.bf16.mxu0 %v2843
        %3786 = vmatpush1.bf16.msra.mxu0 %v2842
        %3787 = vmatprep.subr.bf16.mxu0 %v2867
        %3788 = vmatpush1.bf16.msra.mxu0 %v2866
        %3789 = vmatprep.subr.bf16.mxu0 %v2891
        %3790 = vmatpush1.bf16.msra.mxu0 %v2890
        %3791 = vmatprep.subr.bf16.mxu0 %v2915
        %3792 = vmatpush1.bf16.msra.mxu0 %v2914
        %3793 = vmatprep.subr.bf16.mxu0 %v2939
        %3794 = vmatpush1.bf16.msra.mxu0 %v2938
        %3795 = vmatprep.subr.bf16.mxu0 %v2963
        %3796 = vmatpush1.bf16.msra.mxu0 %v2962
        %3797 = vmatprep.subr.bf16.mxu0 %v2987
        %3798 = vmatpush1.bf16.msra.mxu0 %v2986
        %3799 = vmatprep.subr.bf16.mxu0 %v3011
        %3800 = vmatpush1.bf16.msra.mxu0 %v3010
        %3801 = vmatprep.mubr.bf16.mxu0 %v969
        %3802 = vmatmul.mubr.bf16.gmra.mrb[0].mxu0 %v968
        %v3803 = vpop.f32.mrb[0].mxu0
        %v3804 = vadd.f32 %v1435, %v3803
        %v3805 = vpop.f32.mrb[0].mxu0
        %v3806 = vadd.f32 %v1439, %v3805
        %v3807 = vpop.f32.mrb[0].mxu0
        %v3808 = vpop.f32.mrb[0].mxu0
        %3809 = vdwg.mxu0
        %3810 = vmatprep.subr.bf16.mxu0 %v2653
        %3811 = vmatpush1.bf16.msra.mxu0 %v2652
        %3812 = vmatprep.subr.bf16.mxu0 %v2677
        %3813 = vmatpush1.bf16.msra.mxu0 %v2676
        %3814 = vmatprep.subr.bf16.mxu0 %v2701
        %3815 = vmatpush1.bf16.msra.mxu0 %v2700
        %3816 = vmatprep.subr.bf16.mxu0 %v2725
        %3817 = vmatpush1.bf16.msra.mxu0 %v2724
        %3818 = vmatprep.subr.bf16.mxu0 %v2749
        %3819 = vmatpush1.bf16.msra.mxu0 %v2748
        %3820 = vmatprep.subr.bf16.mxu0 %v2773
        %3821 = vmatpush1.bf16.msra.mxu0 %v2772
        %3822 = vmatprep.subr.bf16.mxu0 %v2797
        %3823 = vmatpush1.bf16.msra.mxu0 %v2796
        %3824 = vmatprep.subr.bf16.mxu0 %v2821
        %3825 = vmatpush1.bf16.msra.mxu0 %v2820
        %3826 = vmatprep.subr.bf16.mxu0 %v2845
        %3827 = vmatpush1.bf16.msra.mxu0 %v2844
        %3828 = vmatprep.subr.bf16.mxu0 %v2869
        %3829 = vmatpush1.bf16.msra.mxu0 %v2868
        %3830 = vmatprep.subr.bf16.mxu0 %v2893
        %3831 = vmatpush1.bf16.msra.mxu0 %v2892
        %3832 = vmatprep.subr.bf16.mxu0 %v2917
        %3833 = vmatpush1.bf16.msra.mxu0 %v2916
        %3834 = vmatprep.subr.bf16.mxu0 %v2941
        %3835 = vmatpush1.bf16.msra.mxu0 %v2940
        %3836 = vmatprep.subr.bf16.mxu0 %v2965
        %3837 = vmatpush1.bf16.msra.mxu0 %v2964
        %3838 = vmatprep.subr.bf16.mxu0 %v2989
        %3839 = vmatpush1.bf16.msra.mxu0 %v2988
        %3840 = vmatprep.subr.bf16.mxu0 %v3013
        %3841 = vmatpush1.bf16.msra.mxu0 %v3012
        %3842 = vmatprep.mubr.bf16.mxu0 %v969
        %3843 = vmatmul.mubr.bf16.gmra.mrb[0].mxu0 %v968
        %v3844 = vpop.f32.mrb[0].mxu0
        %v3845 = vadd.f32 %v1443, %v3844
        %v3846 = vpop.f32.mrb[0].mxu0
        %v3847 = vadd.f32 %v1447, %v3846
        %v3848 = vpop.f32.mrb[0].mxu0
        %v3849 = vpop.f32.mrb[0].mxu0
        %3850 = vdwg.mxu0
        %3851 = vmatprep.subr.bf16.mxu0 %v2655
        %3852 = vmatpush1.bf16.msra.mxu0 %v2654
        %3853 = vmatprep.subr.bf16.mxu0 %v2679
        %3854 = vmatpush1.bf16.msra.mxu0 %v2678
        %3855 = vmatprep.subr.bf16.mxu0 %v2703
        %3856 = vmatpush1.bf16.msra.mxu0 %v2702
        %3857 = vmatprep.subr.bf16.mxu0 %v2727
        %3858 = vmatpush1.bf16.msra.mxu0 %v2726
        %3859 = vmatprep.subr.bf16.mxu0 %v2751
        %3860 = vmatpush1.bf16.msra.mxu0 %v2750
        %3861 = vmatprep.subr.bf16.mxu0 %v2775
        %3862 = vmatpush1.bf16.msra.mxu0 %v2774
        %3863 = vmatprep.subr.bf16.mxu0 %v2799
        %3864 = vmatpush1.bf16.msra.mxu0 %v2798
        %3865 = vmatprep.subr.bf16.mxu0 %v2823
        %3866 = vmatpush1.bf16.msra.mxu0 %v2822
        %3867 = vmatprep.subr.bf16.mxu0 %v2847
        %3868 = vmatpush1.bf16.msra.mxu0 %v2846
        %3869 = vmatprep.subr.bf16.mxu0 %v2871
        %3870 = vmatpush1.bf16.msra.mxu0 %v2870
        %3871 = vmatprep.subr.bf16.mxu0 %v2895
        %3872 = vmatpush1.bf16.msra.mxu0 %v2894
        %3873 = vmatprep.subr.bf16.mxu0 %v2919
        %3874 = vmatpush1.bf16.msra.mxu0 %v2918
        %3875 = vmatprep.subr.bf16.mxu0 %v2943
        %3876 = vmatpush1.bf16.msra.mxu0 %v2942
        %3877 = vmatprep.subr.bf16.mxu0 %v2967
        %3878 = vmatpush1.bf16.msra.mxu0 %v2966
        %3879 = vmatprep.subr.bf16.mxu0 %v2991
        %3880 = vmatpush1.bf16.msra.mxu0 %v2990
        %3881 = vmatprep.subr.bf16.mxu0 %v3015
        %3882 = vmatpush1.bf16.msra.mxu0 %v3014
        %3883 = vmatprep.mubr.bf16.mxu0 %v969
        %3884 = vmatmul.mubr.bf16.gmra.mrb[0].mxu0 %v968
        %v3885 = vpop.f32.mrb[0].mxu0
        %v3886 = vadd.f32 %v1451, %v3885
        %v3887 = vpop.f32.mrb[0].mxu0
        %v3888 = vadd.f32 %v1455, %v3887
        %v3889 = vpop.f32.mrb[0].mxu0
        %v3890 = vpop.f32.mrb[0].mxu0
        %3891 = vdwg.mxu0
        %v3916 = vcombine.low %v3435, %v3437
        %v3917 = vcombine.low %v3476, %v3478
        %v3919 = vunpack.c.l.s4 1983009808
        %v3920 = vunpack.c.0.s8 %v3919
        %v3921 = vlaneseq
        %v3922 = vshrl.u32 %v3921, 7
        %v3923 = vsub.s32 %v3920, %v3922
        %v3924 = vrot.slane %v3916, %v3923
        %v3926 = vunpack.c.l.s4 1983009808
        %v3927 = vunpack.c.0.s8 %v3926
        %v3928 = vlaneseq
        %v3929 = vshrl.u32 %v3928, 7
        %v3930 = vsub.s32 %v3927, %v3929
        %v3931 = vrot.slane %v3917, %v3930
        %v3932 = vcombine.low %v3924, %v3931
        %v3933 = vcombine.low %v3517, %v3519
        %v3934 = vcombine.low %v3558, %v3560
        %v3936 = vunpack.c.l.s4 1983009808
        %v3937 = vunpack.c.0.s8 %v3936
        %v3938 = vlaneseq
        %v3939 = vshrl.u32 %v3938, 7
        %v3940 = vsub.s32 %v3937, %v3939
        %v3941 = vrot.slane %v3933, %v3940
        %v3943 = vunpack.c.l.s4 1983009808
        %v3944 = vunpack.c.0.s8 %v3943
        %v3945 = vlaneseq
        %v3946 = vshrl.u32 %v3945, 7
        %v3947 = vsub.s32 %v3944, %v3946
        %v3948 = vrot.slane %v3934, %v3947
        %v3949 = vcombine.low %v3941, %v3948
        %v3950 = vcombine.low %v3599, %v3601
        %v3951 = vcombine.low %v3640, %v3642
        %v3953 = vunpack.c.l.s4 1983009808
        %v3954 = vunpack.c.0.s8 %v3953
        %v3955 = vlaneseq
        %v3956 = vshrl.u32 %v3955, 7
        %v3957 = vsub.s32 %v3954, %v3956
        %v3958 = vrot.slane %v3950, %v3957
        %v3960 = vunpack.c.l.s4 1983009808
        %v3961 = vunpack.c.0.s8 %v3960
        %v3962 = vlaneseq
        %v3963 = vshrl.u32 %v3962, 7
        %v3964 = vsub.s32 %v3961, %v3963
        %v3965 = vrot.slane %v3951, %v3964
        %v3966 = vcombine.low %v3958, %v3965
        %v3967 = vcombine.low %v3681, %v3683
        %v3968 = vcombine.low %v3722, %v3724
        %v3970 = vunpack.c.l.s4 1983009808
        %v3971 = vunpack.c.0.s8 %v3970
        %v3972 = vlaneseq
        %v3973 = vshrl.u32 %v3972, 7
        %v3974 = vsub.s32 %v3971, %v3973
        %v3975 = vrot.slane %v3967, %v3974
        %v3977 = vunpack.c.l.s4 1983009808
        %v3978 = vunpack.c.0.s8 %v3977
        %v3979 = vlaneseq
        %v3980 = vshrl.u32 %v3979, 7
        %v3981 = vsub.s32 %v3978, %v3980
        %v3982 = vrot.slane %v3968, %v3981
        %v3983 = vcombine.low %v3975, %v3982
        %v3984 = vcombine.low %v3763, %v3765
        %v3985 = vcombine.low %v3804, %v3806
        %v3987 = vunpack.c.l.s4 1983009808
        %v3988 = vunpack.c.0.s8 %v3987
        %v3989 = vlaneseq
        %v3990 = vshrl.u32 %v3989, 7
        %v3991 = vsub.s32 %v3988, %v3990
        %v3992 = vrot.slane %v3984, %v3991
        %v3994 = vunpack.c.l.s4 1983009808
        %v3995 = vunpack.c.0.s8 %v3994
        %v3996 = vlaneseq
        %v3997 = vshrl.u32 %v3996, 7
        %v3998 = vsub.s32 %v3995, %v3997
        %v3999 = vrot.slane %v3985, %v3998
        %v4000 = vcombine.low %v3992, %v3999
        %v4001 = vcombine.low %v3845, %v3847
        %v4002 = vcombine.low %v3886, %v3888
        %v4004 = vunpack.c.l.s4 1983009808
        %v4005 = vunpack.c.0.s8 %v4004
        %v4006 = vlaneseq
        %v4007 = vshrl.u32 %v4006, 7
        %v4008 = vsub.s32 %v4005, %v4007
        %v4009 = vrot.slane %v4001, %v4008
        %v4011 = vunpack.c.l.s4 1983009808
        %v4012 = vunpack.c.0.s8 %v4011
        %v4013 = vlaneseq
        %v4014 = vshrl.u32 %v4013, 7
        %v4015 = vsub.s32 %v4012, %v4014
        %v4016 = vrot.slane %v4002, %v4015
        %v4017 = vcombine.low %v4009, %v4016
        %4024 = vst [vmem:[%s479] sm:$0xff] %v3932
        %4025 = vst [vmem:[%s479 + $0x8] sm:$0xff] %v3949
        %4026 = vst [vmem:[%s479 + $0x10] sm:$0xff] %v3966
        %4027 = vst [vmem:[%s479 + $0x18] sm:$0xff] %v3983
        %4028 = vst [vmem:[%s479 + $0x20] sm:$0xff] %v4000
        %4029 = vst [vmem:[%s479 + $0x28] sm:$0xff] %v4017
        %s4030 = sand.u32 %s237, 1
        %s4031 = scalar_lea.sflag [#allocation4], %s4030
        %s4032 = sand.u32 %s237, 1
        %s4033 = smul.addr %s4032, 48
        %s4034 = scalar_lea.vmem [#allocation17], %s4033
        // Predicated region
        $region93: #{decoder_fc_forward.1} parent=55 // pred_check
          %p4035 = pneg %p247
        $region94: #{decoder_fc_forward.1} parent=55 // pred_check_branch
          %4037 = sbr.rel (%p4035) target = $region96
        $region95: #{decoder_fc_forward.1} parent=55 // pred_region
          %s4038 = smul.u32 24, %s30
          %s4040 = ssub.s32 768, 768
          %4041 = vsyncadd %s4031, %s4040
          %s4042 = smul.addr %s4038, 32
          %s4043 = scalar_lea.hbm %s9, %s4042
          %s4045 = sshll.u32 %s4034, 4
          %s4046 = int_to_ptr.vmem [resolvable:$true] %s4045
          %4048 = dma.vmem_to_hbm [thread:$0]  %s4046, 768, %s4043, %s4031
        $region96: #{decoder_fc_forward.1} parent=55 // pred_fallthru
          _
      $region56: #{decoder_fc_forward.1} parent=5 // pred_fallthru
        _
      %p4049 = scmp.le.s32.totalorder 2, %s25
      // Predicated region
      $region97: #{decoder_fc_forward.1} parent=5 // pred_check
        %p4050 = pneg %p4049
      $region98: #{decoder_fc_forward.1} parent=5 // pred_check_branch
        %4052 = sbr.rel (%p4050) target = $region100
      $region99: #{decoder_fc_forward.1} parent=5 // pred_region
        %s4053 = ssub.s32 %s25, 2
        // Predicated region
        $region101: #{decoder_fc_forward.1} parent=99 // pred_check
          %p4054 = pneg %p253
        $region102: #{decoder_fc_forward.1} parent=99 // pred_check_branch
          %4056 = sbr.rel (%p4054) target = $region104
        $region103: #{decoder_fc_forward.1} parent=99 // pred_region
          %s4057 = sand.u32 %s238, 1
          %s4058 = scalar_lea.sflag [#allocation4], %s4057
          %s4059 = sand.u32 %s238, 1
          %s4060 = smul.addr %s4059, 48
          %s4061 = scalar_lea.vmem [#allocation17], %s4060
          %4062 = dma.done %s4058, 768
        $region104: #{decoder_fc_forward.1} parent=99 // pred_fallthru
          _
      $region100: #{decoder_fc_forward.1} parent=5 // pred_fallthru
        _
    $region6: #{decoder_fc_forward.1} parent=1 // loop_footer
      %s29 = sadd.s32 1, %s25
    $region7: #{decoder_fc_forward.1} parent=1 // loop_footer_branch
      %24 = sbr.rel target = $region3
    $region8: #{decoder_fc_forward.1} parent=1 // loop_exit
      _
    %4063 = vsyncpa [#allocation3], 1
    %s4064 = scalar_lea.sflag [#allocation3], 1
    %4065 = vsyncpa %s4064, 1
    %4066 = vsyncpa [#allocation6], 1
    %4067 = vsyncpa [#allocation9], 1
    %4068 = vsyncpa [#allocation12], 1
    %4069 = vsyncpa [#allocation15], 1
    %s4070 = scalar_lea.sflag [#allocation15], 1
    %4071 = vsyncpa %s4070, 1
    %4072 = vsyncpa [#allocation4], 1
    %s4073 = scalar_lea.sflag [#allocation4], 1
    %4074 = vsyncpa %s4073, 1

</llo_original>
